<compile_context>
chip_gen: v7x
topology: tpu7x:2x2x1
jax: 0.10.0
libtpu: 0.0.40
codegen_flags: <defaults>
</compile_context>

<pallas_src>
import functools

import jax
import jax.numpy as jnp
from jax.experimental import pallas as pl
from jax.experimental.pallas import tpu as pltpu

# ---------------- sizes (small, deterministic, lane-dense) ----------------
B = 2          # batch
S_ENC = 8      # encoder seq len
S_DEC = 8      # decoder-prefix seq len
S_LAB = 8      # labels seq len
VOCAB = 128    # multiple of 128 (lane-dense LM head / logits / one-hot gather)
H_ENC = 128    # multiple of 128 (lane-dense hidden)
H_DEC = 128
FF = 256
NEG = -1e9

_ARB = pltpu.CompilerParams(dimension_semantics=("arbitrary",))


def _full_spec(shape):
    # Whole-array block (block shape == array shape satisfies the (8,128) rule).
    return pl.BlockSpec(shape, lambda i, _n=len(shape): (0,) * _n)


# ---------------- in-kernel helpers (operate on loaded arrays) ----------------
def _onehot_embed(ids, table):
    """Embedding gather as an MXU matmul: one_hot(ids, V) @ table.

    ids: (M, 1) int32, table: (V, H) f32 -> (M, H) f32.
    """
    M = ids.shape[0]
    V = table.shape[0]
    iota = jax.lax.broadcasted_iota(jnp.int32, (M, V), 1)
    onehot = jnp.where(iota == ids, 1.0, 0.0).astype(jnp.bfloat16)
    return jnp.dot(onehot, table.astype(jnp.bfloat16),
                   preferred_element_type=jnp.float32)


def _attn_ffn_block(h, row_b, col_key, causal,
                    wqkv, bqkv, wo, bo, w1, b1, w2, b2):
    """Single-head transformer block on flattened (M, H) rows.

    row_b:   (M, 1) int32 batch index of each query row.
    col_key: (1, M) int32 batch index of each key column, -1 if the key is padding.
    Attention is one flat (M, M) score matmul; same-batch + padding masking comes
    from `row_b == col_key`, causality (if any) from flat index comparison.
    """
    M, H = h.shape
    hb = h.astype(jnp.bfloat16)

    # Fused Q|K|V projection: one (M, H) x (H, 3H) MXU matmul.
    qkv = jnp.dot(hb, wqkv, preferred_element_type=jnp.float32) + bqkv
    q = qkv[:, 0 * H:1 * H].astype(jnp.bfloat16)
    k = qkv[:, 1 * H:2 * H].astype(jnp.bfloat16)
    v = qkv[:, 2 * H:3 * H].astype(jnp.bfloat16)

    scale = 1.0 / float(H) ** 0.5
    # Scores: contract last axes directly (no materialized K transpose).
    s = jnp.einsum("md,nd->mn", q, k, preferred_element_type=jnp.float32) * scale

    allowed = row_b == col_key                     # (M, M); padded keys have col_key=-1
    if causal:
        ri = jax.lax.broadcasted_iota(jnp.int32, (M, M), 0)
        ci = jax.lax.broadcasted_iota(jnp.int32, (M, M), 1)
        # Within the same batch, flat-index causality == positional causality.
        allowed = jnp.logical_and(allowed, ri >= ci)
    s = jnp.where(allowed, s, NEG)

    # Softmax (f32 elementwise); normalize p BEFORE the PV matmul (fewer elements).
    m = jnp.max(s, axis=-1, keepdims=True)
    p = jnp.exp(s - m)
    denom = jnp.sum(p, axis=-1, keepdims=True)     # >= 1 always (at least one exp(0))
    p = (p * pl.reciprocal(denom, approx=True)).astype(jnp.bfloat16)

    attn = jnp.dot(p, v, preferred_element_type=jnp.float32)
    attn_out = jnp.dot(attn.astype(jnp.bfloat16), wo,
                       preferred_element_type=jnp.float32) + bo
    h1 = h + attn_out                              # residual (f32)

    # FFN (gelu tanh-approx; note: PyTorch nn.GELU default is exact erf).
    ff = jnp.dot(h1.astype(jnp.bfloat16), w1, preferred_element_type=jnp.float32) + b1
    ff = jax.nn.gelu(ff, approximate=True)
    ff = jnp.dot(ff.astype(jnp.bfloat16), w2, preferred_element_type=jnp.float32) + b2
    return h1 + ff


# ---------------- the single fused kernel ----------------
def _fused_fwd_kernel(enc_ids_ref, dl_ids_ref, lab_ref,
                      enc_rb_ref, enc_ck_ref, dec_rb_ref, dec_ck_ref,
                      enc_emb_ref, dec_emb_ref,
                      e_wqkv, e_bqkv, e_wo, e_bo, e_w1, e_b1, e_w2, e_b2,
                      p_w1, p_b1, p_w2, p_b2,
                      d_wqkv, d_bqkv, d_wo, d_bo, d_w1, d_b1, d_w2, d_b2,
                      lm_w, lm_b,
                      logits_ref, loss_ref, slab_ref,
                      *, batch, s_enc, s_dl):
    T = s_enc + s_dl
    V = lm_w.shape[1]

    # ---- encoder: one-hot embed + bidirectional transformer block ----
    x = _onehot_embed(enc_ids_ref[...], enc_emb_ref[...])            # (B*s_enc, H)
    x = _attn_ffn_block(x, enc_rb_ref[...], enc_ck_ref[...], False,
                        e_wqkv[...], e_bqkv[...], e_wo[...], e_bo[...],
                        e_w1[...], e_b1[...], e_w2[...], e_b2[...])

    # ---- projector (linear + gelu + linear) ----
    y = jnp.dot(x.astype(jnp.bfloat16), p_w1[...],
                preferred_element_type=jnp.float32) + p_b1[...]
    y = jax.nn.gelu(y, approximate=True)
    y = jnp.dot(y.astype(jnp.bfloat16), p_w2[...],
                preferred_element_type=jnp.float32) + p_b2[...]      # (B*s_enc, H_DEC)

    # ---- decoder-prefix + label embeddings (one combined one-hot matmul) ----
    dl = _onehot_embed(dl_ids_ref[...], dec_emb_ref[...])            # (B*s_dl, H_DEC)

    # ---- assemble the decoder input slab in VMEM (replaces HBM concats) ----
    for b in range(batch):
        slab_ref[b * T:b * T + s_enc, :] = y[b * s_enc:(b + 1) * s_enc, :]
        slab_ref[b * T + s_enc:(b + 1) * T, :] = dl[b * s_dl:(b + 1) * s_dl, :]

    # ---- decoder: causal transformer block + LM head ----
    h = _attn_ffn_block(slab_ref[...], dec_rb_ref[...], dec_ck_ref[...], True,
                        d_wqkv[...], d_bqkv[...], d_wo[...], d_bo[...],
                        d_w1[...], d_b1[...], d_w2[...], d_b2[...])
    logits = jnp.dot(h.astype(jnp.bfloat16), lm_w[...],
                     preferred_element_type=jnp.float32) + lm_b[...]  # (B*T, V)
    logits_ref[...] = logits.reshape(batch, T, V)

    # ---- shifted cross-entropy with ignore_index=-100 (labels are pre-shifted) ----
    labels = lab_ref[...]                                            # (B*T, 1) int32
    m = jnp.max(logits, axis=-1, keepdims=True)
    lse = m + jnp.log(jnp.sum(jnp.exp(logits - m), axis=-1, keepdims=True))
    iota = jax.lax.broadcasted_iota(jnp.int32, logits.shape, 1)
    picked = jnp.sum(jnp.where(iota == labels, logits, 0.0), axis=-1, keepdims=True)
    valid = (labels != -100).astype(jnp.float32)
    per_tok = (lse - picked) * valid
    total = jnp.sum(per_tok)
    count = jnp.maximum(jnp.sum(valid), 1.0)
    loss_ref[...] = (total / count).reshape(1, 1)


# ---------------- forward wrapper: tiny int preprocessing + one pallas_call ----------------
def inv_encoder_decoder_forward(params,
                                encoder_input_ids, encoder_input_attention_mask,
                                decoder_input_ids, decoder_input_attention_mask,
                                labels, labels_attention_mask):
    i32 = jnp.int32
    Bb, Se = encoder_input_ids.shape
    Sd = decoder_input_ids.shape[1]
    Sl = labels.shape[1]
    T = Se + Sd + Sl
    Hd = params["dec_embed"].shape[1]
    V = params["lm_head_w"].shape[1]

    # Tiny int32 helper tensors (few hundred bytes; fused by XLA ahead of the one launch).
    enc_mask = encoder_input_attention_mask.astype(i32)
    all_mask = jnp.concatenate([enc_mask, decoder_input_attention_mask.astype(i32),
                                labels_attention_mask.astype(i32)], axis=1)      # (B, T)
    bidx = jnp.arange(Bb, dtype=i32)[:, None]

    enc_rb = jnp.broadcast_to(bidx, (Bb, Se)).reshape(Bb * Se, 1)                # row batch idx
    enc_ck = jnp.where(enc_mask > 0, bidx, -1).reshape(1, Bb * Se)               # key batch idx / -1
    dec_rb = jnp.broadcast_to(bidx, (Bb, T)).reshape(Bb * T, 1)
    dec_ck = jnp.where(all_mask > 0, bidx, -1).reshape(1, Bb * T)

    enc_ids = encoder_input_ids.astype(i32).reshape(Bb * Se, 1)
    dl_ids = jnp.concatenate([decoder_input_ids.astype(i32), labels.astype(i32)],
                             axis=1).reshape(Bb * (Sd + Sl), 1)

    # HF-style shifted next-token CE: prefix positions ignored (-100), position t scored
    # against labels[t+1], last position ignored.
    padding_labels = jnp.concatenate(
        [jnp.full((Bb, Se + Sd), -100, dtype=i32), labels.astype(i32)], axis=1)  # (B, T)
    shifted = jnp.concatenate(
        [padding_labels[:, 1:], jnp.full((Bb, 1), -100, dtype=i32)],
        axis=1).reshape(Bb * T, 1)

    eb, db = params["enc_block"], params["dec_block"]
    args = (enc_ids, dl_ids, shifted, enc_rb, enc_ck, dec_rb, dec_ck,
            params["enc_embed"], params["dec_embed"],
            eb["wqkv"], eb["bqkv"], eb["wo"], eb["bo"],
            eb["w1"], eb["b1"], eb["w2"], eb["b2"],
            params["proj_w1"], params["proj_b1"], params["proj_w2"], params["proj_b2"],
            db["wqkv"], db["bqkv"], db["wo"], db["bo"],
            db["w1"], db["b1"], db["w2"], db["b2"],
            params["lm_head_w"], params["lm_head_b"])

    kernel = functools.partial(_fused_fwd_kernel, batch=Bb, s_enc=Se, s_dl=Sd + Sl)

    logits, loss = pl.pallas_call(
        kernel,
        out_shape=(jax.ShapeDtypeStruct((Bb, T, V), jnp.float32),
                   jax.ShapeDtypeStruct((1, 1), jnp.float32)),
        grid=(1,),
        in_specs=[_full_spec(a.shape) for a in args],
        out_specs=(_full_spec((Bb, T, V)), _full_spec((1, 1))),
        scratch_shapes=[pltpu.VMEM((Bb * T, Hd), jnp.float32)],
        compiler_params=_ARB,
    )(*args)
    return {"loss": loss[0, 0], "logits": logits}


# ---------------- deterministic parameter init (bf16 weights, f32 biases/embeds) ----------------
def init_params(key):
    keys = iter(jax.random.split(key, 16))

    def normal(shape, scale=0.02, dtype=jnp.bfloat16):
        return (scale * jax.random.normal(next(keys), shape)).astype(dtype)

    def block(h, ff):
        return {
            "wqkv": normal((h, 3 * h)), "bqkv": jnp.zeros((1, 3 * h), jnp.float32),
            "wo": normal((h, h)),       "bo": jnp.zeros((1, h), jnp.float32),
            "w1": normal((h, ff)),      "b1": jnp.zeros((1, ff), jnp.float32),
            "w2": normal((ff, h)),      "b2": jnp.zeros((1, h), jnp.float32),
        }

    return {
        "enc_embed": normal((VOCAB, H_ENC), dtype=jnp.float32),
        "dec_embed": normal((VOCAB, H_DEC), dtype=jnp.float32),
        "enc_block": block(H_ENC, FF),
        "dec_block": block(H_DEC, FF),
        "proj_w1": normal((H_ENC, H_DEC)), "proj_b1": jnp.zeros((1, H_DEC), jnp.float32),
        "proj_w2": normal((H_DEC, H_DEC)), "proj_b2": jnp.zeros((1, H_DEC), jnp.float32),
        "lm_head_w": normal((H_DEC, VOCAB)), "lm_head_b": jnp.zeros((1, VOCAB), jnp.float32),
    }


# TODO(synk): `generate` (autoregressive HF decoding loop) and `forward_hidden_states`
#             are not implemented — only forward().

if __name__ == "__main__":
    root = jax.random.PRNGKey(0)
    k_param, k1, k2, k3 = jax.random.split(root, 4)
    params = init_params(k_param)

    encoder_input_ids = jax.random.randint(k1, (B, S_ENC), 0, VOCAB, dtype=jnp.int32)
    decoder_input_ids = jax.random.randint(k2, (B, S_DEC), 0, VOCAB, dtype=jnp.int32)
    labels = jax.random.randint(k3, (B, S_LAB), 0, VOCAB, dtype=jnp.int32)

    # masks: leading ones, a couple of trailing padding zeros (deterministic).
    encoder_input_attention_mask = jnp.ones((B, S_ENC), jnp.int32).at[1, -2:].set(0)
    decoder_input_attention_mask = jnp.ones((B, S_DEC), jnp.int32)
    labels_attention_mask = jnp.ones((B, S_LAB), jnp.int32).at[0, -1:].set(0)

    fwd = jax.jit(functools.partial(inv_encoder_decoder_forward, params))
    out = fwd(encoder_input_ids, encoder_input_attention_mask,
              decoder_input_ids, decoder_input_attention_mask,
              labels, labels_attention_mask)
    jax.block_until_ready(out)

    assert out["logits"].shape == (B, S_ENC + S_DEC + S_LAB, VOCAB)
    assert out["loss"].shape == ()
    assert bool(jnp.isfinite(out["loss"]))
    print("KERNEL_OK")
</pallas_src>

<mosaic_0001>
module attributes {stable_mosaic.version = 11 : i64} {
  func.func @_fused_fwd_kernel(%arg0: i32, %arg1: memref<16x1xi32, #tpu.memory_space<vmem>>, %arg2: memref<32x1xi32, #tpu.memory_space<vmem>>, %arg3: memref<48x1xi32, #tpu.memory_space<vmem>>, %arg4: memref<16x1xi32, #tpu.memory_space<vmem>>, %arg5: memref<1x16xi32, #tpu.memory_space<vmem>>, %arg6: memref<48x1xi32, #tpu.memory_space<vmem>>, %arg7: memref<1x48xi32, #tpu.memory_space<vmem>>, %arg8: memref<128x128xf32, #tpu.memory_space<vmem>>, %arg9: memref<128x128xf32, #tpu.memory_space<vmem>>, %arg10: memref<128x384xbf16, #tpu.memory_space<vmem>>, %arg11: memref<1x384xf32, #tpu.memory_space<vmem>>, %arg12: memref<128x128xbf16, #tpu.memory_space<vmem>>, %arg13: memref<1x128xf32, #tpu.memory_space<vmem>>, %arg14: memref<128x256xbf16, #tpu.memory_space<vmem>>, %arg15: memref<1x256xf32, #tpu.memory_space<vmem>>, %arg16: memref<256x128xbf16, #tpu.memory_space<vmem>>, %arg17: memref<1x128xf32, #tpu.memory_space<vmem>>, %arg18: memref<128x128xbf16, #tpu.memory_space<vmem>>, %arg19: memref<1x128xf32, #tpu.memory_space<vmem>>, %arg20: memref<128x128xbf16, #tpu.memory_space<vmem>>, %arg21: memref<1x128xf32, #tpu.memory_space<vmem>>, %arg22: memref<128x384xbf16, #tpu.memory_space<vmem>>, %arg23: memref<1x384xf32, #tpu.memory_space<vmem>>, %arg24: memref<128x128xbf16, #tpu.memory_space<vmem>>, %arg25: memref<1x128xf32, #tpu.memory_space<vmem>>, %arg26: memref<128x256xbf16, #tpu.memory_space<vmem>>, %arg27: memref<1x256xf32, #tpu.memory_space<vmem>>, %arg28: memref<256x128xbf16, #tpu.memory_space<vmem>>, %arg29: memref<1x128xf32, #tpu.memory_space<vmem>>, %arg30: memref<128x128xbf16, #tpu.memory_space<vmem>>, %arg31: memref<1x128xf32, #tpu.memory_space<vmem>>, %arg32: memref<2x24x128xf32, #tpu.memory_space<vmem>>, %arg33: memref<1x1xf32, #tpu.memory_space<vmem>>, %arg34: memref<48x128xf32, #tpu.memory_space<vmem>>) attributes {dimension_semantics = [#tpu.dimension_semantics<arbitrary>], iteration_bounds = array<i64: 1>, scalar_prefetch = 0 : i64, scratch_operands = 1 : i64, tpu.core_type = #tpu.core_type<tc>, window_params = [{pipeline_mode = #tpu.pipeline_mode<synchronous>, transform_indices = @transform_0, window_bounds = array<i64: 16, 1>}, {pipeline_mode = #tpu.pipeline_mode<synchronous>, transform_indices = @transform_1, window_bounds = array<i64: 32, 1>}, {pipeline_mode = #tpu.pipeline_mode<synchronous>, transform_indices = @transform_2, window_bounds = array<i64: 48, 1>}, {pipeline_mode = #tpu.pipeline_mode<synchronous>, transform_indices = @transform_3, window_bounds = array<i64: 16, 1>}, {pipeline_mode = #tpu.pipeline_mode<synchronous>, transform_indices = @transform_4, window_bounds = array<i64: 1, 16>}, {pipeline_mode = #tpu.pipeline_mode<synchronous>, transform_indices = @transform_5, window_bounds = array<i64: 48, 1>}, {pipeline_mode = #tpu.pipeline_mode<synchronous>, transform_indices = @transform_6, window_bounds = array<i64: 1, 48>}, {pipeline_mode = #tpu.pipeline_mode<synchronous>, transform_indices = @transform_7, window_bounds = array<i64: 128, 128>}, {pipeline_mode = #tpu.pipeline_mode<synchronous>, transform_indices = @transform_8, window_bounds = array<i64: 128, 128>}, {pipeline_mode = #tpu.pipeline_mode<synchronous>, transform_indices = @transform_9, window_bounds = array<i64: 128, 384>}, {pipeline_mode = #tpu.pipeline_mode<synchronous>, transform_indices = @transform_10, window_bounds = array<i64: 1, 384>}, {pipeline_mode = #tpu.pipeline_mode<synchronous>, transform_indices = @transform_11, window_bounds = array<i64: 128, 128>}, {pipeline_mode = #tpu.pipeline_mode<synchronous>, transform_indices = @transform_12, window_bounds = array<i64: 1, 128>}, {pipeline_mode = #tpu.pipeline_mode<synchronous>, transform_indices = @transform_13, window_bounds = array<i64: 128, 256>}, {pipeline_mode = #tpu.pipeline_mode<synchronous>, transform_indices = @transform_14, window_bounds = array<i64: 1, 256>}, {pipeline_mode = #tpu.pipeline_mode<synchronous>, transform_indices = @transform_15, window_bounds = array<i64: 256, 128>}, {pipeline_mode = #tpu.pipeline_mode<synchronous>, transform_indices = @transform_16, window_bounds = array<i64: 1, 128>}, {pipeline_mode = #tpu.pipeline_mode<synchronous>, transform_indices = @transform_17, window_bounds = array<i64: 128, 128>}, {pipeline_mode = #tpu.pipeline_mode<synchronous>, transform_indices = @transform_18, window_bounds = array<i64: 1, 128>}, {pipeline_mode = #tpu.pipeline_mode<synchronous>, transform_indices = @transform_19, window_bounds = array<i64: 128, 128>}, {pipeline_mode = #tpu.pipeline_mode<synchronous>, transform_indices = @transform_20, window_bounds = array<i64: 1, 128>}, {pipeline_mode = #tpu.pipeline_mode<synchronous>, transform_indices = @transform_21, window_bounds = array<i64: 128, 384>}, {pipeline_mode = #tpu.pipeline_mode<synchronous>, transform_indices = @transform_22, window_bounds = array<i64: 1, 384>}, {pipeline_mode = #tpu.pipeline_mode<synchronous>, transform_indices = @transform_23, window_bounds = array<i64: 128, 128>}, {pipeline_mode = #tpu.pipeline_mode<synchronous>, transform_indices = @transform_24, window_bounds = array<i64: 1, 128>}, {pipeline_mode = #tpu.pipeline_mode<synchronous>, transform_indices = @transform_25, window_bounds = array<i64: 128, 256>}, {pipeline_mode = #tpu.pipeline_mode<synchronous>, transform_indices = @transform_26, window_bounds = array<i64: 1, 256>}, {pipeline_mode = #tpu.pipeline_mode<synchronous>, transform_indices = @transform_27, window_bounds = array<i64: 256, 128>}, {pipeline_mode = #tpu.pipeline_mode<synchronous>, transform_indices = @transform_28, window_bounds = array<i64: 1, 128>}, {pipeline_mode = #tpu.pipeline_mode<synchronous>, transform_indices = @transform_29, window_bounds = array<i64: 128, 128>}, {pipeline_mode = #tpu.pipeline_mode<synchronous>, transform_indices = @transform_30, window_bounds = array<i64: 1, 128>}, {pipeline_mode = #tpu.pipeline_mode<synchronous>, transform_indices = @transform_31, window_bounds = array<i64: 2, 24, 128>}, {pipeline_mode = #tpu.pipeline_mode<synchronous>, transform_indices = @transform_32, window_bounds = array<i64: 1, 1>}]} {
    %c0 = arith.constant 0 : index
    %c0_0 = arith.constant 0 : index
    %0 = vector.load %arg1[%c0, %c0_0] : memref<16x1xi32, #tpu.memory_space<vmem>>, vector<16x1xi32>
    %c0_1 = arith.constant 0 : index
    %c0_2 = arith.constant 0 : index
    %1 = vector.load %arg8[%c0_1, %c0_2] : memref<128x128xf32, #tpu.memory_space<vmem>>, vector<128x128xf32>
    %2 = tpu.iota {dimensions = array<i32: 1>} : vector<16x128xi32>
    %3 = vector.broadcast %0 : vector<16x1xi32> to vector<16x128xi32>
    %4 = arith.cmpi eq, %2, %3 : vector<16x128xi32>
    %cst = arith.constant 1.000000e+00 : f32
    %cst_3 = arith.constant 0.000000e+00 : f32
    %5 = vector.broadcast %cst : f32 to vector<16x128xf32>
    %6 = vector.broadcast %cst_3 : f32 to vector<16x128xf32>
    %7 = arith.select %4, %5, %6 : vector<16x128xi1>, vector<16x128xf32>
    %8 = arith.truncf %7 : vector<16x128xf32> to vector<16x128xbf16>
    %9 = arith.truncf %1 : vector<128x128xf32> to vector<128x128xbf16>
    %cst_4 = arith.constant dense<0.000000e+00> : vector<16x128xf32>
    %10 = tpu.matmul %8, %9, %cst_4 {dimension_numbers = #tpu.dot_dimension_numbers<[1], [0], [0], [1], [0, 0, 1, 1], [], []>} : vector<16x128xbf16>, vector<128x128xbf16>, vector<16x128xf32> -> vector<16x128xf32>
    %c0_5 = arith.constant 0 : index
    %c0_6 = arith.constant 0 : index
    %11 = vector.load %arg4[%c0_5, %c0_6] : memref<16x1xi32, #tpu.memory_space<vmem>>, vector<16x1xi32>
    %c0_7 = arith.constant 0 : index
    %c0_8 = arith.constant 0 : index
    %12 = vector.load %arg5[%c0_7, %c0_8] : memref<1x16xi32, #tpu.memory_space<vmem>>, vector<1x16xi32>
    %c0_9 = arith.constant 0 : index
    %c0_10 = arith.constant 0 : index
    %13 = vector.load %arg10[%c0_9, %c0_10] : memref<128x384xbf16, #tpu.memory_space<vmem>>, vector<128x384xbf16>
    %c0_11 = arith.constant 0 : index
    %c0_12 = arith.constant 0 : index
    %14 = vector.load %arg11[%c0_11, %c0_12] : memref<1x384xf32, #tpu.memory_space<vmem>>, vector<1x384xf32>
    %c0_13 = arith.constant 0 : index
    %c0_14 = arith.constant 0 : index
    %15 = vector.load %arg12[%c0_13, %c0_14] : memref<128x128xbf16, #tpu.memory_space<vmem>>, vector<128x128xbf16>
    %c0_15 = arith.constant 0 : index
    %c0_16 = arith.constant 0 : index
    %16 = vector.load %arg13[%c0_15, %c0_16] : memref<1x128xf32, #tpu.memory_space<vmem>>, vector<1x128xf32>
    %c0_17 = arith.constant 0 : index
    %c0_18 = arith.constant 0 : index
    %17 = vector.load %arg14[%c0_17, %c0_18] : memref<128x256xbf16, #tpu.memory_space<vmem>>, vector<128x256xbf16>
    %c0_19 = arith.constant 0 : index
    %c0_20 = arith.constant 0 : index
    %18 = vector.load %arg15[%c0_19, %c0_20] : memref<1x256xf32, #tpu.memory_space<vmem>>, vector<1x256xf32>
    %c0_21 = arith.constant 0 : index
    %c0_22 = arith.constant 0 : index
    %19 = vector.load %arg16[%c0_21, %c0_22] : memref<256x128xbf16, #tpu.memory_space<vmem>>, vector<256x128xbf16>
    %c0_23 = arith.constant 0 : index
    %c0_24 = arith.constant 0 : index
    %20 = vector.load %arg17[%c0_23, %c0_24] : memref<1x128xf32, #tpu.memory_space<vmem>>, vector<1x128xf32>
    %21 = arith.truncf %10 : vector<16x128xf32> to vector<16x128xbf16>
    %cst_25 = arith.constant dense<0.000000e+00> : vector<16x384xf32>
    %22 = tpu.matmul %21, %13, %cst_25 {dimension_numbers = #tpu.dot_dimension_numbers<[1], [0], [0], [1], [0, 0, 1, 1], [], []>} : vector<16x128xbf16>, vector<128x384xbf16>, vector<16x384xf32> -> vector<16x384xf32>
    %23 = vector.broadcast %14 : vector<1x384xf32> to vector<16x384xf32>
    %24 = arith.addf %22, %23 : vector<16x384xf32>
    %25 = vector.extract_strided_slice %24 {offsets = [0, 0], sizes = [16, 128], strides = [1, 1]} : vector<16x384xf32> to vector<16x128xf32>
    %26 = arith.truncf %25 : vector<16x128xf32> to vector<16x128xbf16>
    %27 = vector.extract_strided_slice %24 {offsets = [0, 128], sizes = [16, 128], strides = [1, 1]} : vector<16x384xf32> to vector<16x128xf32>
    %28 = arith.truncf %27 : vector<16x128xf32> to vector<16x128xbf16>
    %29 = vector.extract_strided_slice %24 {offsets = [0, 256], sizes = [16, 128], strides = [1, 1]} : vector<16x384xf32> to vector<16x128xf32>
    %30 = arith.truncf %29 : vector<16x128xf32> to vector<16x128xbf16>
    "tpu.trace_start"() <{level = 10 : i32, message = "md,nd->mn"}> : () -> ()
    %cst_26 = arith.constant dense<0.000000e+00> : vector<16x16xf32>
    %31 = tpu.matmul %26, %28, %cst_26 {dimension_numbers = #tpu.dot_dimension_numbers<[1], [1], [0], [0], [0, 0, 1, 0], [], []>} : vector<16x128xbf16>, vector<16x128xbf16>, vector<16x16xf32> -> vector<16x16xf32>
    "tpu.trace_stop"() : () -> ()
    %cst_27 = arith.constant 0.0883883461 : f32
    %32 = vector.broadcast %cst_27 : f32 to vector<16x16xf32>
    %33 = arith.mulf %31, %32 : vector<16x16xf32>
    %34 = vector.broadcast %11 : vector<16x1xi32> to vector<16x16xi32>
    %35 = vector.broadcast %12 : vector<1x16xi32> to vector<16x16xi32>
    %36 = arith.cmpi eq, %34, %35 : vector<16x16xi32>
    %cst_28 = arith.constant -1.000000e+09 : f32
    %37 = vector.broadcast %cst_28 : f32 to vector<16x16xf32>
    %38 = arith.select %36, %33, %37 : vector<16x16xi1>, vector<16x16xf32>
    %cst_29 = arith.constant dense<0xFF800000> : vector<16xf32>
    %39 = vector.multi_reduction <maximumf>, %38, %cst_29 [1] : vector<16x16xf32> to vector<16xf32>
    %40 = vector.shape_cast %39 : vector<16xf32> to vector<16x1xf32>
    %41 = vector.broadcast %40 : vector<16x1xf32> to vector<16x16xf32>
    %42 = arith.subf %38, %41 : vector<16x16xf32>
    %43 = math.exp %42 : vector<16x16xf32>
    %cst_30 = arith.constant dense<0.000000e+00> : vector<16xf32>
    %44 = vector.multi_reduction <add>, %43, %cst_30 [1] : vector<16x16xf32> to vector<16xf32>
    %45 = vector.shape_cast %44 : vector<16xf32> to vector<16x1xf32>
    %46 = tpu.reciprocal %45 {approx = true} : vector<16x1xf32> -> vector<16x1xf32>
    %47 = vector.broadcast %46 : vector<16x1xf32> to vector<16x16xf32>
    %48 = arith.mulf %43, %47 : vector<16x16xf32>
    %49 = arith.truncf %48 : vector<16x16xf32> to vector<16x16xbf16>
    %cst_31 = arith.constant dense<0.000000e+00> : vector<16x128xf32>
    %50 = tpu.matmul %49, %30, %cst_31 {dimension_numbers = #tpu.dot_dimension_numbers<[1], [0], [0], [1], [0, 0, 1, 1], [], []>} : vector<16x16xbf16>, vector<16x128xbf16>, vector<16x128xf32> -> vector<16x128xf32>
    %51 = arith.truncf %50 : vector<16x128xf32> to vector<16x128xbf16>
    %cst_32 = arith.constant dense<0.000000e+00> : vector<16x128xf32>
    %52 = tpu.matmul %51, %15, %cst_32 {dimension_numbers = #tpu.dot_dimension_numbers<[1], [0], [0], [1], [0, 0, 1, 1], [], []>} : vector<16x128xbf16>, vector<128x128xbf16>, vector<16x128xf32> -> vector<16x128xf32>
    %53 = vector.broadcast %16 : vector<1x128xf32> to vector<16x128xf32>
    %54 = arith.addf %52, %53 : vector<16x128xf32>
    %55 = arith.addf %10, %54 : vector<16x128xf32>
    %56 = arith.truncf %55 : vector<16x128xf32> to vector<16x128xbf16>
    %cst_33 = arith.constant dense<0.000000e+00> : vector<16x256xf32>
    %57 = tpu.matmul %56, %17, %cst_33 {dimension_numbers = #tpu.dot_dimension_numbers<[1], [0], [0], [1], [0, 0, 1, 1], [], []>} : vector<16x128xbf16>, vector<128x256xbf16>, vector<16x256xf32> -> vector<16x256xf32>
    %58 = vector.broadcast %18 : vector<1x256xf32> to vector<16x256xf32>
    %59 = arith.addf %57, %58 : vector<16x256xf32>
    %60 = arith.mulf %59, %59 : vector<16x256xf32>
    %61 = arith.mulf %59, %60 : vector<16x256xf32>
    %cst_34 = arith.constant 4.471500e-02 : f32
    %62 = vector.broadcast %cst_34 : f32 to vector<16x256xf32>
    %63 = arith.mulf %62, %61 : vector<16x256xf32>
    %64 = arith.addf %59, %63 : vector<16x256xf32>
    %cst_35 = arith.constant 0.797884583 : f32
    %65 = vector.broadcast %cst_35 : f32 to vector<16x256xf32>
    %66 = arith.mulf %65, %64 : vector<16x256xf32>
    %67 = math.tanh %66 : vector<16x256xf32>
    %cst_36 = arith.constant 1.000000e+00 : f32
    %68 = vector.broadcast %cst_36 : f32 to vector<16x256xf32>
    %69 = arith.addf %68, %67 : vector<16x256xf32>
    %cst_37 = arith.constant 5.000000e-01 : f32
    %70 = vector.broadcast %cst_37 : f32 to vector<16x256xf32>
    %71 = arith.mulf %70, %69 : vector<16x256xf32>
    %72 = arith.mulf %59, %71 : vector<16x256xf32>
    %73 = arith.truncf %72 : vector<16x256xf32> to vector<16x256xbf16>
    %cst_38 = arith.constant dense<0.000000e+00> : vector<16x128xf32>
    %74 = tpu.matmul %73, %19, %cst_38 {dimension_numbers = #tpu.dot_dimension_numbers<[1], [0], [0], [1], [0, 0, 1, 1], [], []>} : vector<16x256xbf16>, vector<256x128xbf16>, vector<16x128xf32> -> vector<16x128xf32>
    %75 = vector.broadcast %20 : vector<1x128xf32> to vector<16x128xf32>
    %76 = arith.addf %74, %75 : vector<16x128xf32>
    %77 = arith.addf %55, %76 : vector<16x128xf32>
    %78 = arith.truncf %77 : vector<16x128xf32> to vector<16x128xbf16>
    %c0_39 = arith.constant 0 : index
    %c0_40 = arith.constant 0 : index
    %79 = vector.load %arg18[%c0_39, %c0_40] : memref<128x128xbf16, #tpu.memory_space<vmem>>, vector<128x128xbf16>
    %cst_41 = arith.constant dense<0.000000e+00> : vector<16x128xf32>
    %80 = tpu.matmul %78, %79, %cst_41 {dimension_numbers = #tpu.dot_dimension_numbers<[1], [0], [0], [1], [0, 0, 1, 1], [], []>} : vector<16x128xbf16>, vector<128x128xbf16>, vector<16x128xf32> -> vector<16x128xf32>
    %c0_42 = arith.constant 0 : index
    %c0_43 = arith.constant 0 : index
    %81 = vector.load %arg19[%c0_42, %c0_43] : memref<1x128xf32, #tpu.memory_space<vmem>>, vector<1x128xf32>
    %82 = vector.broadcast %81 : vector<1x128xf32> to vector<16x128xf32>
    %83 = arith.addf %80, %82 : vector<16x128xf32>
    %84 = arith.mulf %83, %83 : vector<16x128xf32>
    %85 = arith.mulf %83, %84 : vector<16x128xf32>
    %cst_44 = arith.constant 4.471500e-02 : f32
    %86 = vector.broadcast %cst_44 : f32 to vector<16x128xf32>
    %87 = arith.mulf %86, %85 : vector<16x128xf32>
    %88 = arith.addf %83, %87 : vector<16x128xf32>
    %cst_45 = arith.constant 0.797884583 : f32
    %89 = vector.broadcast %cst_45 : f32 to vector<16x128xf32>
    %90 = arith.mulf %89, %88 : vector<16x128xf32>
    %91 = math.tanh %90 : vector<16x128xf32>
    %cst_46 = arith.constant 1.000000e+00 : f32
    %92 = vector.broadcast %cst_46 : f32 to vector<16x128xf32>
    %93 = arith.addf %92, %91 : vector<16x128xf32>
    %cst_47 = arith.constant 5.000000e-01 : f32
    %94 = vector.broadcast %cst_47 : f32 to vector<16x128xf32>
    %95 = arith.mulf %94, %93 : vector<16x128xf32>
    %96 = arith.mulf %83, %95 : vector<16x128xf32>
    %97 = arith.truncf %96 : vector<16x128xf32> to vector<16x128xbf16>
    %c0_48 = arith.constant 0 : index
    %c0_49 = arith.constant 0 : index
    %98 = vector.load %arg20[%c0_48, %c0_49] : memref<128x128xbf16, #tpu.memory_space<vmem>>, vector<128x128xbf16>
    %cst_50 = arith.constant dense<0.000000e+00> : vector<16x128xf32>
    %99 = tpu.matmul %97, %98, %cst_50 {dimension_numbers = #tpu.dot_dimension_numbers<[1], [0], [0], [1], [0, 0, 1, 1], [], []>} : vector<16x128xbf16>, vector<128x128xbf16>, vector<16x128xf32> -> vector<16x128xf32>
    %c0_51 = arith.constant 0 : index
    %c0_52 = arith.constant 0 : index
    %100 = vector.load %arg21[%c0_51, %c0_52] : memref<1x128xf32, #tpu.memory_space<vmem>>, vector<1x128xf32>
    %101 = vector.broadcast %100 : vector<1x128xf32> to vector<16x128xf32>
    %102 = arith.addf %99, %101 : vector<16x128xf32>
    %c0_53 = arith.constant 0 : index
    %c0_54 = arith.constant 0 : index
    %103 = vector.load %arg2[%c0_53, %c0_54] : memref<32x1xi32, #tpu.memory_space<vmem>>, vector<32x1xi32>
    %c0_55 = arith.constant 0 : index
    %c0_56 = arith.constant 0 : index
    %104 = vector.load %arg9[%c0_55, %c0_56] : memref<128x128xf32, #tpu.memory_space<vmem>>, vector<128x128xf32>
    %105 = tpu.iota {dimensions = array<i32: 1>} : vector<32x128xi32>
    %106 = vector.broadcast %103 : vector<32x1xi32> to vector<32x128xi32>
    %107 = arith.cmpi eq, %105, %106 : vector<32x128xi32>
    %cst_57 = arith.constant 1.000000e+00 : f32
    %cst_58 = arith.constant 0.000000e+00 : f32
    %108 = vector.broadcast %cst_57 : f32 to vector<32x128xf32>
    %109 = vector.broadcast %cst_58 : f32 to vector<32x128xf32>
    %110 = arith.select %107, %108, %109 : vector<32x128xi1>, vector<32x128xf32>
    %111 = arith.truncf %110 : vector<32x128xf32> to vector<32x128xbf16>
    %112 = arith.truncf %104 : vector<128x128xf32> to vector<128x128xbf16>
    %cst_59 = arith.constant dense<0.000000e+00> : vector<32x128xf32>
    %113 = tpu.matmul %111, %112, %cst_59 {dimension_numbers = #tpu.dot_dimension_numbers<[1], [0], [0], [1], [0, 0, 1, 1], [], []>} : vector<32x128xbf16>, vector<128x128xbf16>, vector<32x128xf32> -> vector<32x128xf32>
    %114 = vector.extract_strided_slice %102 {offsets = [0, 0], sizes = [8, 128], strides = [1, 1]} : vector<16x128xf32> to vector<8x128xf32>
    %c0_60 = arith.constant 0 : index
    %c0_61 = arith.constant 0 : index
    %115 = vector.load %arg34[%c0_60, %c0_61] : memref<48x128xf32, #tpu.memory_space<vmem>>, vector<8x128xf32>
    tpu.vector_store %arg34[%c0_60, %c0_61], %114 {strides = array<i32>} : memref<48x128xf32, #tpu.memory_space<vmem>>, vector<8x128xf32>,
    %116 = vector.extract_strided_slice %113 {offsets = [0, 0], sizes = [16, 128], strides = [1, 1]} : vector<32x128xf32> to vector<16x128xf32>
    %c8 = arith.constant 8 : index
    %c0_62 = arith.constant 0 : index
    %117 = vector.load %arg34[%c8, %c0_62] : memref<48x128xf32, #tpu.memory_space<vmem>>, vector<16x128xf32>
    tpu.vector_store %arg34[%c8, %c0_62], %116 {strides = array<i32>} : memref<48x128xf32, #tpu.memory_space<vmem>>, vector<16x128xf32>,
    %118 = vector.extract_strided_slice %102 {offsets = [8, 0], sizes = [8, 128], strides = [1, 1]} : vector<16x128xf32> to vector<8x128xf32>
    %c24 = arith.constant 24 : index
    %c0_63 = arith.constant 0 : index
    %119 = vector.load %arg34[%c24, %c0_63] : memref<48x128xf32, #tpu.memory_space<vmem>>, vector<8x128xf32>
    tpu.vector_store %arg34[%c24, %c0_63], %118 {strides = array<i32>} : memref<48x128xf32, #tpu.memory_space<vmem>>, vector<8x128xf32>,
    %120 = vector.extract_strided_slice %113 {offsets = [16, 0], sizes = [16, 128], strides = [1, 1]} : vector<32x128xf32> to vector<16x128xf32>
    %c32 = arith.constant 32 : index
    %c0_64 = arith.constant 0 : index
    %121 = vector.load %arg34[%c32, %c0_64] : memref<48x128xf32, #tpu.memory_space<vmem>>, vector<16x128xf32>
    tpu.vector_store %arg34[%c32, %c0_64], %120 {strides = array<i32>} : memref<48x128xf32, #tpu.memory_space<vmem>>, vector<16x128xf32>,
    %c0_65 = arith.constant 0 : index
    %c0_66 = arith.constant 0 : index
    %122 = vector.load %arg34[%c0_65, %c0_66] : memref<48x128xf32, #tpu.memory_space<vmem>>, vector<48x128xf32>
    %c0_67 = arith.constant 0 : index
    %c0_68 = arith.constant 0 : index
    %123 = vector.load %arg6[%c0_67, %c0_68] : memref<48x1xi32, #tpu.memory_space<vmem>>, vector<48x1xi32>
    %c0_69 = arith.constant 0 : index
    %c0_70 = arith.constant 0 : index
    %124 = vector.load %arg7[%c0_69, %c0_70] : memref<1x48xi32, #tpu.memory_space<vmem>>, vector<1x48xi32>
    %c0_71 = arith.constant 0 : index
    %c0_72 = arith.constant 0 : index
    %125 = vector.load %arg22[%c0_71, %c0_72] : memref<128x384xbf16, #tpu.memory_space<vmem>>, vector<128x384xbf16>
    %c0_73 = arith.constant 0 : index
    %c0_74 = arith.constant 0 : index
    %126 = vector.load %arg23[%c0_73, %c0_74] : memref<1x384xf32, #tpu.memory_space<vmem>>, vector<1x384xf32>
    %c0_75 = arith.constant 0 : index
    %c0_76 = arith.constant 0 : index
    %127 = vector.load %arg24[%c0_75, %c0_76] : memref<128x128xbf16, #tpu.memory_space<vmem>>, vector<128x128xbf16>
    %c0_77 = arith.constant 0 : index
    %c0_78 = arith.constant 0 : index
    %128 = vector.load %arg25[%c0_77, %c0_78] : memref<1x128xf32, #tpu.memory_space<vmem>>, vector<1x128xf32>
    %c0_79 = arith.constant 0 : index
    %c0_80 = arith.constant 0 : index
    %129 = vector.load %arg26[%c0_79, %c0_80] : memref<128x256xbf16, #tpu.memory_space<vmem>>, vector<128x256xbf16>
    %c0_81 = arith.constant 0 : index
    %c0_82 = arith.constant 0 : index
    %130 = vector.load %arg27[%c0_81, %c0_82] : memref<1x256xf32, #tpu.memory_space<vmem>>, vector<1x256xf32>
    %c0_83 = arith.constant 0 : index
    %c0_84 = arith.constant 0 : index
    %131 = vector.load %arg28[%c0_83, %c0_84] : memref<256x128xbf16, #tpu.memory_space<vmem>>, vector<256x128xbf16>
    %c0_85 = arith.constant 0 : index
    %c0_86 = arith.constant 0 : index
    %132 = vector.load %arg29[%c0_85, %c0_86] : memref<1x128xf32, #tpu.memory_space<vmem>>, vector<1x128xf32>
    %133 = arith.truncf %122 : vector<48x128xf32> to vector<48x128xbf16>
    %cst_87 = arith.constant dense<0.000000e+00> : vector<48x384xf32>
    %134 = tpu.matmul %133, %125, %cst_87 {dimension_numbers = #tpu.dot_dimension_numbers<[1], [0], [0], [1], [0, 0, 1, 1], [], []>} : vector<48x128xbf16>, vector<128x384xbf16>, vector<48x384xf32> -> vector<48x384xf32>
    %135 = vector.broadcast %126 : vector<1x384xf32> to vector<48x384xf32>
    %136 = arith.addf %134, %135 : vector<48x384xf32>
    %137 = vector.extract_strided_slice %136 {offsets = [0, 0], sizes = [48, 128], strides = [1, 1]} : vector<48x384xf32> to vector<48x128xf32>
    %138 = arith.truncf %137 : vector<48x128xf32> to vector<48x128xbf16>
    %139 = vector.extract_strided_slice %136 {offsets = [0, 128], sizes = [48, 128], strides = [1, 1]} : vector<48x384xf32> to vector<48x128xf32>
    %140 = arith.truncf %139 : vector<48x128xf32> to vector<48x128xbf16>
    %141 = vector.extract_strided_slice %136 {offsets = [0, 256], sizes = [48, 128], strides = [1, 1]} : vector<48x384xf32> to vector<48x128xf32>
    %142 = arith.truncf %141 : vector<48x128xf32> to vector<48x128xbf16>
    "tpu.trace_start"() <{level = 10 : i32, message = "md,nd->mn"}> : () -> ()
    %cst_88 = arith.constant dense<0.000000e+00> : vector<48x48xf32>
    %143 = tpu.matmul %138, %140, %cst_88 {dimension_numbers = #tpu.dot_dimension_numbers<[1], [1], [0], [0], [0, 0, 1, 0], [], []>} : vector<48x128xbf16>, vector<48x128xbf16>, vector<48x48xf32> -> vector<48x48xf32>
    "tpu.trace_stop"() : () -> ()
    %cst_89 = arith.constant 0.0883883461 : f32
    %144 = vector.broadcast %cst_89 : f32 to vector<48x48xf32>
    %145 = arith.mulf %143, %144 : vector<48x48xf32>
    %146 = vector.broadcast %123 : vector<48x1xi32> to vector<48x48xi32>
    %147 = vector.broadcast %124 : vector<1x48xi32> to vector<48x48xi32>
    %148 = arith.cmpi eq, %146, %147 : vector<48x48xi32>
    %149 = tpu.iota {dimensions = array<i32: 0>} : vector<48x48xi32>
    %150 = tpu.iota {dimensions = array<i32: 1>} : vector<48x48xi32>
    %151 = arith.cmpi sge, %149, %150 : vector<48x48xi32>
    %152 = arith.andi %148, %151 : vector<48x48xi1>
    %cst_90 = arith.constant -1.000000e+09 : f32
    %153 = vector.broadcast %cst_90 : f32 to vector<48x48xf32>
    %154 = arith.select %152, %145, %153 : vector<48x48xi1>, vector<48x48xf32>
    %cst_91 = arith.constant dense<0xFF800000> : vector<48xf32>
    %155 = vector.multi_reduction <maximumf>, %154, %cst_91 [1] : vector<48x48xf32> to vector<48xf32>
    %156 = vector.shape_cast %155 : vector<48xf32> to vector<48x1xf32>
    %157 = vector.broadcast %156 : vector<48x1xf32> to vector<48x48xf32>
    %158 = arith.subf %154, %157 : vector<48x48xf32>
    %159 = math.exp %158 : vector<48x48xf32>
    %cst_92 = arith.constant dense<0.000000e+00> : vector<48xf32>
    %160 = vector.multi_reduction <add>, %159, %cst_92 [1] : vector<48x48xf32> to vector<48xf32>
    %161 = vector.shape_cast %160 : vector<48xf32> to vector<48x1xf32>
    %162 = tpu.reciprocal %161 {approx = true} : vector<48x1xf32> -> vector<48x1xf32>
    %163 = vector.broadcast %162 : vector<48x1xf32> to vector<48x48xf32>
    %164 = arith.mulf %159, %163 : vector<48x48xf32>
    %165 = arith.truncf %164 : vector<48x48xf32> to vector<48x48xbf16>
    %cst_93 = arith.constant dense<0.000000e+00> : vector<48x128xf32>
    %166 = tpu.matmul %165, %142, %cst_93 {dimension_numbers = #tpu.dot_dimension_numbers<[1], [0], [0], [1], [0, 0, 1, 1], [], []>} : vector<48x48xbf16>, vector<48x128xbf16>, vector<48x128xf32> -> vector<48x128xf32>
    %167 = arith.truncf %166 : vector<48x128xf32> to vector<48x128xbf16>
    %cst_94 = arith.constant dense<0.000000e+00> : vector<48x128xf32>
    %168 = tpu.matmul %167, %127, %cst_94 {dimension_numbers = #tpu.dot_dimension_numbers<[1], [0], [0], [1], [0, 0, 1, 1], [], []>} : vector<48x128xbf16>, vector<128x128xbf16>, vector<48x128xf32> -> vector<48x128xf32>
    %169 = vector.broadcast %128 : vector<1x128xf32> to vector<48x128xf32>
    %170 = arith.addf %168, %169 : vector<48x128xf32>
    %171 = arith.addf %122, %170 : vector<48x128xf32>
    %172 = arith.truncf %171 : vector<48x128xf32> to vector<48x128xbf16>
    %cst_95 = arith.constant dense<0.000000e+00> : vector<48x256xf32>
    %173 = tpu.matmul %172, %129, %cst_95 {dimension_numbers = #tpu.dot_dimension_numbers<[1], [0], [0], [1], [0, 0, 1, 1], [], []>} : vector<48x128xbf16>, vector<128x256xbf16>, vector<48x256xf32> -> vector<48x256xf32>
    %174 = vector.broadcast %130 : vector<1x256xf32> to vector<48x256xf32>
    %175 = arith.addf %173, %174 : vector<48x256xf32>
    %176 = arith.mulf %175, %175 : vector<48x256xf32>
    %177 = arith.mulf %175, %176 : vector<48x256xf32>
    %cst_96 = arith.constant 4.471500e-02 : f32
    %178 = vector.broadcast %cst_96 : f32 to vector<48x256xf32>
    %179 = arith.mulf %178, %177 : vector<48x256xf32>
    %180 = arith.addf %175, %179 : vector<48x256xf32>
    %cst_97 = arith.constant 0.797884583 : f32
    %181 = vector.broadcast %cst_97 : f32 to vector<48x256xf32>
    %182 = arith.mulf %181, %180 : vector<48x256xf32>
    %183 = math.tanh %182 : vector<48x256xf32>
    %cst_98 = arith.constant 1.000000e+00 : f32
    %184 = vector.broadcast %cst_98 : f32 to vector<48x256xf32>
    %185 = arith.addf %184, %183 : vector<48x256xf32>
    %cst_99 = arith.constant 5.000000e-01 : f32
    %186 = vector.broadcast %cst_99 : f32 to vector<48x256xf32>
    %187 = arith.mulf %186, %185 : vector<48x256xf32>
    %188 = arith.mulf %175, %187 : vector<48x256xf32>
    %189 = arith.truncf %188 : vector<48x256xf32> to vector<48x256xbf16>
    %cst_100 = arith.constant dense<0.000000e+00> : vector<48x128xf32>
    %190 = tpu.matmul %189, %131, %cst_100 {dimension_numbers = #tpu.dot_dimension_numbers<[1], [0], [0], [1], [0, 0, 1, 1], [], []>} : vector<48x256xbf16>, vector<256x128xbf16>, vector<48x128xf32> -> vector<48x128xf32>
    %191 = vector.broadcast %132 : vector<1x128xf32> to vector<48x128xf32>
    %192 = arith.addf %190, %191 : vector<48x128xf32>
    %193 = arith.addf %171, %192 : vector<48x128xf32>
    %194 = arith.truncf %193 : vector<48x128xf32> to vector<48x128xbf16>
    %c0_101 = arith.constant 0 : index
    %c0_102 = arith.constant 0 : index
    %195 = vector.load %arg30[%c0_101, %c0_102] : memref<128x128xbf16, #tpu.memory_space<vmem>>, vector<128x128xbf16>
    %cst_103 = arith.constant dense<0.000000e+00> : vector<48x128xf32>
    %196 = tpu.matmul %194, %195, %cst_103 {dimension_numbers = #tpu.dot_dimension_numbers<[1], [0], [0], [1], [0, 0, 1, 1], [], []>} : vector<48x128xbf16>, vector<128x128xbf16>, vector<48x128xf32> -> vector<48x128xf32>
    %c0_104 = arith.constant 0 : index
    %c0_105 = arith.constant 0 : index
    %197 = vector.load %arg31[%c0_104, %c0_105] : memref<1x128xf32, #tpu.memory_space<vmem>>, vector<1x128xf32>
    %198 = vector.broadcast %197 : vector<1x128xf32> to vector<48x128xf32>
    %199 = arith.addf %196, %198 : vector<48x128xf32>
    %200 = vector.shape_cast %199 : vector<48x128xf32> to vector<2x24x128xf32>
    %c0_106 = arith.constant 0 : index
    %c0_107 = arith.constant 0 : index
    %c0_108 = arith.constant 0 : index
    %201 = vector.load %arg32[%c0_106, %c0_107, %c0_108] : memref<2x24x128xf32, #tpu.memory_space<vmem>>, vector<2x24x128xf32>
    tpu.vector_store %arg32[%c0_106, %c0_107, %c0_108], %200 {strides = array<i32>} : memref<2x24x128xf32, #tpu.memory_space<vmem>>, vector<2x24x128xf32>,
    %c0_109 = arith.constant 0 : index
    %c0_110 = arith.constant 0 : index
    %202 = vector.load %arg3[%c0_109, %c0_110] : memref<48x1xi32, #tpu.memory_space<vmem>>, vector<48x1xi32>
    %cst_111 = arith.constant dense<0xFF800000> : vector<48xf32>
    %203 = vector.multi_reduction <maximumf>, %199, %cst_111 [1] : vector<48x128xf32> to vector<48xf32>
    %204 = vector.shape_cast %203 : vector<48xf32> to vector<48x1xf32>
    %205 = vector.broadcast %204 : vector<48x1xf32> to vector<48x128xf32>
    %206 = arith.subf %199, %205 : vector<48x128xf32>
    %207 = math.exp %206 : vector<48x128xf32>
    %cst_112 = arith.constant dense<0.000000e+00> : vector<48xf32>
    %208 = vector.multi_reduction <add>, %207, %cst_112 [1] : vector<48x128xf32> to vector<48xf32>
    %209 = vector.shape_cast %208 : vector<48xf32> to vector<48x1xf32>
    %210 = math.log %209 : vector<48x1xf32>
    %211 = arith.addf %204, %210 : vector<48x1xf32>
    %212 = tpu.iota {dimensions = array<i32: 1>} : vector<48x128xi32>
    %213 = vector.broadcast %202 : vector<48x1xi32> to vector<48x128xi32>
    %214 = arith.cmpi eq, %212, %213 : vector<48x128xi32>
    %cst_113 = arith.constant 0.000000e+00 : f32
    %215 = vector.broadcast %cst_113 : f32 to vector<48x128xf32>
    %216 = arith.select %214, %199, %215 : vector<48x128xi1>, vector<48x128xf32>
    %cst_114 = arith.constant dense<0.000000e+00> : vector<48xf32>
    %217 = vector.multi_reduction <add>, %216, %cst_114 [1] : vector<48x128xf32> to vector<48xf32>
    %218 = vector.shape_cast %217 : vector<48xf32> to vector<48x1xf32>
    %c-100_i32 = arith.constant -100 : i32
    %219 = vector.broadcast %c-100_i32 : i32 to vector<48x1xi32>
    %220 = arith.cmpi ne, %202, %219 : vector<48x1xi32>
    %221 = arith.extui %220 : vector<48x1xi1> to vector<48x1xi32>
    %222 = arith.sitofp %221 : vector<48x1xi32> to vector<48x1xf32>
    %223 = arith.subf %211, %218 : vector<48x1xf32>
    %224 = arith.mulf %223, %222 : vector<48x1xf32>
    %225 = vector.shape_cast %224 : vector<48x1xf32> to vector<1x48x1xf32>
    %cst_115 = arith.constant dense<0.000000e+00> : vector<1xf32>
    %226 = vector.multi_reduction <add>, %225, %cst_115 [1, 2] : vector<1x48x1xf32> to vector<1xf32>
    %227 = vector.shape_cast %226 : vector<1xf32> to vector<1x1x1xf32>
    %228 = vector.extract %227[0, 0, 0] : f32 from vector<1x1x1xf32>
    %229 = vector.shape_cast %222 : vector<48x1xf32> to vector<1x48x1xf32>
    %cst_116 = arith.constant dense<0.000000e+00> : vector<1xf32>
    %230 = vector.multi_reduction <add>, %229, %cst_116 [1, 2] : vector<1x48x1xf32> to vector<1xf32>
    %231 = vector.shape_cast %230 : vector<1xf32> to vector<1x1x1xf32>
    %232 = vector.extract %231[0, 0, 0] : f32 from vector<1x1x1xf32>
    %cst_117 = arith.constant 1.000000e+00 : f32
    %233 = arith.maximumf %232, %cst_117 : f32
    %234 = arith.divf %228, %233 : f32
    %235 = vector.broadcast %234 : f32 to vector<1x1xf32>
    %c0_118 = arith.constant 0 : index
    %c0_119 = arith.constant 0 : index
    %236 = vector.load %arg33[%c0_118, %c0_119] : memref<1x1xf32, #tpu.memory_space<vmem>>, vector<1x1xf32>
    tpu.vector_store %arg33[%c0_118, %c0_119], %235 {strides = array<i32>} : memref<1x1xf32, #tpu.memory_space<vmem>>, vector<1x1xf32>,
    return
  }
  func.func @transform_0(%arg0: i32) -> (i32, i32) {
    %c0_i32 = arith.constant 0 : i32
    %c0_i32_0 = arith.constant 0 : i32
    %c0_i32_1 = arith.constant 0 : i32
    return %c0_i32, %c0_i32_0 : i32, i32
  }
  func.func @transform_1(%arg0: i32) -> (i32, i32) {
    %c0_i32 = arith.constant 0 : i32
    %c0_i32_0 = arith.constant 0 : i32
    %c0_i32_1 = arith.constant 0 : i32
    return %c0_i32, %c0_i32_0 : i32, i32
  }
  func.func @transform_2(%arg0: i32) -> (i32, i32) {
    %c0_i32 = arith.constant 0 : i32
    %c0_i32_0 = arith.constant 0 : i32
    %c0_i32_1 = arith.constant 0 : i32
    return %c0_i32, %c0_i32_0 : i32, i32
  }
  func.func @transform_3(%arg0: i32) -> (i32, i32) {
    %c0_i32 = arith.constant 0 : i32
    %c0_i32_0 = arith.constant 0 : i32
    %c0_i32_1 = arith.constant 0 : i32
    return %c0_i32, %c0_i32_0 : i32, i32
  }
  func.func @transform_4(%arg0: i32) -> (i32, i32) {
    %c0_i32 = arith.constant 0 : i32
    %c0_i32_0 = arith.constant 0 : i32
    %c0_i32_1 = arith.constant 0 : i32
    return %c0_i32, %c0_i32_0 : i32, i32
  }
  func.func @transform_5(%arg0: i32) -> (i32, i32) {
    %c0_i32 = arith.constant 0 : i32
    %c0_i32_0 = arith.constant 0 : i32
    %c0_i32_1 = arith.constant 0 : i32
    return %c0_i32, %c0_i32_0 : i32, i32
  }
  func.func @transform_6(%arg0: i32) -> (i32, i32) {
    %c0_i32 = arith.constant 0 : i32
    %c0_i32_0 = arith.constant 0 : i32
    %c0_i32_1 = arith.constant 0 : i32
    return %c0_i32, %c0_i32_0 : i32, i32
  }
  func.func @transform_7(%arg0: i32) -> (i32, i32) {
    %c0_i32 = arith.constant 0 : i32
    %c0_i32_0 = arith.constant 0 : i32
    %c0_i32_1 = arith.constant 0 : i32
    return %c0_i32, %c0_i32_0 : i32, i32
  }
  func.func @transform_8(%arg0: i32) -> (i32, i32) {
    %c0_i32 = arith.constant 0 : i32
    %c0_i32_0 = arith.constant 0 : i32
    %c0_i32_1 = arith.constant 0 : i32
    return %c0_i32, %c0_i32_0 : i32, i32
  }
  func.func @transform_9(%arg0: i32) -> (i32, i32) {
    %c0_i32 = arith.constant 0 : i32
    %c0_i32_0 = arith.constant 0 : i32
    %c0_i32_1 = arith.constant 0 : i32
    return %c0_i32, %c0_i32_0 : i32, i32
  }
  func.func @transform_10(%arg0: i32) -> (i32, i32) {
    %c0_i32 = arith.constant 0 : i32
    %c0_i32_0 = arith.constant 0 : i32
    %c0_i32_1 = arith.constant 0 : i32
    return %c0_i32, %c0_i32_0 : i32, i32
  }
  func.func @transform_11(%arg0: i32) -> (i32, i32) {
    %c0_i32 = arith.constant 0 : i32
    %c0_i32_0 = arith.constant 0 : i32
    %c0_i32_1 = arith.constant 0 : i32
    return %c0_i32, %c0_i32_0 : i32, i32
  }
  func.func @transform_12(%arg0: i32) -> (i32, i32) {
    %c0_i32 = arith.constant 0 : i32
    %c0_i32_0 = arith.constant 0 : i32
    %c0_i32_1 = arith.constant 0 : i32
    return %c0_i32, %c0_i32_0 : i32, i32
  }
  func.func @transform_13(%arg0: i32) -> (i32, i32) {
    %c0_i32 = arith.constant 0 : i32
    %c0_i32_0 = arith.constant 0 : i32
    %c0_i32_1 = arith.constant 0 : i32
    return %c0_i32, %c0_i32_0 : i32, i32
  }
  func.func @transform_14(%arg0: i32) -> (i32, i32) {
    %c0_i32 = arith.constant 0 : i32
    %c0_i32_0 = arith.constant 0 : i32
    %c0_i32_1 = arith.constant 0 : i32
    return %c0_i32, %c0_i32_0 : i32, i32
  }
  func.func @transform_15(%arg0: i32) -> (i32, i32) {
    %c0_i32 = arith.constant 0 : i32
    %c0_i32_0 = arith.constant 0 : i32
    %c0_i32_1 = arith.constant 0 : i32
    return %c0_i32, %c0_i32_0 : i32, i32
  }
  func.func @transform_16(%arg0: i32) -> (i32, i32) {
    %c0_i32 = arith.constant 0 : i32
    %c0_i32_0 = arith.constant 0 : i32
    %c0_i32_1 = arith.constant 0 : i32
    return %c0_i32, %c0_i32_0 : i32, i32
  }
  func.func @transform_17(%arg0: i32) -> (i32, i32) {
    %c0_i32 = arith.constant 0 : i32
    %c0_i32_0 = arith.constant 0 : i32
    %c0_i32_1 = arith.constant 0 : i32
    return %c0_i32, %c0_i32_0 : i32, i32
  }
  func.func @transform_18(%arg0: i32) -> (i32, i32) {
    %c0_i32 = arith.constant 0 : i32
    %c0_i32_0 = arith.constant 0 : i32
    %c0_i32_1 = arith.constant 0 : i32
    return %c0_i32, %c0_i32_0 : i32, i32
  }
  func.func @transform_19(%arg0: i32) -> (i32, i32) {
    %c0_i32 = arith.constant 0 : i32
    %c0_i32_0 = arith.constant 0 : i32
    %c0_i32_1 = arith.constant 0 : i32
    return %c0_i32, %c0_i32_0 : i32, i32
  }
  func.func @transform_20(%arg0: i32) -> (i32, i32) {
    %c0_i32 = arith.constant 0 : i32
    %c0_i32_0 = arith.constant 0 : i32
    %c0_i32_1 = arith.constant 0 : i32
    return %c0_i32, %c0_i32_0 : i32, i32
  }
  func.func @transform_21(%arg0: i32) -> (i32, i32) {
    %c0_i32 = arith.constant 0 : i32
    %c0_i32_0 = arith.constant 0 : i32
    %c0_i32_1 = arith.constant 0 : i32
    return %c0_i32, %c0_i32_0 : i32, i32
  }
  func.func @transform_22(%arg0: i32) -> (i32, i32) {
    %c0_i32 = arith.constant 0 : i32
    %c0_i32_0 = arith.constant 0 : i32
    %c0_i32_1 = arith.constant 0 : i32
    return %c0_i32, %c0_i32_0 : i32, i32
  }
  func.func @transform_23(%arg0: i32) -> (i32, i32) {
    %c0_i32 = arith.constant 0 : i32
    %c0_i32_0 = arith.constant 0 : i32
    %c0_i32_1 = arith.constant 0 : i32
    return %c0_i32, %c0_i32_0 : i32, i32
  }
  func.func @transform_24(%arg0: i32) -> (i32, i32) {
    %c0_i32 = arith.constant 0 : i32
    %c0_i32_0 = arith.constant 0 : i32
    %c0_i32_1 = arith.constant 0 : i32
    return %c0_i32, %c0_i32_0 : i32, i32
  }
  func.func @transform_25(%arg0: i32) -> (i32, i32) {
    %c0_i32 = arith.constant 0 : i32
    %c0_i32_0 = arith.constant 0 : i32
    %c0_i32_1 = arith.constant 0 : i32
    return %c0_i32, %c0_i32_0 : i32, i32
  }
  func.func @transform_26(%arg0: i32) -> (i32, i32) {
    %c0_i32 = arith.constant 0 : i32
    %c0_i32_0 = arith.constant 0 : i32
    %c0_i32_1 = arith.constant 0 : i32
    return %c0_i32, %c0_i32_0 : i32, i32
  }
  func.func @transform_27(%arg0: i32) -> (i32, i32) {
    %c0_i32 = arith.constant 0 : i32
    %c0_i32_0 = arith.constant 0 : i32
    %c0_i32_1 = arith.constant 0 : i32
    return %c0_i32, %c0_i32_0 : i32, i32
  }
  func.func @transform_28(%arg0: i32) -> (i32, i32) {
    %c0_i32 = arith.constant 0 : i32
    %c0_i32_0 = arith.constant 0 : i32
    %c0_i32_1 = arith.constant 0 : i32
    return %c0_i32, %c0_i32_0 : i32, i32
  }
  func.func @transform_29(%arg0: i32) -> (i32, i32) {
    %c0_i32 = arith.constant 0 : i32
    %c0_i32_0 = arith.constant 0 : i32
    %c0_i32_1 = arith.constant 0 : i32
    return %c0_i32, %c0_i32_0 : i32, i32
  }
  func.func @transform_30(%arg0: i32) -> (i32, i32) {
    %c0_i32 = arith.constant 0 : i32
    %c0_i32_0 = arith.constant 0 : i32
    %c0_i32_1 = arith.constant 0 : i32
    return %c0_i32, %c0_i32_0 : i32, i32
  }
  func.func @transform_31(%arg0: i32) -> (i32, i32, i32) {
    %c0_i32 = arith.constant 0 : i32
    %c0_i32_0 = arith.constant 0 : i32
    %c0_i32_1 = arith.constant 0 : i32
    %c0_i32_2 = arith.constant 0 : i32
    return %c0_i32, %c0_i32_0, %c0_i32_1 : i32, i32, i32
  }
  func.func @transform_32(%arg0: i32) -> (i32, i32) {
    %c0_i32 = arith.constant 0 : i32
    %c0_i32_0 = arith.constant 0 : i32
    %c0_i32_1 = arith.constant 0 : i32
    return %c0_i32, %c0_i32_0 : i32, i32
  }
}

</mosaic_0001>

<llo_original>
// kernel: inv_encoder_decoder_forward.1
$region0: #{inv_encoder_decoder_forward.1}
  #allocation0 [shape = 'u32[]', space=smem, size = 0x4, offset = 0x4, fixed_abs, tag = 'smem constant byte address 0x4 - core index']
  #allocation1 [shape = 'u32[144,128]{1,0:T(1,128)}', space=vmem, size = 0x12000, scoped, tag = 'internal scratch']
  #allocation2 [shape = 'f32[48,128]{1,0:T(8,128)}', space=vmem, size = 0x6000, scoped, tag = 'scratch operand']
  %s0 = inlined_call_operand.smem [shape: u32[33], index: -1, kind: input, shape index: {}]
  %s1 = sld [smem:[%s0]]
  %s2 = scalar_lea.smem %s0, 1
  %s3 = sld [smem:[%s2]]
  %s4 = scalar_lea.smem %s0, 2
  %s5 = sld [smem:[%s4]]
  %s6 = scalar_lea.smem %s0, 3
  %s7 = sld [smem:[%s6]]
  %s8 = scalar_lea.smem %s0, 4
  %s9 = sld [smem:[%s8]]
  %s10 = scalar_lea.smem %s0, 5
  %s11 = sld [smem:[%s10]]
  %s12 = scalar_lea.smem %s0, 6
  %s13 = sld [smem:[%s12]]
  %s14 = scalar_lea.smem %s0, 7
  %s15 = sld [smem:[%s14]]
  %s16 = scalar_lea.smem %s0, 8
  %s17 = sld [smem:[%s16]]
  %s18 = scalar_lea.smem %s0, 9
  %s19 = sld [smem:[%s18]]
  %s20 = scalar_lea.smem %s0, 10
  %s21 = sld [smem:[%s20]]
  %s22 = scalar_lea.smem %s0, 11
  %s23 = sld [smem:[%s22]]
  %s24 = scalar_lea.smem %s0, 12
  %s25 = sld [smem:[%s24]]
  %s26 = scalar_lea.smem %s0, 13
  %s27 = sld [smem:[%s26]]
  %s28 = scalar_lea.smem %s0, 14
  %s29 = sld [smem:[%s28]]
  %s30 = scalar_lea.smem %s0, 15
  %s31 = sld [smem:[%s30]]
  %s32 = scalar_lea.smem %s0, 16
  %s33 = sld [smem:[%s32]]
  %s34 = scalar_lea.smem %s0, 17
  %s35 = sld [smem:[%s34]]
  %s36 = scalar_lea.smem %s0, 18
  %s37 = sld [smem:[%s36]]
  %s38 = scalar_lea.smem %s0, 19
  %s39 = sld [smem:[%s38]]
  %s40 = scalar_lea.smem %s0, 20
  %s41 = sld [smem:[%s40]]
  %s42 = scalar_lea.smem %s0, 21
  %s43 = sld [smem:[%s42]]
  %s44 = scalar_lea.smem %s0, 22
  %s45 = sld [smem:[%s44]]
  %s46 = scalar_lea.smem %s0, 23
  %s47 = sld [smem:[%s46]]
  %s48 = scalar_lea.smem %s0, 24
  %s49 = sld [smem:[%s48]]
  %s50 = scalar_lea.smem %s0, 25
  %s51 = sld [smem:[%s50]]
  %s52 = scalar_lea.smem %s0, 26
  %s53 = sld [smem:[%s52]]
  %s54 = scalar_lea.smem %s0, 27
  %s55 = sld [smem:[%s54]]
  %s56 = scalar_lea.smem %s0, 28
  %s57 = sld [smem:[%s56]]
  %s58 = scalar_lea.smem %s0, 29
  %s59 = sld [smem:[%s58]]
  %s60 = scalar_lea.smem %s0, 30
  %s61 = sld [smem:[%s60]]
  %s62 = scalar_lea.smem %s0, 31
  %s63 = sld [smem:[%s62]]
  %s64 = scalar_lea.smem %s0, 32
  %s65 = sld [smem:[%s64]]
  %66 = xla_tuple %s63, %s65
  %s67 = sld [smem:[#allocation0]]
  $region142: #{inv_encoder_decoder_forward.1} parent=0
    _
  %s69 = ssub.s32 1, %s67
  %s70 = scalar_select 0, %s69, %s67
  $region1: #{inv_encoder_decoder_forward.1} parent=0
    #allocation3 [shape = 'u8[24576]{0}', space=vmem, size = 0x6000, scoped, tag = 'output window, operand 0, single buffered']
    #allocation4 [shape = 's32[1]{0}', space=sflag, size = 0x4, scoped, tag = 'scoped memory for inv_encoder_decoder_forward.1']
    #allocation5 [shape = 'u8[512]{0}', space=vmem, size = 0x400, scoped, tag = 'output window, operand 1, single buffered']
    #allocation6 [shape = 's32[1]{0}', space=sflag, size = 0x4, scoped, tag = 'scoped memory for inv_encoder_decoder_forward.1']
    %71 = vsyncpa [#allocation4], 0
    %72 = vsyncpa [#allocation6], 0
    // Predicated region
    $region2: #{inv_encoder_decoder_forward.1} parent=1 // pred_check
      _
    $region3: #{inv_encoder_decoder_forward.1} parent=1 // pred_check_branch
      %74 = sbr.rel (0) target = $region5
    $region4: #{inv_encoder_decoder_forward.1} parent=1 // pred_region
      _
    $region5: #{inv_encoder_decoder_forward.1} parent=1 // pred_fallthru
      _
    // Predicated region
    $region6: #{inv_encoder_decoder_forward.1} parent=1 // pred_check
      _
    $region7: #{inv_encoder_decoder_forward.1} parent=1 // pred_check_branch
      %76 = sbr.rel (0) target = $region9
    $region8: #{inv_encoder_decoder_forward.1} parent=1 // pred_region
      _
    $region9: #{inv_encoder_decoder_forward.1} parent=1 // pred_fallthru
      _
    // Predicated region
    $region10: #{inv_encoder_decoder_forward.1} parent=1 // pred_check
      _
    $region11: #{inv_encoder_decoder_forward.1} parent=1 // pred_check_branch
      %78 = sbr.rel (0) target = $region13
    $region12: #{inv_encoder_decoder_forward.1} parent=1 // pred_region
      _
    $region13: #{inv_encoder_decoder_forward.1} parent=1 // pred_fallthru
      _
    // Predicated region
    $region14: #{inv_encoder_decoder_forward.1} parent=1 // pred_check
      _
    $region15: #{inv_encoder_decoder_forward.1} parent=1 // pred_check_branch
      %80 = sbr.rel (0) target = $region17
    $region16: #{inv_encoder_decoder_forward.1} parent=1 // pred_region
      _
    $region17: #{inv_encoder_decoder_forward.1} parent=1 // pred_fallthru
      _
    // Predicated region
    $region18: #{inv_encoder_decoder_forward.1} parent=1 // pred_check
      _
    $region19: #{inv_encoder_decoder_forward.1} parent=1 // pred_check_branch
      %82 = sbr.rel (0) target = $region21
    $region20: #{inv_encoder_decoder_forward.1} parent=1 // pred_region
      _
    $region21: #{inv_encoder_decoder_forward.1} parent=1 // pred_fallthru
      _
    // Predicated region
    $region22: #{inv_encoder_decoder_forward.1} parent=1 // pred_check
      _
    $region23: #{inv_encoder_decoder_forward.1} parent=1 // pred_check_branch
      %84 = sbr.rel (0) target = $region25
    $region24: #{inv_encoder_decoder_forward.1} parent=1 // pred_region
      _
    $region25: #{inv_encoder_decoder_forward.1} parent=1 // pred_fallthru
      _
    // Predicated region
    $region26: #{inv_encoder_decoder_forward.1} parent=1 // pred_check
      _
    $region27: #{inv_encoder_decoder_forward.1} parent=1 // pred_check_branch
      %86 = sbr.rel (0) target = $region29
    $region28: #{inv_encoder_decoder_forward.1} parent=1 // pred_region
      _
    $region29: #{inv_encoder_decoder_forward.1} parent=1 // pred_fallthru
      _
    // Predicated region
    $region30: #{inv_encoder_decoder_forward.1} parent=1 // pred_check
      _
    $region31: #{inv_encoder_decoder_forward.1} parent=1 // pred_check_branch
      %88 = sbr.rel (0) target = $region33
    $region32: #{inv_encoder_decoder_forward.1} parent=1 // pred_region
      _
    $region33: #{inv_encoder_decoder_forward.1} parent=1 // pred_fallthru
      _
    // Predicated region
    $region34: #{inv_encoder_decoder_forward.1} parent=1 // pred_check
      _
    $region35: #{inv_encoder_decoder_forward.1} parent=1 // pred_check_branch
      %90 = sbr.rel (0) target = $region37
    $region36: #{inv_encoder_decoder_forward.1} parent=1 // pred_region
      _
    $region37: #{inv_encoder_decoder_forward.1} parent=1 // pred_fallthru
      _
    // Predicated region
    $region38: #{inv_encoder_decoder_forward.1} parent=1 // pred_check
      _
    $region39: #{inv_encoder_decoder_forward.1} parent=1 // pred_check_branch
      %92 = sbr.rel (0) target = $region41
    $region40: #{inv_encoder_decoder_forward.1} parent=1 // pred_region
      _
    $region41: #{inv_encoder_decoder_forward.1} parent=1 // pred_fallthru
      _
    // Predicated region
    $region42: #{inv_encoder_decoder_forward.1} parent=1 // pred_check
      _
    $region43: #{inv_encoder_decoder_forward.1} parent=1 // pred_check_branch
      %94 = sbr.rel (0) target = $region45
    $region44: #{inv_encoder_decoder_forward.1} parent=1 // pred_region
      _
    $region45: #{inv_encoder_decoder_forward.1} parent=1 // pred_fallthru
      _
    // Predicated region
    $region46: #{inv_encoder_decoder_forward.1} parent=1 // pred_check
      _
    $region47: #{inv_encoder_decoder_forward.1} parent=1 // pred_check_branch
      %96 = sbr.rel (0) target = $region49
    $region48: #{inv_encoder_decoder_forward.1} parent=1 // pred_region
      _
    $region49: #{inv_encoder_decoder_forward.1} parent=1 // pred_fallthru
      _
    // Predicated region
    $region50: #{inv_encoder_decoder_forward.1} parent=1 // pred_check
      _
    $region51: #{inv_encoder_decoder_forward.1} parent=1 // pred_check_branch
      %98 = sbr.rel (0) target = $region53
    $region52: #{inv_encoder_decoder_forward.1} parent=1 // pred_region
      _
    $region53: #{inv_encoder_decoder_forward.1} parent=1 // pred_fallthru
      _
    // Predicated region
    $region54: #{inv_encoder_decoder_forward.1} parent=1 // pred_check
      _
    $region55: #{inv_encoder_decoder_forward.1} parent=1 // pred_check_branch
      %100 = sbr.rel (0) target = $region57
    $region56: #{inv_encoder_decoder_forward.1} parent=1 // pred_region
      _
    $region57: #{inv_encoder_decoder_forward.1} parent=1 // pred_fallthru
      _
    // Predicated region
    $region58: #{inv_encoder_decoder_forward.1} parent=1 // pred_check
      _
    $region59: #{inv_encoder_decoder_forward.1} parent=1 // pred_check_branch
      %102 = sbr.rel (0) target = $region61
    $region60: #{inv_encoder_decoder_forward.1} parent=1 // pred_region
      _
    $region61: #{inv_encoder_decoder_forward.1} parent=1 // pred_fallthru
      _
    // Predicated region
    $region62: #{inv_encoder_decoder_forward.1} parent=1 // pred_check
      _
    $region63: #{inv_encoder_decoder_forward.1} parent=1 // pred_check_branch
      %104 = sbr.rel (0) target = $region65
    $region64: #{inv_encoder_decoder_forward.1} parent=1 // pred_region
      _
    $region65: #{inv_encoder_decoder_forward.1} parent=1 // pred_fallthru
      _
    // Predicated region
    $region66: #{inv_encoder_decoder_forward.1} parent=1 // pred_check
      _
    $region67: #{inv_encoder_decoder_forward.1} parent=1 // pred_check_branch
      %106 = sbr.rel (0) target = $region69
    $region68: #{inv_encoder_decoder_forward.1} parent=1 // pred_region
      _
    $region69: #{inv_encoder_decoder_forward.1} parent=1 // pred_fallthru
      _
    // Predicated region
    $region70: #{inv_encoder_decoder_forward.1} parent=1 // pred_check
      _
    $region71: #{inv_encoder_decoder_forward.1} parent=1 // pred_check_branch
      %108 = sbr.rel (0) target = $region73
    $region72: #{inv_encoder_decoder_forward.1} parent=1 // pred_region
      _
    $region73: #{inv_encoder_decoder_forward.1} parent=1 // pred_fallthru
      _
    // Predicated region
    $region74: #{inv_encoder_decoder_forward.1} parent=1 // pred_check
      _
    $region75: #{inv_encoder_decoder_forward.1} parent=1 // pred_check_branch
      %110 = sbr.rel (0) target = $region77
    $region76: #{inv_encoder_decoder_forward.1} parent=1 // pred_region
      _
    $region77: #{inv_encoder_decoder_forward.1} parent=1 // pred_fallthru
      _
    // Predicated region
    $region78: #{inv_encoder_decoder_forward.1} parent=1 // pred_check
      _
    $region79: #{inv_encoder_decoder_forward.1} parent=1 // pred_check_branch
      %112 = sbr.rel (0) target = $region81
    $region80: #{inv_encoder_decoder_forward.1} parent=1 // pred_region
      _
    $region81: #{inv_encoder_decoder_forward.1} parent=1 // pred_fallthru
      _
    // Predicated region
    $region82: #{inv_encoder_decoder_forward.1} parent=1 // pred_check
      _
    $region83: #{inv_encoder_decoder_forward.1} parent=1 // pred_check_branch
      %114 = sbr.rel (0) target = $region85
    $region84: #{inv_encoder_decoder_forward.1} parent=1 // pred_region
      _
    $region85: #{inv_encoder_decoder_forward.1} parent=1 // pred_fallthru
      _
    // Predicated region
    $region86: #{inv_encoder_decoder_forward.1} parent=1 // pred_check
      _
    $region87: #{inv_encoder_decoder_forward.1} parent=1 // pred_check_branch
      %116 = sbr.rel (0) target = $region89
    $region88: #{inv_encoder_decoder_forward.1} parent=1 // pred_region
      _
    $region89: #{inv_encoder_decoder_forward.1} parent=1 // pred_fallthru
      _
    // Predicated region
    $region90: #{inv_encoder_decoder_forward.1} parent=1 // pred_check
      _
    $region91: #{inv_encoder_decoder_forward.1} parent=1 // pred_check_branch
      %118 = sbr.rel (0) target = $region93
    $region92: #{inv_encoder_decoder_forward.1} parent=1 // pred_region
      _
    $region93: #{inv_encoder_decoder_forward.1} parent=1 // pred_fallthru
      _
    // Predicated region
    $region94: #{inv_encoder_decoder_forward.1} parent=1 // pred_check
      _
    $region95: #{inv_encoder_decoder_forward.1} parent=1 // pred_check_branch
      %120 = sbr.rel (0) target = $region97
    $region96: #{inv_encoder_decoder_forward.1} parent=1 // pred_region
      _
    $region97: #{inv_encoder_decoder_forward.1} parent=1 // pred_fallthru
      _
    // Predicated region
    $region98: #{inv_encoder_decoder_forward.1} parent=1 // pred_check
      _
    $region99: #{inv_encoder_decoder_forward.1} parent=1 // pred_check_branch
      %122 = sbr.rel (0) target = $region101
    $region100: #{inv_encoder_decoder_forward.1} parent=1 // pred_region
      _
    $region101: #{inv_encoder_decoder_forward.1} parent=1 // pred_fallthru
      _
    // Predicated region
    $region102: #{inv_encoder_decoder_forward.1} parent=1 // pred_check
      _
    $region103: #{inv_encoder_decoder_forward.1} parent=1 // pred_check_branch
      %124 = sbr.rel (0) target = $region105
    $region104: #{inv_encoder_decoder_forward.1} parent=1 // pred_region
      _
    $region105: #{inv_encoder_decoder_forward.1} parent=1 // pred_fallthru
      _
    // Predicated region
    $region106: #{inv_encoder_decoder_forward.1} parent=1 // pred_check
      _
    $region107: #{inv_encoder_decoder_forward.1} parent=1 // pred_check_branch
      %126 = sbr.rel (0) target = $region109
    $region108: #{inv_encoder_decoder_forward.1} parent=1 // pred_region
      _
    $region109: #{inv_encoder_decoder_forward.1} parent=1 // pred_fallthru
      _
    // Predicated region
    $region110: #{inv_encoder_decoder_forward.1} parent=1 // pred_check
      _
    $region111: #{inv_encoder_decoder_forward.1} parent=1 // pred_check_branch
      %128 = sbr.rel (0) target = $region113
    $region112: #{inv_encoder_decoder_forward.1} parent=1 // pred_region
      _
    $region113: #{inv_encoder_decoder_forward.1} parent=1 // pred_fallthru
      _
    // Predicated region
    $region114: #{inv_encoder_decoder_forward.1} parent=1 // pred_check
      _
    $region115: #{inv_encoder_decoder_forward.1} parent=1 // pred_check_branch
      %130 = sbr.rel (0) target = $region117
    $region116: #{inv_encoder_decoder_forward.1} parent=1 // pred_region
      _
    $region117: #{inv_encoder_decoder_forward.1} parent=1 // pred_fallthru
      _
    // Predicated region
    $region118: #{inv_encoder_decoder_forward.1} parent=1 // pred_check
      _
    $region119: #{inv_encoder_decoder_forward.1} parent=1 // pred_check_branch
      %132 = sbr.rel (0) target = $region121
    $region120: #{inv_encoder_decoder_forward.1} parent=1 // pred_region
      _
    $region121: #{inv_encoder_decoder_forward.1} parent=1 // pred_fallthru
      _
    // Predicated region
    $region122: #{inv_encoder_decoder_forward.1} parent=1 // pred_check
      _
    $region123: #{inv_encoder_decoder_forward.1} parent=1 // pred_check_branch
      %134 = sbr.rel (0) target = $region125
    $region124: #{inv_encoder_decoder_forward.1} parent=1 // pred_region
      _
    $region125: #{inv_encoder_decoder_forward.1} parent=1 // pred_fallthru
      _
    %v136 = vld [vmem:[%s1] sm:$0xff]
    %v137 = vld [vmem:[%s1 + $0x8] sm:$0xff]
    %v138 = vld [vmem:[%s15] sm:$0xff]
    %v139 = vld [vmem:[%s15 + $0x8] sm:$0xff]
    %v140 = vld [vmem:[%s15 + $0x10] sm:$0xff]
    %v141 = vld [vmem:[%s15 + $0x18] sm:$0xff]
    %v142 = vld [vmem:[%s15 + $0x20] sm:$0xff]
    %v143 = vld [vmem:[%s15 + $0x28] sm:$0xff]
    %v144 = vld [vmem:[%s15 + $0x30] sm:$0xff]
    %v145 = vld [vmem:[%s15 + $0x38] sm:$0xff]
    %v146 = vld [vmem:[%s15 + $0x40] sm:$0xff]
    %v147 = vld [vmem:[%s15 + $0x48] sm:$0xff]
    %v148 = vld [vmem:[%s15 + $0x50] sm:$0xff]
    %v149 = vld [vmem:[%s15 + $0x58] sm:$0xff]
    %v150 = vld [vmem:[%s15 + $0x60] sm:$0xff]
    %v151 = vld [vmem:[%s15 + $0x68] sm:$0xff]
    %v152 = vld [vmem:[%s15 + $0x70] sm:$0xff]
    %v153 = vld [vmem:[%s15 + $0x78] sm:$0xff]
    %v154 = vlaneseq
    %v155 = vand.u32 %v154, 127
    %156 = vset.pattern.permute.xlu0 0
    %157 = vperm.xlu0 %156, %v136
    %v158 = vpop.permute.xlu0 %157
    %159 = vset.pattern.permute.xlu0 0
    %160 = vperm.xlu0 %159, %v137
    %v161 = vpop.permute.xlu0 %160
    %vm162 = vcmp.eq.s32.totalorder %v155, %v158
    %vm163 = vcmp.eq.s32.totalorder %v155, %v161
    %v164 = vsel %vm162, 1.0, 0.0
    %v165 = vsel %vm163, 1.0, 0.0
    %v166 = vpack.c.bf16 %v165, %v164
    %v167 = vpack.c.bf16 %v139, %v138
    %v168 = vpack.c.bf16 %v141, %v140
    %v169 = vpack.c.bf16 %v143, %v142
    %v170 = vpack.c.bf16 %v145, %v144
    %v171 = vpack.c.bf16 %v147, %v146
    %v172 = vpack.c.bf16 %v149, %v148
    %v173 = vpack.c.bf16 %v151, %v150
    %v174 = vpack.c.bf16 %v153, %v152
    %175 = vmatprep.subr.bf16.mxu0 0
    %176 = vmatpush1.bf16.msra.mxu0 %v167
    %177 = vmatprep.subr.bf16.mxu0 0
    %178 = vmatpush1.bf16.msra.mxu0 %v168
    %179 = vmatprep.subr.bf16.mxu0 0
    %180 = vmatpush1.bf16.msra.mxu0 %v169
    %181 = vmatprep.subr.bf16.mxu0 0
    %182 = vmatpush1.bf16.msra.mxu0 %v170
    %183 = vmatprep.subr.bf16.mxu0 0
    %184 = vmatpush1.bf16.msra.mxu0 %v171
    %185 = vmatprep.subr.bf16.mxu0 0
    %186 = vmatpush1.bf16.msra.mxu0 %v172
    %187 = vmatprep.subr.bf16.mxu0 0
    %188 = vmatpush1.bf16.msra.mxu0 %v173
    %189 = vmatprep.subr.bf16.mxu0 0
    %190 = vmatpush1.bf16.msra.mxu0 %v174
    %191 = vmatprep.subr.bf16.mxu0 0
    %192 = vmatpush1.bf16.msra.mxu0 0
    %193 = vmatprep.subr.bf16.mxu0 0
    %194 = vmatpush1.bf16.msra.mxu0 0
    %195 = vmatprep.subr.bf16.mxu0 0
    %196 = vmatpush1.bf16.msra.mxu0 0
    %197 = vmatprep.subr.bf16.mxu0 0
    %198 = vmatpush1.bf16.msra.mxu0 0
    %199 = vmatprep.subr.bf16.mxu0 0
    %200 = vmatpush1.bf16.msra.mxu0 0
    %201 = vmatprep.subr.bf16.mxu0 0
    %202 = vmatpush1.bf16.msra.mxu0 0
    %203 = vmatprep.subr.bf16.mxu0 0
    %204 = vmatpush1.bf16.msra.mxu0 0
    %205 = vmatprep.subr.bf16.mxu0 0
    %206 = vmatpush1.bf16.msra.mxu0 0
    %207 = vmatprep.mubr.bf16.mxu0 0
    %208 = vmatmul.mubr.bf16.gmra.mrb[0].mxu0 %v166
    %v209 = vpop.f32.mrb[0].mxu0
    %v210 = vadd.f32 0.0, %v209
    %v211 = vpop.f32.mrb[0].mxu0
    %v212 = vpop.f32.mrb[0].mxu0
    %v213 = vadd.f32 0.0, %v212
    %v214 = vpop.f32.mrb[0].mxu0
    %215 = vdwg.mxu0
    %v216 = vld [vmem:[%s7] sm:$0xff]
    %v217 = vld [vmem:[%s7 + $0x8] sm:$0xff]
    %v218 = vld [vmem:[%s9] sm:$0x1]
    %v219 = vld [vmem:[%s19] sm:$0xff]
    %v220 = vld [vmem:[%s19 + $0x8] sm:$0xf]
    %v221 = vld [vmem:[%s19 + $0xc] sm:$0xff]
    %v222 = vld [vmem:[%s19 + $0x14] sm:$0xf]
    %v223 = vld [vmem:[%s19 + $0x18] sm:$0xff]
    %v224 = vld [vmem:[%s19 + $0x20] sm:$0xf]
    %v225 = vld [vmem:[%s19 + $0x24] sm:$0xff]
    %v226 = vld [vmem:[%s19 + $0x2c] sm:$0xf]
    %v227 = vld [vmem:[%s19 + $0x30] sm:$0xff]
    %v228 = vld [vmem:[%s19 + $0x38] sm:$0xf]
    %v229 = vld [vmem:[%s19 + $0x3c] sm:$0xff]
    %v230 = vld [vmem:[%s19 + $0x44] sm:$0xf]
    %v231 = vld [vmem:[%s19 + $0x48] sm:$0xff]
    %v232 = vld [vmem:[%s19 + $0x50] sm:$0xf]
    %v233 = vld [vmem:[%s19 + $0x54] sm:$0xff]
    %v234 = vld [vmem:[%s19 + $0x5c] sm:$0xf]
    %v235 = vld [vmem:[%s19 + $0x60] sm:$0xff]
    %v236 = vld [vmem:[%s19 + $0x68] sm:$0xf]
    %v237 = vld [vmem:[%s19 + $0x6c] sm:$0xff]
    %v238 = vld [vmem:[%s19 + $0x74] sm:$0xf]
    %v239 = vld [vmem:[%s19 + $0x78] sm:$0xff]
    %v240 = vld [vmem:[%s19 + $0x80] sm:$0xf]
    %v241 = vld [vmem:[%s19 + $0x84] sm:$0xff]
    %v242 = vld [vmem:[%s19 + $0x8c] sm:$0xf]
    %v243 = vld [vmem:[%s19 + $0x90] sm:$0xff]
    %v244 = vld [vmem:[%s19 + $0x98] sm:$0xf]
    %v245 = vld [vmem:[%s19 + $0x9c] sm:$0xff]
    %v246 = vld [vmem:[%s19 + $0xa4] sm:$0xf]
    %v247 = vld [vmem:[%s19 + $0xa8] sm:$0xff]
    %v248 = vld [vmem:[%s19 + $0xb0] sm:$0xf]
    %v249 = vld [vmem:[%s19 + $0xb4] sm:$0xff]
    %v250 = vld [vmem:[%s19 + $0xbc] sm:$0xf]
    %v251 = vld [vmem:[%s21] sm:$0x7]
    %v252 = vld [vmem:[%s23] sm:$0xf]
    %v253 = vld [vmem:[%s23 + $0x4] sm:$0xf]
    %v254 = vld [vmem:[%s23 + $0x8] sm:$0xf]
    %v255 = vld [vmem:[%s23 + $0xc] sm:$0xf]
    %v256 = vld [vmem:[%s23 + $0x10] sm:$0xf]
    %v257 = vld [vmem:[%s23 + $0x14] sm:$0xf]
    %v258 = vld [vmem:[%s23 + $0x18] sm:$0xf]
    %v259 = vld [vmem:[%s23 + $0x1c] sm:$0xf]
    %v260 = vld [vmem:[%s23 + $0x20] sm:$0xf]
    %v261 = vld [vmem:[%s23 + $0x24] sm:$0xf]
    %v262 = vld [vmem:[%s23 + $0x28] sm:$0xf]
    %v263 = vld [vmem:[%s23 + $0x2c] sm:$0xf]
    %v264 = vld [vmem:[%s23 + $0x30] sm:$0xf]
    %v265 = vld [vmem:[%s23 + $0x34] sm:$0xf]
    %v266 = vld [vmem:[%s23 + $0x38] sm:$0xf]
    %v267 = vld [vmem:[%s23 + $0x3c] sm:$0xf]
    %v268 = vld [vmem:[%s25] sm:$0x1]
    %v269 = vld [vmem:[%s27] sm:$0xff]
    %v270 = vld [vmem:[%s27 + $0x8] sm:$0xff]
    %v271 = vld [vmem:[%s27 + $0x10] sm:$0xff]
    %v272 = vld [vmem:[%s27 + $0x18] sm:$0xff]
    %v273 = vld [vmem:[%s27 + $0x20] sm:$0xff]
    %v274 = vld [vmem:[%s27 + $0x28] sm:$0xff]
    %v275 = vld [vmem:[%s27 + $0x30] sm:$0xff]
    %v276 = vld [vmem:[%s27 + $0x38] sm:$0xff]
    %v277 = vld [vmem:[%s27 + $0x40] sm:$0xff]
    %v278 = vld [vmem:[%s27 + $0x48] sm:$0xff]
    %v279 = vld [vmem:[%s27 + $0x50] sm:$0xff]
    %v280 = vld [vmem:[%s27 + $0x58] sm:$0xff]
    %v281 = vld [vmem:[%s27 + $0x60] sm:$0xff]
    %v282 = vld [vmem:[%s27 + $0x68] sm:$0xff]
    %v283 = vld [vmem:[%s27 + $0x70] sm:$0xff]
    %v284 = vld [vmem:[%s27 + $0x78] sm:$0xff]
    %v285 = vld [vmem:[%s29] sm:$0x3]
    %v286 = vld [vmem:[%s31] sm:$0xf]
    %v287 = vld [vmem:[%s31 + $0x4] sm:$0xf]
    %v288 = vld [vmem:[%s31 + $0x8] sm:$0xf]
    %v289 = vld [vmem:[%s31 + $0xc] sm:$0xf]
    %v290 = vld [vmem:[%s31 + $0x10] sm:$0xf]
    %v291 = vld [vmem:[%s31 + $0x14] sm:$0xf]
    %v292 = vld [vmem:[%s31 + $0x18] sm:$0xf]
    %v293 = vld [vmem:[%s31 + $0x1c] sm:$0xf]
    %v294 = vld [vmem:[%s31 + $0x20] sm:$0xf]
    %v295 = vld [vmem:[%s31 + $0x24] sm:$0xf]
    %v296 = vld [vmem:[%s31 + $0x28] sm:$0xf]
    %v297 = vld [vmem:[%s31 + $0x2c] sm:$0xf]
    %v298 = vld [vmem:[%s31 + $0x30] sm:$0xf]
    %v299 = vld [vmem:[%s31 + $0x34] sm:$0xf]
    %v300 = vld [vmem:[%s31 + $0x38] sm:$0xf]
    %v301 = vld [vmem:[%s31 + $0x3c] sm:$0xf]
    %v302 = vld [vmem:[%s31 + $0x40] sm:$0xf]
    %v303 = vld [vmem:[%s31 + $0x44] sm:$0xf]
    %v304 = vld [vmem:[%s31 + $0x48] sm:$0xf]
    %v305 = vld [vmem:[%s31 + $0x4c] sm:$0xf]
    %v306 = vld [vmem:[%s31 + $0x50] sm:$0xf]
    %v307 = vld [vmem:[%s31 + $0x54] sm:$0xf]
    %v308 = vld [vmem:[%s31 + $0x58] sm:$0xf]
    %v309 = vld [vmem:[%s31 + $0x5c] sm:$0xf]
    %v310 = vld [vmem:[%s31 + $0x60] sm:$0xf]
    %v311 = vld [vmem:[%s31 + $0x64] sm:$0xf]
    %v312 = vld [vmem:[%s31 + $0x68] sm:$0xf]
    %v313 = vld [vmem:[%s31 + $0x6c] sm:$0xf]
    %v314 = vld [vmem:[%s31 + $0x70] sm:$0xf]
    %v315 = vld [vmem:[%s31 + $0x74] sm:$0xf]
    %v316 = vld [vmem:[%s31 + $0x78] sm:$0xf]
    %v317 = vld [vmem:[%s31 + $0x7c] sm:$0xf]
    %v318 = vld [vmem:[%s33] sm:$0x1]
    %v319 = vpack.c.bf16 %v213, %v210
    %v321 = vlaneseq
    %v322 = vshrl.u32 %v321, 7
    %v323 = vsub.s32 0, %v322
    %v324 = vrot.slane %v251, %v323
    %v325 = vlaneseq
    %v326 = vshrl.u32 %v325, 7
    %v327 = vsub.s32 1, %v326
    %v328 = vrot.slane %v251, %v327
    %v329 = vlaneseq
    %v330 = vshrl.u32 %v329, 7
    %v331 = vsub.s32 2, %v330
    %v332 = vrot.slane %v251, %v331
    %v368 = vunpack.c.l.b16 %v219
    %v369 = vunpack.c.h.b16 %v219
    %v370 = vunpack.c.l.b16 %v220
    %v371 = vunpack.c.l.b16 %v221
    %v372 = vunpack.c.h.b16 %v221
    %v373 = vunpack.c.l.b16 %v222
    %v374 = vunpack.c.l.b16 %v223
    %v375 = vunpack.c.h.b16 %v223
    %v376 = vunpack.c.l.b16 %v224
    %v377 = vunpack.c.l.b16 %v225
    %v378 = vunpack.c.h.b16 %v225
    %v379 = vunpack.c.l.b16 %v226
    %v380 = vunpack.c.l.b16 %v227
    %v381 = vunpack.c.h.b16 %v227
    %v382 = vunpack.c.l.b16 %v228
    %v383 = vunpack.c.l.b16 %v229
    %v384 = vunpack.c.h.b16 %v229
    %v385 = vunpack.c.l.b16 %v230
    %v386 = vunpack.c.l.b16 %v231
    %v387 = vunpack.c.h.b16 %v231
    %v388 = vunpack.c.l.b16 %v232
    %v389 = vunpack.c.l.b16 %v233
    %v390 = vunpack.c.h.b16 %v233
    %v391 = vunpack.c.l.b16 %v234
    %v392 = vunpack.c.l.b16 %v235
    %v393 = vunpack.c.h.b16 %v235
    %v394 = vunpack.c.l.b16 %v236
    %v395 = vunpack.c.l.b16 %v237
    %v396 = vunpack.c.h.b16 %v237
    %v397 = vunpack.c.l.b16 %v238
    %v398 = vunpack.c.l.b16 %v239
    %v399 = vunpack.c.h.b16 %v239
    %v400 = vunpack.c.l.b16 %v240
    %v401 = vunpack.c.l.b16 %v241
    %v402 = vunpack.c.h.b16 %v241
    %v403 = vunpack.c.l.b16 %v242
    %v404 = vunpack.c.l.b16 %v243
    %v405 = vunpack.c.h.b16 %v243
    %v406 = vunpack.c.l.b16 %v244
    %v407 = vunpack.c.l.b16 %v245
    %v408 = vunpack.c.h.b16 %v245
    %v409 = vunpack.c.l.b16 %v246
    %v410 = vunpack.c.l.b16 %v247
    %v411 = vunpack.c.h.b16 %v247
    %v412 = vunpack.c.l.b16 %v248
    %v413 = vunpack.c.l.b16 %v249
    %v414 = vunpack.c.h.b16 %v249
    %v415 = vunpack.c.l.b16 %v250
    %v416 = vpack.c.b16 %v371, %v368
    %v417 = vpack.c.b16 %v372, %v369
    %v418 = vpack.c.b16 %v373, %v370
    %v419 = vpack.c.b16 %v377, %v374
    %v420 = vpack.c.b16 %v378, %v375
    %v421 = vpack.c.b16 %v379, %v376
    %v422 = vpack.c.b16 %v383, %v380
    %v423 = vpack.c.b16 %v384, %v381
    %v424 = vpack.c.b16 %v385, %v382
    %v425 = vpack.c.b16 %v389, %v386
    %v426 = vpack.c.b16 %v390, %v387
    %v427 = vpack.c.b16 %v391, %v388
    %v428 = vpack.c.b16 %v395, %v392
    %v429 = vpack.c.b16 %v396, %v393
    %v430 = vpack.c.b16 %v397, %v394
    %v431 = vpack.c.b16 %v401, %v398
    %v432 = vpack.c.b16 %v402, %v399
    %v433 = vpack.c.b16 %v403, %v400
    %v434 = vpack.c.b16 %v407, %v404
    %v435 = vpack.c.b16 %v408, %v405
    %v436 = vpack.c.b16 %v409, %v406
    %v437 = vpack.c.b16 %v413, %v410
    %v438 = vpack.c.b16 %v414, %v411
    %v439 = vpack.c.b16 %v415, %v412
    %464 = vmatprep.subr.bf16.mxu0 %v417
    %465 = vmatpush1.bf16.msra.mxu0 %v416
    %466 = vmatprep.subr.bf16.mxu0 %v420
    %467 = vmatpush1.bf16.msra.mxu0 %v419
    %468 = vmatprep.subr.bf16.mxu0 %v423
    %469 = vmatpush1.bf16.msra.mxu0 %v422
    %470 = vmatprep.subr.bf16.mxu0 %v426
    %471 = vmatpush1.bf16.msra.mxu0 %v425
    %472 = vmatprep.subr.bf16.mxu0 %v429
    %473 = vmatpush1.bf16.msra.mxu0 %v428
    %474 = vmatprep.subr.bf16.mxu0 %v432
    %475 = vmatpush1.bf16.msra.mxu0 %v431
    %476 = vmatprep.subr.bf16.mxu0 %v435
    %477 = vmatpush1.bf16.msra.mxu0 %v434
    %478 = vmatprep.subr.bf16.mxu0 %v438
    %479 = vmatpush1.bf16.msra.mxu0 %v437
    %480 = vmatprep.subr.bf16.mxu0 0
    %481 = vmatpush1.bf16.msra.mxu0 0
    %482 = vmatprep.subr.bf16.mxu0 0
    %483 = vmatpush1.bf16.msra.mxu0 0
    %484 = vmatprep.subr.bf16.mxu0 0
    %485 = vmatpush1.bf16.msra.mxu0 0
    %486 = vmatprep.subr.bf16.mxu0 0
    %487 = vmatpush1.bf16.msra.mxu0 0
    %488 = vmatprep.subr.bf16.mxu0 0
    %489 = vmatpush1.bf16.msra.mxu0 0
    %490 = vmatprep.subr.bf16.mxu0 0
    %491 = vmatpush1.bf16.msra.mxu0 0
    %492 = vmatprep.subr.bf16.mxu0 0
    %493 = vmatpush1.bf16.msra.mxu0 0
    %494 = vmatprep.subr.bf16.mxu0 0
    %495 = vmatpush1.bf16.msra.mxu0 0
    %496 = vmatprep.mubr.bf16.mxu0 0
    %497 = vmatmul.mubr.bf16.gmra.mrb[0].mxu0 %v319
    %v498 = vpop.f32.mrb[0].mxu0
    %v499 = vadd.f32 %v324, %v498
    %v500 = vpop.f32.mrb[0].mxu0
    %v501 = vadd.f32 %v328, %v500
    %v502 = vpop.f32.mrb[0].mxu0
    %v503 = vadd.f32 %v324, %v502
    %v504 = vpop.f32.mrb[0].mxu0
    %v505 = vadd.f32 %v328, %v504
    %506 = vdwg.mxu0
    %507 = vmatprep.subr.bf16.mxu0 0
    %508 = vmatpush1.bf16.msra.mxu0 %v418
    %509 = vmatprep.subr.bf16.mxu0 0
    %510 = vmatpush1.bf16.msra.mxu0 %v421
    %511 = vmatprep.subr.bf16.mxu0 0
    %512 = vmatpush1.bf16.msra.mxu0 %v424
    %513 = vmatprep.subr.bf16.mxu0 0
    %514 = vmatpush1.bf16.msra.mxu0 %v427
    %515 = vmatprep.subr.bf16.mxu0 0
    %516 = vmatpush1.bf16.msra.mxu0 %v430
    %517 = vmatprep.subr.bf16.mxu0 0
    %518 = vmatpush1.bf16.msra.mxu0 %v433
    %519 = vmatprep.subr.bf16.mxu0 0
    %520 = vmatpush1.bf16.msra.mxu0 %v436
    %521 = vmatprep.subr.bf16.mxu0 0
    %522 = vmatpush1.bf16.msra.mxu0 %v439
    %523 = vmatprep.subr.bf16.mxu0 0
    %524 = vmatpush1.bf16.msra.mxu0 0
    %525 = vmatprep.subr.bf16.mxu0 0
    %526 = vmatpush1.bf16.msra.mxu0 0
    %527 = vmatprep.subr.bf16.mxu0 0
    %528 = vmatpush1.bf16.msra.mxu0 0
    %529 = vmatprep.subr.bf16.mxu0 0
    %530 = vmatpush1.bf16.msra.mxu0 0
    %531 = vmatprep.subr.bf16.mxu0 0
    %532 = vmatpush1.bf16.msra.mxu0 0
    %533 = vmatprep.subr.bf16.mxu0 0
    %534 = vmatpush1.bf16.msra.mxu0 0
    %535 = vmatprep.subr.bf16.mxu0 0
    %536 = vmatpush1.bf16.msra.mxu0 0
    %537 = vmatprep.subr.bf16.mxu0 0
    %538 = vmatpush1.bf16.msra.mxu0 0
    %539 = vmatprep.mubr.bf16.mxu0 0
    %540 = vmatmul.mubr.bf16.gmra.mrb[0].mxu0 %v319
    %v541 = vpop.f32.mrb[0].mxu0
    %v542 = vadd.f32 %v332, %v541
    %v543 = vpop.f32.mrb[0].mxu0
    %v544 = vpop.f32.mrb[0].mxu0
    %v545 = vadd.f32 %v332, %v544
    %v546 = vpop.f32.mrb[0].mxu0
    %547 = vdwg.mxu0
    %v548 = vpack.c.bf16 %v503, %v499
    %v549 = vpack.c.bf16 %v505, %v501
    %v550 = vpack.c.bf16 %v545, %v542
    %551 = vmatprep.subr.bf16.mxu0 0
    %552 = vmatpush1.bf16.xpose.msra.mxu0 %v549
    %553 = vmatprep.subr.bf16.mxu0 0
    %554 = vmatpush1.bf16.xpose.msra.mxu0 0
    %555 = vmatprep.subr.bf16.mxu0 0
    %556 = vmatpush1.bf16.xpose.msra.mxu0 0
    %557 = vmatprep.subr.bf16.mxu0 0
    %558 = vmatpush1.bf16.xpose.msra.mxu0 0
    %559 = vmatprep.subr.bf16.mxu0 0
    %560 = vmatpush1.bf16.xpose.msra.mxu0 0
    %561 = vmatprep.subr.bf16.mxu0 0
    %562 = vmatpush1.bf16.xpose.msra.mxu0 0
    %563 = vmatprep.subr.bf16.mxu0 0
    %564 = vmatpush1.bf16.xpose.msra.mxu0 0
    %565 = vmatprep.subr.bf16.mxu0 0
    %566 = vmatpush1.bf16.xpose.msra.mxu0 0
    %567 = vmatprep.subr.bf16.mxu0 0
    %568 = vmatpush1.bf16.xpose.msra.mxu0 0
    %569 = vmatprep.subr.bf16.mxu0 0
    %570 = vmatpush1.bf16.xpose.msra.mxu0 0
    %571 = vmatprep.subr.bf16.mxu0 0
    %572 = vmatpush1.bf16.xpose.msra.mxu0 0
    %573 = vmatprep.subr.bf16.mxu0 0
    %574 = vmatpush1.bf16.xpose.msra.mxu0 0
    %575 = vmatprep.subr.bf16.mxu0 0
    %576 = vmatpush1.bf16.xpose.msra.mxu0 0
    %577 = vmatprep.subr.bf16.mxu0 0
    %578 = vmatpush1.bf16.xpose.msra.mxu0 0
    %579 = vmatprep.subr.bf16.mxu0 0
    %580 = vmatpush1.bf16.xpose.msra.mxu0 0
    %581 = vmatprep.subr.bf16.mxu0 0
    %582 = vmatpush1.bf16.xpose.msra.mxu0 0
    %583 = vmatprep.mubr.bf16.mxu0 0
    %584 = vmatmul.mubr.bf16.gmra.mrb[0].mxu0 %v548
    %v585 = vpop.f32.mrb[0].mxu0
    %v586 = vadd.f32 0.0, %v585
    %v587 = vpop.f32.mrb[0].mxu0
    %v588 = vpop.f32.mrb[0].mxu0
    %v589 = vadd.f32 0.0, %v588
    %v590 = vpop.f32.mrb[0].mxu0
    %591 = vdwg.mxu0
    %v592 = vmul.f32 %v586, 0.088388346
    %v593 = vmul.f32 %v589, 0.088388346
    %594 = vset.pattern.permute.xlu0 0
    %595 = vperm.xlu0 %594, %v216
    %v596 = vpop.permute.xlu0 %595
    %597 = vset.pattern.permute.xlu0 0
    %598 = vperm.xlu0 %597, %v217
    %v599 = vpop.permute.xlu0 %598
    %v600 = vlaneseq
    %v601 = vshrl.u32 %v600, 7
    %v602 = vsub.s32 0, %v601
    %v603 = vrot.slane %v218, %v602
    %vm604 = vcmp.eq.s32.totalorder %v596, %v603
    %vm605 = vcmp.eq.s32.totalorder %v599, %v603
    %v606 = vsel %vm604, %v592, -1e+09
    %v607 = vsel %vm605, %v593, -1e+09
    %vm608 = vcmask 130048
    %v609 = vsel %vm608, %v606, -inf
    %610 = vmax.xlane.f32.xlu0 %v609
    %v611 = vpop.xlane.xlu0 %610
    %v612 = vsel %vm608, %v607, -inf
    %613 = vmax.xlane.f32.xlu0 %v612
    %v614 = vpop.xlane.xlu0 %613
    %v615 = vsub.f32 %v606, %v611
    %v616 = vsub.f32 %v607, %v614
    %v617 = vmul.f32 %v615, 1.442695
    %v618 = vpow.pop %v617
    %v619 = vmul.f32 %v616, 1.442695
    %v620 = vpow.pop %v619
    %v621 = vsel %vm608, %v618, 0.0
    %622 = vadd.xlane.f32.xlu0 %v621
    %v623 = vpop.xlane.xlu0 %622
    %v624 = vsel %vm608, %v620, 0.0
    %625 = vadd.xlane.f32.xlu0 %v624
    %v626 = vpop.xlane.xlu0 %625
    %v627 = vrcp.pop %v623
    %v628 = vrcp.pop %v626
    %v629 = vmul.f32 %v618, %v627
    %v630 = vmul.f32 %v620, %v628
    %v631 = vpack.c.bf16 %v630, %v629
    %v633 = vsel %vm608, %v631, 0
    %635 = vmatprep.subr.bf16.mxu0 0
    %636 = vmatpush1.bf16.msra.mxu0 %v550
    %637 = vmatprep.subr.bf16.mxu0 0
    %638 = vmatpush1.bf16.msra.mxu0 0
    %639 = vmatprep.subr.bf16.mxu0 0
    %640 = vmatpush1.bf16.msra.mxu0 0
    %641 = vmatprep.subr.bf16.mxu0 0
    %642 = vmatpush1.bf16.msra.mxu0 0
    %643 = vmatprep.subr.bf16.mxu0 0
    %644 = vmatpush1.bf16.msra.mxu0 0
    %645 = vmatprep.subr.bf16.mxu0 0
    %646 = vmatpush1.bf16.msra.mxu0 0
    %647 = vmatprep.subr.bf16.mxu0 0
    %648 = vmatpush1.bf16.msra.mxu0 0
    %649 = vmatprep.subr.bf16.mxu0 0
    %650 = vmatpush1.bf16.msra.mxu0 0
    %651 = vmatprep.subr.bf16.mxu0 0
    %652 = vmatpush1.bf16.msra.mxu0 0
    %653 = vmatprep.subr.bf16.mxu0 0
    %654 = vmatpush1.bf16.msra.mxu0 0
    %655 = vmatprep.subr.bf16.mxu0 0
    %656 = vmatpush1.bf16.msra.mxu0 0
    %657 = vmatprep.subr.bf16.mxu0 0
    %658 = vmatpush1.bf16.msra.mxu0 0
    %659 = vmatprep.subr.bf16.mxu0 0
    %660 = vmatpush1.bf16.msra.mxu0 0
    %661 = vmatprep.subr.bf16.mxu0 0
    %662 = vmatpush1.bf16.msra.mxu0 0
    %663 = vmatprep.subr.bf16.mxu0 0
    %664 = vmatpush1.bf16.msra.mxu0 0
    %665 = vmatprep.subr.bf16.mxu0 0
    %666 = vmatpush1.bf16.msra.mxu0 0
    %667 = vmatprep.mubr.bf16.mxu0 0
    %668 = vmatmul.mubr.bf16.gmra.mrb[0].mxu0 %v633
    %v669 = vpop.f32.mrb[0].mxu0
    %v670 = vadd.f32 0.0, %v669
    %v671 = vpop.f32.mrb[0].mxu0
    %v672 = vpop.f32.mrb[0].mxu0
    %v673 = vadd.f32 0.0, %v672
    %v674 = vpop.f32.mrb[0].mxu0
    %675 = vdwg.mxu0
    %v676 = vpack.c.bf16 %v673, %v670
    %v678 = vlaneseq
    %v679 = vshrl.u32 %v678, 7
    %v680 = vsub.s32 0, %v679
    %v681 = vrot.slane %v268, %v680
    %v699 = vunpack.c.l.b16 %v252
    %v700 = vunpack.c.l.b16 %v253
    %v701 = vunpack.c.l.b16 %v254
    %v702 = vunpack.c.l.b16 %v255
    %v703 = vunpack.c.l.b16 %v256
    %v704 = vunpack.c.l.b16 %v257
    %v705 = vunpack.c.l.b16 %v258
    %v706 = vunpack.c.l.b16 %v259
    %v707 = vunpack.c.l.b16 %v260
    %v708 = vunpack.c.l.b16 %v261
    %v709 = vunpack.c.l.b16 %v262
    %v710 = vunpack.c.l.b16 %v263
    %v711 = vunpack.c.l.b16 %v264
    %v712 = vunpack.c.l.b16 %v265
    %v713 = vunpack.c.l.b16 %v266
    %v714 = vunpack.c.l.b16 %v267
    %v715 = vpack.c.b16 %v700, %v699
    %v716 = vpack.c.b16 %v702, %v701
    %v717 = vpack.c.b16 %v704, %v703
    %v718 = vpack.c.b16 %v706, %v705
    %v719 = vpack.c.b16 %v708, %v707
    %v720 = vpack.c.b16 %v710, %v709
    %v721 = vpack.c.b16 %v712, %v711
    %v722 = vpack.c.b16 %v714, %v713
    %731 = vmatprep.subr.bf16.mxu0 0
    %732 = vmatpush1.bf16.msra.mxu0 %v715
    %733 = vmatprep.subr.bf16.mxu0 0
    %734 = vmatpush1.bf16.msra.mxu0 %v716
    %735 = vmatprep.subr.bf16.mxu0 0
    %736 = vmatpush1.bf16.msra.mxu0 %v717
    %737 = vmatprep.subr.bf16.mxu0 0
    %738 = vmatpush1.bf16.msra.mxu0 %v718
    %739 = vmatprep.subr.bf16.mxu0 0
    %740 = vmatpush1.bf16.msra.mxu0 %v719
    %741 = vmatprep.subr.bf16.mxu0 0
    %742 = vmatpush1.bf16.msra.mxu0 %v720
    %743 = vmatprep.subr.bf16.mxu0 0
    %744 = vmatpush1.bf16.msra.mxu0 %v721
    %745 = vmatprep.subr.bf16.mxu0 0
    %746 = vmatpush1.bf16.msra.mxu0 %v722
    %747 = vmatprep.subr.bf16.mxu0 0
    %748 = vmatpush1.bf16.msra.mxu0 0
    %749 = vmatprep.subr.bf16.mxu0 0
    %750 = vmatpush1.bf16.msra.mxu0 0
    %751 = vmatprep.subr.bf16.mxu0 0
    %752 = vmatpush1.bf16.msra.mxu0 0
    %753 = vmatprep.subr.bf16.mxu0 0
    %754 = vmatpush1.bf16.msra.mxu0 0
    %755 = vmatprep.subr.bf16.mxu0 0
    %756 = vmatpush1.bf16.msra.mxu0 0
    %757 = vmatprep.subr.bf16.mxu0 0
    %758 = vmatpush1.bf16.msra.mxu0 0
    %759 = vmatprep.subr.bf16.mxu0 0
    %760 = vmatpush1.bf16.msra.mxu0 0
    %761 = vmatprep.subr.bf16.mxu0 0
    %762 = vmatpush1.bf16.msra.mxu0 0
    %763 = vmatprep.mubr.bf16.mxu0 0
    %764 = vmatmul.mubr.bf16.gmra.mrb[0].mxu0 %v676
    %v765 = vpop.f32.mrb[0].mxu0
    %v766 = vadd.f32 %v681, %v765
    %v767 = vpop.f32.mrb[0].mxu0
    %v768 = vpop.f32.mrb[0].mxu0
    %v769 = vadd.f32 %v681, %v768
    %v770 = vpop.f32.mrb[0].mxu0
    %771 = vdwg.mxu0
    %v772 = vadd.f32 %v210, %v766
    %v773 = vadd.f32 %v213, %v769
    %v774 = vpack.c.bf16 %v773, %v772
    %v776 = vlaneseq
    %v777 = vshrl.u32 %v776, 7
    %v778 = vsub.s32 0, %v777
    %v779 = vrot.slane %v285, %v778
    %v780 = vlaneseq
    %v781 = vshrl.u32 %v780, 7
    %v782 = vsub.s32 1, %v781
    %v783 = vrot.slane %v285, %v782
    %v802 = vunpack.c.l.b16 %v269
    %v803 = vunpack.c.h.b16 %v269
    %v804 = vunpack.c.l.b16 %v270
    %v805 = vunpack.c.h.b16 %v270
    %v806 = vunpack.c.l.b16 %v271
    %v807 = vunpack.c.h.b16 %v271
    %v808 = vunpack.c.l.b16 %v272
    %v809 = vunpack.c.h.b16 %v272
    %v810 = vunpack.c.l.b16 %v273
    %v811 = vunpack.c.h.b16 %v273
    %v812 = vunpack.c.l.b16 %v274
    %v813 = vunpack.c.h.b16 %v274
    %v814 = vunpack.c.l.b16 %v275
    %v815 = vunpack.c.h.b16 %v275
    %v816 = vunpack.c.l.b16 %v276
    %v817 = vunpack.c.h.b16 %v276
    %v818 = vunpack.c.l.b16 %v277
    %v819 = vunpack.c.h.b16 %v277
    %v820 = vunpack.c.l.b16 %v278
    %v821 = vunpack.c.h.b16 %v278
    %v822 = vunpack.c.l.b16 %v279
    %v823 = vunpack.c.h.b16 %v279
    %v824 = vunpack.c.l.b16 %v280
    %v825 = vunpack.c.h.b16 %v280
    %v826 = vunpack.c.l.b16 %v281
    %v827 = vunpack.c.h.b16 %v281
    %v828 = vunpack.c.l.b16 %v282
    %v829 = vunpack.c.h.b16 %v282
    %v830 = vunpack.c.l.b16 %v283
    %v831 = vunpack.c.h.b16 %v283
    %v832 = vunpack.c.l.b16 %v284
    %v833 = vunpack.c.h.b16 %v284
    %v834 = vpack.c.b16 %v804, %v802
    %v835 = vpack.c.b16 %v805, %v803
    %v836 = vpack.c.b16 %v808, %v806
    %v837 = vpack.c.b16 %v809, %v807
    %v838 = vpack.c.b16 %v812, %v810
    %v839 = vpack.c.b16 %v813, %v811
    %v840 = vpack.c.b16 %v816, %v814
    %v841 = vpack.c.b16 %v817, %v815
    %v842 = vpack.c.b16 %v820, %v818
    %v843 = vpack.c.b16 %v821, %v819
    %v844 = vpack.c.b16 %v824, %v822
    %v845 = vpack.c.b16 %v825, %v823
    %v846 = vpack.c.b16 %v828, %v826
    %v847 = vpack.c.b16 %v829, %v827
    %v848 = vpack.c.b16 %v832, %v830
    %v849 = vpack.c.b16 %v833, %v831
    %866 = vmatprep.subr.bf16.mxu0 %v835
    %867 = vmatpush1.bf16.msra.mxu0 %v834
    %868 = vmatprep.subr.bf16.mxu0 %v837
    %869 = vmatpush1.bf16.msra.mxu0 %v836
    %870 = vmatprep.subr.bf16.mxu0 %v839
    %871 = vmatpush1.bf16.msra.mxu0 %v838
    %872 = vmatprep.subr.bf16.mxu0 %v841
    %873 = vmatpush1.bf16.msra.mxu0 %v840
    %874 = vmatprep.subr.bf16.mxu0 %v843
    %875 = vmatpush1.bf16.msra.mxu0 %v842
    %876 = vmatprep.subr.bf16.mxu0 %v845
    %877 = vmatpush1.bf16.msra.mxu0 %v844
    %878 = vmatprep.subr.bf16.mxu0 %v847
    %879 = vmatpush1.bf16.msra.mxu0 %v846
    %880 = vmatprep.subr.bf16.mxu0 %v849
    %881 = vmatpush1.bf16.msra.mxu0 %v848
    %882 = vmatprep.subr.bf16.mxu0 0
    %883 = vmatpush1.bf16.msra.mxu0 0
    %884 = vmatprep.subr.bf16.mxu0 0
    %885 = vmatpush1.bf16.msra.mxu0 0
    %886 = vmatprep.subr.bf16.mxu0 0
    %887 = vmatpush1.bf16.msra.mxu0 0
    %888 = vmatprep.subr.bf16.mxu0 0
    %889 = vmatpush1.bf16.msra.mxu0 0
    %890 = vmatprep.subr.bf16.mxu0 0
    %891 = vmatpush1.bf16.msra.mxu0 0
    %892 = vmatprep.subr.bf16.mxu0 0
    %893 = vmatpush1.bf16.msra.mxu0 0
    %894 = vmatprep.subr.bf16.mxu0 0
    %895 = vmatpush1.bf16.msra.mxu0 0
    %896 = vmatprep.subr.bf16.mxu0 0
    %897 = vmatpush1.bf16.msra.mxu0 0
    %898 = vmatprep.mubr.bf16.mxu0 0
    %899 = vmatmul.mubr.bf16.gmra.mrb[0].mxu0 %v774
    %v900 = vpop.f32.mrb[0].mxu0
    %v901 = vadd.f32 %v779, %v900
    %v902 = vpop.f32.mrb[0].mxu0
    %v903 = vadd.f32 %v783, %v902
    %v904 = vpop.f32.mrb[0].mxu0
    %v905 = vadd.f32 %v779, %v904
    %v906 = vpop.f32.mrb[0].mxu0
    %v907 = vadd.f32 %v783, %v906
    %908 = vdwg.mxu0
    %v909 = vmul.f32 %v901, %v901
    %v910 = vmul.f32 %v903, %v903
    %v911 = vmul.f32 %v905, %v905
    %v912 = vmul.f32 %v907, %v907
    %v913 = vmul.f32 %v901, %v909
    %v914 = vmul.f32 %v903, %v910
    %v915 = vmul.f32 %v905, %v911
    %v916 = vmul.f32 %v907, %v912
    %v917 = vmul.f32 %v913, 0.044715
    %v918 = vmul.f32 %v914, 0.044715
    %v919 = vmul.f32 %v915, 0.044715
    %v920 = vmul.f32 %v916, 0.044715
    %v921 = vadd.f32 %v901, %v917
    %v922 = vadd.f32 %v903, %v918
    %v923 = vadd.f32 %v905, %v919
    %v924 = vadd.f32 %v907, %v920
    %v925 = vmul.f32 %v921, 0.7978846
    %v926 = vmul.f32 %v922, 0.7978846
    %v927 = vmul.f32 %v923, 0.7978846
    %v928 = vmul.f32 %v924, 0.7978846
    %v929 = vtanh.pop %v925
    %v930 = vtanh.pop %v926
    %v931 = vtanh.pop %v927
    %v932 = vtanh.pop %v928
    %v933 = vadd.f32 %v929, 1.0
    %v934 = vadd.f32 %v930, 1.0
    %v935 = vadd.f32 %v931, 1.0
    %v936 = vadd.f32 %v932, 1.0
    %v937 = vmul.f32 %v933, 0.5
    %v938 = vmul.f32 %v934, 0.5
    %v939 = vmul.f32 %v935, 0.5
    %v940 = vmul.f32 %v936, 0.5
    %v941 = vmul.f32 %v901, %v937
    %v942 = vmul.f32 %v903, %v938
    %v943 = vmul.f32 %v905, %v939
    %v944 = vmul.f32 %v907, %v940
    %v945 = vpack.c.bf16 %v943, %v941
    %v946 = vpack.c.bf16 %v944, %v942
    %v948 = vlaneseq
    %v949 = vshrl.u32 %v948, 7
    %v950 = vsub.s32 0, %v949
    %v951 = vrot.slane %v318, %v950
    %v985 = vunpack.c.l.b16 %v286
    %v986 = vunpack.c.l.b16 %v287
    %v987 = vunpack.c.l.b16 %v288
    %v988 = vunpack.c.l.b16 %v289
    %v989 = vunpack.c.l.b16 %v290
    %v990 = vunpack.c.l.b16 %v291
    %v991 = vunpack.c.l.b16 %v292
    %v992 = vunpack.c.l.b16 %v293
    %v993 = vunpack.c.l.b16 %v294
    %v994 = vunpack.c.l.b16 %v295
    %v995 = vunpack.c.l.b16 %v296
    %v996 = vunpack.c.l.b16 %v297
    %v997 = vunpack.c.l.b16 %v298
    %v998 = vunpack.c.l.b16 %v299
    %v999 = vunpack.c.l.b16 %v300
    %v1000 = vunpack.c.l.b16 %v301
    %v1001 = vunpack.c.l.b16 %v302
    %v1002 = vunpack.c.l.b16 %v303
    %v1003 = vunpack.c.l.b16 %v304
    %v1004 = vunpack.c.l.b16 %v305
    %v1005 = vunpack.c.l.b16 %v306
    %v1006 = vunpack.c.l.b16 %v307
    %v1007 = vunpack.c.l.b16 %v308
    %v1008 = vunpack.c.l.b16 %v309
    %v1009 = vunpack.c.l.b16 %v310
    %v1010 = vunpack.c.l.b16 %v311
    %v1011 = vunpack.c.l.b16 %v312
    %v1012 = vunpack.c.l.b16 %v313
    %v1013 = vunpack.c.l.b16 %v314
    %v1014 = vunpack.c.l.b16 %v315
    %v1015 = vunpack.c.l.b16 %v316
    %v1016 = vunpack.c.l.b16 %v317
    %v1017 = vpack.c.b16 %v986, %v985
    %v1018 = vpack.c.b16 %v988, %v987
    %v1019 = vpack.c.b16 %v990, %v989
    %v1020 = vpack.c.b16 %v992, %v991
    %v1021 = vpack.c.b16 %v994, %v993
    %v1022 = vpack.c.b16 %v996, %v995
    %v1023 = vpack.c.b16 %v998, %v997
    %v1024 = vpack.c.b16 %v1000, %v999
    %v1025 = vpack.c.b16 %v1002, %v1001
    %v1026 = vpack.c.b16 %v1004, %v1003
    %v1027 = vpack.c.b16 %v1006, %v1005
    %v1028 = vpack.c.b16 %v1008, %v1007
    %v1029 = vpack.c.b16 %v1010, %v1009
    %v1030 = vpack.c.b16 %v1012, %v1011
    %v1031 = vpack.c.b16 %v1014, %v1013
    %v1032 = vpack.c.b16 %v1016, %v1015
    %1049 = vmatprep.subr.bf16.mxu0 0
    %1050 = vmatpush1.bf16.msra.mxu0 %v1017
    %1051 = vmatprep.subr.bf16.mxu0 0
    %1052 = vmatpush1.bf16.msra.mxu0 %v1018
    %1053 = vmatprep.subr.bf16.mxu0 0
    %1054 = vmatpush1.bf16.msra.mxu0 %v1019
    %1055 = vmatprep.subr.bf16.mxu0 0
    %1056 = vmatpush1.bf16.msra.mxu0 %v1020
    %1057 = vmatprep.subr.bf16.mxu0 0
    %1058 = vmatpush1.bf16.msra.mxu0 %v1021
    %1059 = vmatprep.subr.bf16.mxu0 0
    %1060 = vmatpush1.bf16.msra.mxu0 %v1022
    %1061 = vmatprep.subr.bf16.mxu0 0
    %1062 = vmatpush1.bf16.msra.mxu0 %v1023
    %1063 = vmatprep.subr.bf16.mxu0 0
    %1064 = vmatpush1.bf16.msra.mxu0 %v1024
    %1065 = vmatprep.subr.bf16.mxu0 0
    %1066 = vmatpush1.bf16.msra.mxu0 %v1025
    %1067 = vmatprep.subr.bf16.mxu0 0
    %1068 = vmatpush1.bf16.msra.mxu0 %v1026
    %1069 = vmatprep.subr.bf16.mxu0 0
    %1070 = vmatpush1.bf16.msra.mxu0 %v1027
    %1071 = vmatprep.subr.bf16.mxu0 0
    %1072 = vmatpush1.bf16.msra.mxu0 %v1028
    %1073 = vmatprep.subr.bf16.mxu0 0
    %1074 = vmatpush1.bf16.msra.mxu0 %v1029
    %1075 = vmatprep.subr.bf16.mxu0 0
    %1076 = vmatpush1.bf16.msra.mxu0 %v1030
    %1077 = vmatprep.subr.bf16.mxu0 0
    %1078 = vmatpush1.bf16.msra.mxu0 %v1031
    %1079 = vmatprep.subr.bf16.mxu0 0
    %1080 = vmatpush1.bf16.msra.mxu0 %v1032
    %1081 = vmatprep.mubr.bf16.mxu0 %v946
    %1082 = vmatmul.mubr.bf16.gmra.mrb[0].mxu0 %v945
    %v1083 = vpop.f32.mrb[0].mxu0
    %v1084 = vadd.f32 %v951, %v1083
    %v1085 = vpop.f32.mrb[0].mxu0
    %v1086 = vpop.f32.mrb[0].mxu0
    %v1087 = vadd.f32 %v951, %v1086
    %v1088 = vpop.f32.mrb[0].mxu0
    %1089 = vdwg.mxu0
    %v1090 = vadd.f32 %v772, %v1084
    %v1091 = vadd.f32 %v773, %v1087
    %v1092 = vpack.c.bf16 %v1091, %v1090
    %v1093 = vld [vmem:[%s35] sm:$0xf]
    %v1094 = vld [vmem:[%s35 + $0x4] sm:$0xf]
    %v1095 = vld [vmem:[%s35 + $0x8] sm:$0xf]
    %v1096 = vld [vmem:[%s35 + $0xc] sm:$0xf]
    %v1097 = vld [vmem:[%s35 + $0x10] sm:$0xf]
    %v1098 = vld [vmem:[%s35 + $0x14] sm:$0xf]
    %v1099 = vld [vmem:[%s35 + $0x18] sm:$0xf]
    %v1100 = vld [vmem:[%s35 + $0x1c] sm:$0xf]
    %v1101 = vld [vmem:[%s35 + $0x20] sm:$0xf]
    %v1102 = vld [vmem:[%s35 + $0x24] sm:$0xf]
    %v1103 = vld [vmem:[%s35 + $0x28] sm:$0xf]
    %v1104 = vld [vmem:[%s35 + $0x2c] sm:$0xf]
    %v1105 = vld [vmem:[%s35 + $0x30] sm:$0xf]
    %v1106 = vld [vmem:[%s35 + $0x34] sm:$0xf]
    %v1107 = vld [vmem:[%s35 + $0x38] sm:$0xf]
    %v1108 = vld [vmem:[%s35 + $0x3c] sm:$0xf]
    %v1109 = vld [vmem:[%s37] sm:$0x1]
    %v1111 = vlaneseq
    %v1112 = vshrl.u32 %v1111, 7
    %v1113 = vsub.s32 0, %v1112
    %v1114 = vrot.slane %v1109, %v1113
    %v1132 = vunpack.c.l.b16 %v1093
    %v1133 = vunpack.c.l.b16 %v1094
    %v1134 = vunpack.c.l.b16 %v1095
    %v1135 = vunpack.c.l.b16 %v1096
    %v1136 = vunpack.c.l.b16 %v1097
    %v1137 = vunpack.c.l.b16 %v1098
    %v1138 = vunpack.c.l.b16 %v1099
    %v1139 = vunpack.c.l.b16 %v1100
    %v1140 = vunpack.c.l.b16 %v1101
    %v1141 = vunpack.c.l.b16 %v1102
    %v1142 = vunpack.c.l.b16 %v1103
    %v1143 = vunpack.c.l.b16 %v1104
    %v1144 = vunpack.c.l.b16 %v1105
    %v1145 = vunpack.c.l.b16 %v1106
    %v1146 = vunpack.c.l.b16 %v1107
    %v1147 = vunpack.c.l.b16 %v1108
    %v1148 = vpack.c.b16 %v1133, %v1132
    %v1149 = vpack.c.b16 %v1135, %v1134
    %v1150 = vpack.c.b16 %v1137, %v1136
    %v1151 = vpack.c.b16 %v1139, %v1138
    %v1152 = vpack.c.b16 %v1141, %v1140
    %v1153 = vpack.c.b16 %v1143, %v1142
    %v1154 = vpack.c.b16 %v1145, %v1144
    %v1155 = vpack.c.b16 %v1147, %v1146
    %1164 = vmatprep.subr.bf16.mxu0 0
    %1165 = vmatpush1.bf16.msra.mxu0 %v1148
    %1166 = vmatprep.subr.bf16.mxu0 0
    %1167 = vmatpush1.bf16.msra.mxu0 %v1149
    %1168 = vmatprep.subr.bf16.mxu0 0
    %1169 = vmatpush1.bf16.msra.mxu0 %v1150
    %1170 = vmatprep.subr.bf16.mxu0 0
    %1171 = vmatpush1.bf16.msra.mxu0 %v1151
    %1172 = vmatprep.subr.bf16.mxu0 0
    %1173 = vmatpush1.bf16.msra.mxu0 %v1152
    %1174 = vmatprep.subr.bf16.mxu0 0
    %1175 = vmatpush1.bf16.msra.mxu0 %v1153
    %1176 = vmatprep.subr.bf16.mxu0 0
    %1177 = vmatpush1.bf16.msra.mxu0 %v1154
    %1178 = vmatprep.subr.bf16.mxu0 0
    %1179 = vmatpush1.bf16.msra.mxu0 %v1155
    %1180 = vmatprep.subr.bf16.mxu0 0
    %1181 = vmatpush1.bf16.msra.mxu0 0
    %1182 = vmatprep.subr.bf16.mxu0 0
    %1183 = vmatpush1.bf16.msra.mxu0 0
    %1184 = vmatprep.subr.bf16.mxu0 0
    %1185 = vmatpush1.bf16.msra.mxu0 0
    %1186 = vmatprep.subr.bf16.mxu0 0
    %1187 = vmatpush1.bf16.msra.mxu0 0
    %1188 = vmatprep.subr.bf16.mxu0 0
    %1189 = vmatpush1.bf16.msra.mxu0 0
    %1190 = vmatprep.subr.bf16.mxu0 0
    %1191 = vmatpush1.bf16.msra.mxu0 0
    %1192 = vmatprep.subr.bf16.mxu0 0
    %1193 = vmatpush1.bf16.msra.mxu0 0
    %1194 = vmatprep.subr.bf16.mxu0 0
    %1195 = vmatpush1.bf16.msra.mxu0 0
    %1196 = vmatprep.mubr.bf16.mxu0 0
    %1197 = vmatmul.mubr.bf16.gmra.mrb[0].mxu0 %v1092
    %v1198 = vpop.f32.mrb[0].mxu0
    %v1199 = vadd.f32 %v1114, %v1198
    %v1200 = vpop.f32.mrb[0].mxu0
    %v1201 = vpop.f32.mrb[0].mxu0
    %v1202 = vadd.f32 %v1114, %v1201
    %v1203 = vpop.f32.mrb[0].mxu0
    %1204 = vdwg.mxu0
    %v1205 = vmul.f32 %v1199, %v1199
    %v1206 = vmul.f32 %v1202, %v1202
    %v1207 = vmul.f32 %v1199, %v1205
    %v1208 = vmul.f32 %v1202, %v1206
    %v1209 = vmul.f32 %v1207, 0.044715
    %v1210 = vmul.f32 %v1208, 0.044715
    %v1211 = vadd.f32 %v1199, %v1209
    %v1212 = vadd.f32 %v1202, %v1210
    %v1213 = vmul.f32 %v1211, 0.7978846
    %v1214 = vmul.f32 %v1212, 0.7978846
    %v1215 = vtanh.pop %v1213
    %v1216 = vtanh.pop %v1214
    %v1217 = vadd.f32 %v1215, 1.0
    %v1218 = vadd.f32 %v1216, 1.0
    %v1219 = vmul.f32 %v1217, 0.5
    %v1220 = vmul.f32 %v1218, 0.5
    %v1221 = vmul.f32 %v1199, %v1219
    %v1222 = vmul.f32 %v1202, %v1220
    %v1223 = vpack.c.bf16 %v1222, %v1221
    %v1224 = vld [vmem:[%s39] sm:$0xf]
    %v1225 = vld [vmem:[%s39 + $0x4] sm:$0xf]
    %v1226 = vld [vmem:[%s39 + $0x8] sm:$0xf]
    %v1227 = vld [vmem:[%s39 + $0xc] sm:$0xf]
    %v1228 = vld [vmem:[%s39 + $0x10] sm:$0xf]
    %v1229 = vld [vmem:[%s39 + $0x14] sm:$0xf]
    %v1230 = vld [vmem:[%s39 + $0x18] sm:$0xf]
    %v1231 = vld [vmem:[%s39 + $0x1c] sm:$0xf]
    %v1232 = vld [vmem:[%s39 + $0x20] sm:$0xf]
    %v1233 = vld [vmem:[%s39 + $0x24] sm:$0xf]
    %v1234 = vld [vmem:[%s39 + $0x28] sm:$0xf]
    %v1235 = vld [vmem:[%s39 + $0x2c] sm:$0xf]
    %v1236 = vld [vmem:[%s39 + $0x30] sm:$0xf]
    %v1237 = vld [vmem:[%s39 + $0x34] sm:$0xf]
    %v1238 = vld [vmem:[%s39 + $0x38] sm:$0xf]
    %v1239 = vld [vmem:[%s39 + $0x3c] sm:$0xf]
    %v1240 = vld [vmem:[%s41] sm:$0x1]
    %v1242 = vlaneseq
    %v1243 = vshrl.u32 %v1242, 7
    %v1244 = vsub.s32 0, %v1243
    %v1245 = vrot.slane %v1240, %v1244
    %v1263 = vunpack.c.l.b16 %v1224
    %v1264 = vunpack.c.l.b16 %v1225
    %v1265 = vunpack.c.l.b16 %v1226
    %v1266 = vunpack.c.l.b16 %v1227
    %v1267 = vunpack.c.l.b16 %v1228
    %v1268 = vunpack.c.l.b16 %v1229
    %v1269 = vunpack.c.l.b16 %v1230
    %v1270 = vunpack.c.l.b16 %v1231
    %v1271 = vunpack.c.l.b16 %v1232
    %v1272 = vunpack.c.l.b16 %v1233
    %v1273 = vunpack.c.l.b16 %v1234
    %v1274 = vunpack.c.l.b16 %v1235
    %v1275 = vunpack.c.l.b16 %v1236
    %v1276 = vunpack.c.l.b16 %v1237
    %v1277 = vunpack.c.l.b16 %v1238
    %v1278 = vunpack.c.l.b16 %v1239
    %v1279 = vpack.c.b16 %v1264, %v1263
    %v1280 = vpack.c.b16 %v1266, %v1265
    %v1281 = vpack.c.b16 %v1268, %v1267
    %v1282 = vpack.c.b16 %v1270, %v1269
    %v1283 = vpack.c.b16 %v1272, %v1271
    %v1284 = vpack.c.b16 %v1274, %v1273
    %v1285 = vpack.c.b16 %v1276, %v1275
    %v1286 = vpack.c.b16 %v1278, %v1277
    %1295 = vmatprep.subr.bf16.mxu0 0
    %1296 = vmatpush1.bf16.msra.mxu0 %v1279
    %1297 = vmatprep.subr.bf16.mxu0 0
    %1298 = vmatpush1.bf16.msra.mxu0 %v1280
    %1299 = vmatprep.subr.bf16.mxu0 0
    %1300 = vmatpush1.bf16.msra.mxu0 %v1281
    %1301 = vmatprep.subr.bf16.mxu0 0
    %1302 = vmatpush1.bf16.msra.mxu0 %v1282
    %1303 = vmatprep.subr.bf16.mxu0 0
    %1304 = vmatpush1.bf16.msra.mxu0 %v1283
    %1305 = vmatprep.subr.bf16.mxu0 0
    %1306 = vmatpush1.bf16.msra.mxu0 %v1284
    %1307 = vmatprep.subr.bf16.mxu0 0
    %1308 = vmatpush1.bf16.msra.mxu0 %v1285
    %1309 = vmatprep.subr.bf16.mxu0 0
    %1310 = vmatpush1.bf16.msra.mxu0 %v1286
    %1311 = vmatprep.subr.bf16.mxu0 0
    %1312 = vmatpush1.bf16.msra.mxu0 0
    %1313 = vmatprep.subr.bf16.mxu0 0
    %1314 = vmatpush1.bf16.msra.mxu0 0
    %1315 = vmatprep.subr.bf16.mxu0 0
    %1316 = vmatpush1.bf16.msra.mxu0 0
    %1317 = vmatprep.subr.bf16.mxu0 0
    %1318 = vmatpush1.bf16.msra.mxu0 0
    %1319 = vmatprep.subr.bf16.mxu0 0
    %1320 = vmatpush1.bf16.msra.mxu0 0
    %1321 = vmatprep.subr.bf16.mxu0 0
    %1322 = vmatpush1.bf16.msra.mxu0 0
    %1323 = vmatprep.subr.bf16.mxu0 0
    %1324 = vmatpush1.bf16.msra.mxu0 0
    %1325 = vmatprep.subr.bf16.mxu0 0
    %1326 = vmatpush1.bf16.msra.mxu0 0
    %1327 = vmatprep.mubr.bf16.mxu0 0
    %1328 = vmatmul.mubr.bf16.gmra.mrb[0].mxu0 %v1223
    %v1329 = vpop.f32.mrb[0].mxu0
    %v1330 = vadd.f32 %v1245, %v1329
    %v1331 = vpop.f32.mrb[0].mxu0
    %v1332 = vpop.f32.mrb[0].mxu0
    %v1333 = vadd.f32 %v1245, %v1332
    %v1334 = vpop.f32.mrb[0].mxu0
    %1335 = vdwg.mxu0
    %v1336 = vld [vmem:[%s3] sm:$0xff]
    %v1337 = vld [vmem:[%s3 + $0x8] sm:$0xff]
    %v1338 = vld [vmem:[%s3 + $0x10] sm:$0xff]
    %v1339 = vld [vmem:[%s3 + $0x18] sm:$0xff]
    %v1340 = vld [vmem:[%s17] sm:$0xff]
    %v1341 = vld [vmem:[%s17 + $0x8] sm:$0xff]
    %v1342 = vld [vmem:[%s17 + $0x10] sm:$0xff]
    %v1343 = vld [vmem:[%s17 + $0x18] sm:$0xff]
    %v1344 = vld [vmem:[%s17 + $0x20] sm:$0xff]
    %v1345 = vld [vmem:[%s17 + $0x28] sm:$0xff]
    %v1346 = vld [vmem:[%s17 + $0x30] sm:$0xff]
    %v1347 = vld [vmem:[%s17 + $0x38] sm:$0xff]
    %v1348 = vld [vmem:[%s17 + $0x40] sm:$0xff]
    %v1349 = vld [vmem:[%s17 + $0x48] sm:$0xff]
    %v1350 = vld [vmem:[%s17 + $0x50] sm:$0xff]
    %v1351 = vld [vmem:[%s17 + $0x58] sm:$0xff]
    %v1352 = vld [vmem:[%s17 + $0x60] sm:$0xff]
    %v1353 = vld [vmem:[%s17 + $0x68] sm:$0xff]
    %v1354 = vld [vmem:[%s17 + $0x70] sm:$0xff]
    %v1355 = vld [vmem:[%s17 + $0x78] sm:$0xff]
    %1356 = vset.pattern.permute.xlu0 0
    %1357 = vperm.xlu0 %1356, %v1336
    %v1358 = vpop.permute.xlu0 %1357
    %1359 = vset.pattern.permute.xlu0 0
    %1360 = vperm.xlu0 %1359, %v1337
    %v1361 = vpop.permute.xlu0 %1360
    %1362 = vset.pattern.permute.xlu0 0
    %1363 = vperm.xlu0 %1362, %v1338
    %v1364 = vpop.permute.xlu0 %1363
    %1365 = vset.pattern.permute.xlu0 0
    %1366 = vperm.xlu0 %1365, %v1339
    %v1367 = vpop.permute.xlu0 %1366
    %vm1368 = vcmp.eq.s32.totalorder %v155, %v1358
    %vm1369 = vcmp.eq.s32.totalorder %v155, %v1361
    %vm1370 = vcmp.eq.s32.totalorder %v155, %v1364
    %vm1371 = vcmp.eq.s32.totalorder %v155, %v1367
    %v1372 = vsel %vm1368, 1.0, 0.0
    %v1373 = vsel %vm1369, 1.0, 0.0
    %v1374 = vsel %vm1370, 1.0, 0.0
    %v1375 = vsel %vm1371, 1.0, 0.0
    %v1376 = vpack.c.bf16 %v1373, %v1372
    %v1377 = vpack.c.bf16 %v1375, %v1374
    %v1378 = vpack.c.bf16 %v1341, %v1340
    %v1379 = vpack.c.bf16 %v1343, %v1342
    %v1380 = vpack.c.bf16 %v1345, %v1344
    %v1381 = vpack.c.bf16 %v1347, %v1346
    %v1382 = vpack.c.bf16 %v1349, %v1348
    %v1383 = vpack.c.bf16 %v1351, %v1350
    %v1384 = vpack.c.bf16 %v1353, %v1352
    %v1385 = vpack.c.bf16 %v1355, %v1354
    %1386 = vmatprep.subr.bf16.mxu0 0
    %1387 = vmatpush1.bf16.msra.mxu0 %v1378
    %1388 = vmatprep.subr.bf16.mxu0 0
    %1389 = vmatpush1.bf16.msra.mxu0 %v1379
    %1390 = vmatprep.subr.bf16.mxu0 0
    %1391 = vmatpush1.bf16.msra.mxu0 %v1380
    %1392 = vmatprep.subr.bf16.mxu0 0
    %1393 = vmatpush1.bf16.msra.mxu0 %v1381
    %1394 = vmatprep.subr.bf16.mxu0 0
    %1395 = vmatpush1.bf16.msra.mxu0 %v1382
    %1396 = vmatprep.subr.bf16.mxu0 0
    %1397 = vmatpush1.bf16.msra.mxu0 %v1383
    %1398 = vmatprep.subr.bf16.mxu0 0
    %1399 = vmatpush1.bf16.msra.mxu0 %v1384
    %1400 = vmatprep.subr.bf16.mxu0 0
    %1401 = vmatpush1.bf16.msra.mxu0 %v1385
    %1402 = vmatprep.subr.bf16.mxu0 0
    %1403 = vmatpush1.bf16.msra.mxu0 0
    %1404 = vmatprep.subr.bf16.mxu0 0
    %1405 = vmatpush1.bf16.msra.mxu0 0
    %1406 = vmatprep.subr.bf16.mxu0 0
    %1407 = vmatpush1.bf16.msra.mxu0 0
    %1408 = vmatprep.subr.bf16.mxu0 0
    %1409 = vmatpush1.bf16.msra.mxu0 0
    %1410 = vmatprep.subr.bf16.mxu0 0
    %1411 = vmatpush1.bf16.msra.mxu0 0
    %1412 = vmatprep.subr.bf16.mxu0 0
    %1413 = vmatpush1.bf16.msra.mxu0 0
    %1414 = vmatprep.subr.bf16.mxu0 0
    %1415 = vmatpush1.bf16.msra.mxu0 0
    %1416 = vmatprep.subr.bf16.mxu0 0
    %1417 = vmatpush1.bf16.msra.mxu0 0
    %1418 = vmatprep.mubr.bf16.mxu0 0
    %1419 = vmatmul.mubr.bf16.gmra.mrb[0].mxu0 %v1376
    %v1420 = vpop.f32.mrb[0].mxu0
    %v1421 = vadd.f32 0.0, %v1420
    %v1422 = vpop.f32.mrb[0].mxu0
    %v1423 = vpop.f32.mrb[0].mxu0
    %v1424 = vadd.f32 0.0, %v1423
    %v1425 = vpop.f32.mrb[0].mxu0
    %1426 = vmatprep.mubr.bf16.mxu0 0
    %1427 = vmatmul.mubr.bf16.gmra.mrb[0].mxu0 %v1377
    %v1428 = vpop.f32.mrb[0].mxu0
    %v1429 = vadd.f32 0.0, %v1428
    %v1430 = vpop.f32.mrb[0].mxu0
    %v1431 = vpop.f32.mrb[0].mxu0
    %v1432 = vadd.f32 0.0, %v1431
    %v1433 = vpop.f32.mrb[0].mxu0
    %1434 = vdwg.mxu0
    %1435 = vst [vmem:[#allocation2] sm:$0xff] %v1330
    %1436 = vst [vmem:[#allocation2 + $0x8] sm:$0xff] %v1421
    %1437 = vst [vmem:[#allocation2 + $0x10] sm:$0xff] %v1424
    %1438 = vst [vmem:[#allocation2 + $0x18] sm:$0xff] %v1333
    %1439 = vst [vmem:[#allocation2 + $0x20] sm:$0xff] %v1429
    %1440 = vst [vmem:[#allocation2 + $0x28] sm:$0xff] %v1432
    %v1441 = vld [vmem:[#allocation2] sm:$0xff]
    %v1442 = vld [vmem:[#allocation2 + $0x8] sm:$0xff]
    %v1443 = vld [vmem:[#allocation2 + $0x10] sm:$0xff]
    %v1444 = vld [vmem:[#allocation2 + $0x18] sm:$0xff]
    %v1445 = vld [vmem:[#allocation2 + $0x20] sm:$0xff]
    %v1446 = vld [vmem:[#allocation2 + $0x28] sm:$0xff]
    %v1447 = vld [vmem:[%s11] sm:$0xff]
    %v1448 = vld [vmem:[%s11 + $0x8] sm:$0xff]
    %v1449 = vld [vmem:[%s11 + $0x10] sm:$0xff]
    %v1450 = vld [vmem:[%s11 + $0x18] sm:$0xff]
    %v1451 = vld [vmem:[%s11 + $0x20] sm:$0xff]
    %v1452 = vld [vmem:[%s11 + $0x28] sm:$0xff]
    %v1453 = vld [vmem:[%s13] sm:$0x1]
    %v1454 = vld [vmem:[%s43] sm:$0xff]
    %v1455 = vld [vmem:[%s43 + $0x8] sm:$0xf]
    %v1456 = vld [vmem:[%s43 + $0xc] sm:$0xff]
    %v1457 = vld [vmem:[%s43 + $0x14] sm:$0xf]
    %v1458 = vld [vmem:[%s43 + $0x18] sm:$0xff]
    %v1459 = vld [vmem:[%s43 + $0x20] sm:$0xf]
    %v1460 = vld [vmem:[%s43 + $0x24] sm:$0xff]
    %v1461 = vld [vmem:[%s43 + $0x2c] sm:$0xf]
    %v1462 = vld [vmem:[%s43 + $0x30] sm:$0xff]
    %v1463 = vld [vmem:[%s43 + $0x38] sm:$0xf]
    %v1464 = vld [vmem:[%s43 + $0x3c] sm:$0xff]
    %v1465 = vld [vmem:[%s43 + $0x44] sm:$0xf]
    %v1466 = vld [vmem:[%s43 + $0x48] sm:$0xff]
    %v1467 = vld [vmem:[%s43 + $0x50] sm:$0xf]
    %v1468 = vld [vmem:[%s43 + $0x54] sm:$0xff]
    %v1469 = vld [vmem:[%s43 + $0x5c] sm:$0xf]
    %v1470 = vld [vmem:[%s43 + $0x60] sm:$0xff]
    %v1471 = vld [vmem:[%s43 + $0x68] sm:$0xf]
    %v1472 = vld [vmem:[%s43 + $0x6c] sm:$0xff]
    %v1473 = vld [vmem:[%s43 + $0x74] sm:$0xf]
    %v1474 = vld [vmem:[%s43 + $0x78] sm:$0xff]
    %v1475 = vld [vmem:[%s43 + $0x80] sm:$0xf]
    %v1476 = vld [vmem:[%s43 + $0x84] sm:$0xff]
    %v1477 = vld [vmem:[%s43 + $0x8c] sm:$0xf]
    %v1478 = vld [vmem:[%s43 + $0x90] sm:$0xff]
    %v1479 = vld [vmem:[%s43 + $0x98] sm:$0xf]
    %v1480 = vld [vmem:[%s43 + $0x9c] sm:$0xff]
    %v1481 = vld [vmem:[%s43 + $0xa4] sm:$0xf]
    %v1482 = vld [vmem:[%s43 + $0xa8] sm:$0xff]
    %v1483 = vld [vmem:[%s43 + $0xb0] sm:$0xf]
    %v1484 = vld [vmem:[%s43 + $0xb4] sm:$0xff]
    %v1485 = vld [vmem:[%s43 + $0xbc] sm:$0xf]
    %v1486 = vld [vmem:[%s45] sm:$0x7]
    %v1487 = vld [vmem:[%s47] sm:$0xf]
    %v1488 = vld [vmem:[%s47 + $0x4] sm:$0xf]
    %v1489 = vld [vmem:[%s47 + $0x8] sm:$0xf]
    %v1490 = vld [vmem:[%s47 + $0xc] sm:$0xf]
    %v1491 = vld [vmem:[%s47 + $0x10] sm:$0xf]
    %v1492 = vld [vmem:[%s47 + $0x14] sm:$0xf]
    %v1493 = vld [vmem:[%s47 + $0x18] sm:$0xf]
    %v1494 = vld [vmem:[%s47 + $0x1c] sm:$0xf]
    %v1495 = vld [vmem:[%s47 + $0x20] sm:$0xf]
    %v1496 = vld [vmem:[%s47 + $0x24] sm:$0xf]
    %v1497 = vld [vmem:[%s47 + $0x28] sm:$0xf]
    %v1498 = vld [vmem:[%s47 + $0x2c] sm:$0xf]
    %v1499 = vld [vmem:[%s47 + $0x30] sm:$0xf]
    %v1500 = vld [vmem:[%s47 + $0x34] sm:$0xf]
    %v1501 = vld [vmem:[%s47 + $0x38] sm:$0xf]
    %v1502 = vld [vmem:[%s47 + $0x3c] sm:$0xf]
    %v1503 = vld [vmem:[%s49] sm:$0x1]
    %v1504 = vld [vmem:[%s51] sm:$0xff]
    %v1505 = vld [vmem:[%s51 + $0x8] sm:$0xff]
    %v1506 = vld [vmem:[%s51 + $0x10] sm:$0xff]
    %v1507 = vld [vmem:[%s51 + $0x18] sm:$0xff]
    %v1508 = vld [vmem:[%s51 + $0x20] sm:$0xff]
    %v1509 = vld [vmem:[%s51 + $0x28] sm:$0xff]
    %v1510 = vld [vmem:[%s51 + $0x30] sm:$0xff]
    %v1511 = vld [vmem:[%s51 + $0x38] sm:$0xff]
    %v1512 = vld [vmem:[%s51 + $0x40] sm:$0xff]
    %v1513 = vld [vmem:[%s51 + $0x48] sm:$0xff]
    %v1514 = vld [vmem:[%s51 + $0x50] sm:$0xff]
    %v1515 = vld [vmem:[%s51 + $0x58] sm:$0xff]
    %v1516 = vld [vmem:[%s51 + $0x60] sm:$0xff]
    %v1517 = vld [vmem:[%s51 + $0x68] sm:$0xff]
    %v1518 = vld [vmem:[%s51 + $0x70] sm:$0xff]
    %v1519 = vld [vmem:[%s51 + $0x78] sm:$0xff]
    %v1520 = vld [vmem:[%s53] sm:$0x3]
    %v1521 = vld [vmem:[%s55] sm:$0xf]
    %v1522 = vld [vmem:[%s55 + $0x4] sm:$0xf]
    %v1523 = vld [vmem:[%s55 + $0x8] sm:$0xf]
    %v1524 = vld [vmem:[%s55 + $0xc] sm:$0xf]
    %v1525 = vld [vmem:[%s55 + $0x10] sm:$0xf]
    %v1526 = vld [vmem:[%s55 + $0x14] sm:$0xf]
    %v1527 = vld [vmem:[%s55 + $0x18] sm:$0xf]
    %v1528 = vld [vmem:[%s55 + $0x1c] sm:$0xf]
    %v1529 = vld [vmem:[%s55 + $0x20] sm:$0xf]
    %v1530 = vld [vmem:[%s55 + $0x24] sm:$0xf]
    %v1531 = vld [vmem:[%s55 + $0x28] sm:$0xf]
    %v1532 = vld [vmem:[%s55 + $0x2c] sm:$0xf]
    %v1533 = vld [vmem:[%s55 + $0x30] sm:$0xf]
    %v1534 = vld [vmem:[%s55 + $0x34] sm:$0xf]
    %v1535 = vld [vmem:[%s55 + $0x38] sm:$0xf]
    %v1536 = vld [vmem:[%s55 + $0x3c] sm:$0xf]
    %v1537 = vld [vmem:[%s55 + $0x40] sm:$0xf]
    %v1538 = vld [vmem:[%s55 + $0x44] sm:$0xf]
    %v1539 = vld [vmem:[%s55 + $0x48] sm:$0xf]
    %v1540 = vld [vmem:[%s55 + $0x4c] sm:$0xf]
    %v1541 = vld [vmem:[%s55 + $0x50] sm:$0xf]
    %v1542 = vld [vmem:[%s55 + $0x54] sm:$0xf]
    %v1543 = vld [vmem:[%s55 + $0x58] sm:$0xf]
    %v1544 = vld [vmem:[%s55 + $0x5c] sm:$0xf]
    %v1545 = vld [vmem:[%s55 + $0x60] sm:$0xf]
    %v1546 = vld [vmem:[%s55 + $0x64] sm:$0xf]
    %v1547 = vld [vmem:[%s55 + $0x68] sm:$0xf]
    %v1548 = vld [vmem:[%s55 + $0x6c] sm:$0xf]
    %v1549 = vld [vmem:[%s55 + $0x70] sm:$0xf]
    %v1550 = vld [vmem:[%s55 + $0x74] sm:$0xf]
    %v1551 = vld [vmem:[%s55 + $0x78] sm:$0xf]
    %v1552 = vld [vmem:[%s55 + $0x7c] sm:$0xf]
    %v1553 = vld [vmem:[%s57] sm:$0x1]
    %v1554 = vpack.c.bf16 %v1442, %v1441
    %v1555 = vpack.c.bf16 %v1444, %v1443
    %v1556 = vpack.c.bf16 %v1446, %v1445
    %v1558 = vlaneseq
    %v1559 = vshrl.u32 %v1558, 7
    %v1560 = vsub.s32 0, %v1559
    %v1561 = vrot.slane %v1486, %v1560
    %v1562 = vlaneseq
    %v1563 = vshrl.u32 %v1562, 7
    %v1564 = vsub.s32 1, %v1563
    %v1565 = vrot.slane %v1486, %v1564
    %v1566 = vlaneseq
    %v1567 = vshrl.u32 %v1566, 7
    %v1568 = vsub.s32 2, %v1567
    %v1569 = vrot.slane %v1486, %v1568
    %v1605 = vunpack.c.l.b16 %v1454
    %v1606 = vunpack.c.h.b16 %v1454
    %v1607 = vunpack.c.l.b16 %v1455
    %v1608 = vunpack.c.l.b16 %v1456
    %v1609 = vunpack.c.h.b16 %v1456
    %v1610 = vunpack.c.l.b16 %v1457
    %v1611 = vunpack.c.l.b16 %v1458
    %v1612 = vunpack.c.h.b16 %v1458
    %v1613 = vunpack.c.l.b16 %v1459
    %v1614 = vunpack.c.l.b16 %v1460
    %v1615 = vunpack.c.h.b16 %v1460
    %v1616 = vunpack.c.l.b16 %v1461
    %v1617 = vunpack.c.l.b16 %v1462
    %v1618 = vunpack.c.h.b16 %v1462
    %v1619 = vunpack.c.l.b16 %v1463
    %v1620 = vunpack.c.l.b16 %v1464
    %v1621 = vunpack.c.h.b16 %v1464
    %v1622 = vunpack.c.l.b16 %v1465
    %v1623 = vunpack.c.l.b16 %v1466
    %v1624 = vunpack.c.h.b16 %v1466
    %v1625 = vunpack.c.l.b16 %v1467
    %v1626 = vunpack.c.l.b16 %v1468
    %v1627 = vunpack.c.h.b16 %v1468
    %v1628 = vunpack.c.l.b16 %v1469
    %v1629 = vunpack.c.l.b16 %v1470
    %v1630 = vunpack.c.h.b16 %v1470
    %v1631 = vunpack.c.l.b16 %v1471
    %v1632 = vunpack.c.l.b16 %v1472
    %v1633 = vunpack.c.h.b16 %v1472
    %v1634 = vunpack.c.l.b16 %v1473
    %v1635 = vunpack.c.l.b16 %v1474
    %v1636 = vunpack.c.h.b16 %v1474
    %v1637 = vunpack.c.l.b16 %v1475
    %v1638 = vunpack.c.l.b16 %v1476
    %v1639 = vunpack.c.h.b16 %v1476
    %v1640 = vunpack.c.l.b16 %v1477
    %v1641 = vunpack.c.l.b16 %v1478
    %v1642 = vunpack.c.h.b16 %v1478
    %v1643 = vunpack.c.l.b16 %v1479
    %v1644 = vunpack.c.l.b16 %v1480
    %v1645 = vunpack.c.h.b16 %v1480
    %v1646 = vunpack.c.l.b16 %v1481
    %v1647 = vunpack.c.l.b16 %v1482
    %v1648 = vunpack.c.h.b16 %v1482
    %v1649 = vunpack.c.l.b16 %v1483
    %v1650 = vunpack.c.l.b16 %v1484
    %v1651 = vunpack.c.h.b16 %v1484
    %v1652 = vunpack.c.l.b16 %v1485
    %v1653 = vpack.c.b16 %v1608, %v1605
    %v1654 = vpack.c.b16 %v1609, %v1606
    %v1655 = vpack.c.b16 %v1610, %v1607
    %v1656 = vpack.c.b16 %v1614, %v1611
    %v1657 = vpack.c.b16 %v1615, %v1612
    %v1658 = vpack.c.b16 %v1616, %v1613
    %v1659 = vpack.c.b16 %v1620, %v1617
    %v1660 = vpack.c.b16 %v1621, %v1618
    %v1661 = vpack.c.b16 %v1622, %v1619
    %v1662 = vpack.c.b16 %v1626, %v1623
    %v1663 = vpack.c.b16 %v1627, %v1624
    %v1664 = vpack.c.b16 %v1628, %v1625
    %v1665 = vpack.c.b16 %v1632, %v1629
    %v1666 = vpack.c.b16 %v1633, %v1630
    %v1667 = vpack.c.b16 %v1634, %v1631
    %v1668 = vpack.c.b16 %v1638, %v1635
    %v1669 = vpack.c.b16 %v1639, %v1636
    %v1670 = vpack.c.b16 %v1640, %v1637
    %v1671 = vpack.c.b16 %v1644, %v1641
    %v1672 = vpack.c.b16 %v1645, %v1642
    %v1673 = vpack.c.b16 %v1646, %v1643
    %v1674 = vpack.c.b16 %v1650, %v1647
    %v1675 = vpack.c.b16 %v1651, %v1648
    %v1676 = vpack.c.b16 %v1652, %v1649
    %1701 = vmatprep.subr.bf16.mxu0 %v1654
    %1702 = vmatpush1.bf16.msra.mxu0 %v1653
    %1703 = vmatprep.subr.bf16.mxu0 %v1657
    %1704 = vmatpush1.bf16.msra.mxu0 %v1656
    %1705 = vmatprep.subr.bf16.mxu0 %v1660
    %1706 = vmatpush1.bf16.msra.mxu0 %v1659
    %1707 = vmatprep.subr.bf16.mxu0 %v1663
    %1708 = vmatpush1.bf16.msra.mxu0 %v1662
    %1709 = vmatprep.subr.bf16.mxu0 %v1666
    %1710 = vmatpush1.bf16.msra.mxu0 %v1665
    %1711 = vmatprep.subr.bf16.mxu0 %v1669
    %1712 = vmatpush1.bf16.msra.mxu0 %v1668
    %1713 = vmatprep.subr.bf16.mxu0 %v1672
    %1714 = vmatpush1.bf16.msra.mxu0 %v1671
    %1715 = vmatprep.subr.bf16.mxu0 %v1675
    %1716 = vmatpush1.bf16.msra.mxu0 %v1674
    %1717 = vmatprep.subr.bf16.mxu0 0
    %1718 = vmatpush1.bf16.msra.mxu0 0
    %1719 = vmatprep.subr.bf16.mxu0 0
    %1720 = vmatpush1.bf16.msra.mxu0 0
    %1721 = vmatprep.subr.bf16.mxu0 0
    %1722 = vmatpush1.bf16.msra.mxu0 0
    %1723 = vmatprep.subr.bf16.mxu0 0
    %1724 = vmatpush1.bf16.msra.mxu0 0
    %1725 = vmatprep.subr.bf16.mxu0 0
    %1726 = vmatpush1.bf16.msra.mxu0 0
    %1727 = vmatprep.subr.bf16.mxu0 0
    %1728 = vmatpush1.bf16.msra.mxu0 0
    %1729 = vmatprep.subr.bf16.mxu0 0
    %1730 = vmatpush1.bf16.msra.mxu0 0
    %1731 = vmatprep.subr.bf16.mxu0 0
    %1732 = vmatpush1.bf16.msra.mxu0 0
    %1733 = vmatprep.mubr.bf16.mxu0 0
    %1734 = vmatmul.mubr.bf16.gmra.mrb[0].mxu0 %v1554
    %v1735 = vpop.f32.mrb[0].mxu0
    %v1736 = vadd.f32 %v1561, %v1735
    %v1737 = vpop.f32.mrb[0].mxu0
    %v1738 = vadd.f32 %v1565, %v1737
    %v1739 = vpop.f32.mrb[0].mxu0
    %v1740 = vadd.f32 %v1561, %v1739
    %v1741 = vpop.f32.mrb[0].mxu0
    %v1742 = vadd.f32 %v1565, %v1741
    %1743 = vmatprep.mubr.bf16.mxu0 0
    %1744 = vmatmul.mubr.bf16.gmra.mrb[0].mxu0 %v1555
    %v1745 = vpop.f32.mrb[0].mxu0
    %v1746 = vadd.f32 %v1561, %v1745
    %v1747 = vpop.f32.mrb[0].mxu0
    %v1748 = vadd.f32 %v1565, %v1747
    %v1749 = vpop.f32.mrb[0].mxu0
    %v1750 = vadd.f32 %v1561, %v1749
    %v1751 = vpop.f32.mrb[0].mxu0
    %v1752 = vadd.f32 %v1565, %v1751
    %1753 = vmatprep.mubr.bf16.mxu0 0
    %1754 = vmatmul.mubr.bf16.gmra.mrb[0].mxu0 %v1556
    %v1755 = vpop.f32.mrb[0].mxu0
    %v1756 = vadd.f32 %v1561, %v1755
    %v1757 = vpop.f32.mrb[0].mxu0
    %v1758 = vadd.f32 %v1565, %v1757
    %v1759 = vpop.f32.mrb[0].mxu0
    %v1760 = vadd.f32 %v1561, %v1759
    %v1761 = vpop.f32.mrb[0].mxu0
    %v1762 = vadd.f32 %v1565, %v1761
    %1763 = vdwg.mxu0
    %1764 = vmatprep.subr.bf16.mxu0 0
    %1765 = vmatpush1.bf16.msra.mxu0 %v1655
    %1766 = vmatprep.subr.bf16.mxu0 0
    %1767 = vmatpush1.bf16.msra.mxu0 %v1658
    %1768 = vmatprep.subr.bf16.mxu0 0
    %1769 = vmatpush1.bf16.msra.mxu0 %v1661
    %1770 = vmatprep.subr.bf16.mxu0 0
    %1771 = vmatpush1.bf16.msra.mxu0 %v1664
    %1772 = vmatprep.subr.bf16.mxu0 0
    %1773 = vmatpush1.bf16.msra.mxu0 %v1667
    %1774 = vmatprep.subr.bf16.mxu0 0
    %1775 = vmatpush1.bf16.msra.mxu0 %v1670
    %1776 = vmatprep.subr.bf16.mxu0 0
    %1777 = vmatpush1.bf16.msra.mxu0 %v1673
    %1778 = vmatprep.subr.bf16.mxu0 0
    %1779 = vmatpush1.bf16.msra.mxu0 %v1676
    %1780 = vmatprep.subr.bf16.mxu0 0
    %1781 = vmatpush1.bf16.msra.mxu0 0
    %1782 = vmatprep.subr.bf16.mxu0 0
    %1783 = vmatpush1.bf16.msra.mxu0 0
    %1784 = vmatprep.subr.bf16.mxu0 0
    %1785 = vmatpush1.bf16.msra.mxu0 0
    %1786 = vmatprep.subr.bf16.mxu0 0
    %1787 = vmatpush1.bf16.msra.mxu0 0
    %1788 = vmatprep.subr.bf16.mxu0 0
    %1789 = vmatpush1.bf16.msra.mxu0 0
    %1790 = vmatprep.subr.bf16.mxu0 0
    %1791 = vmatpush1.bf16.msra.mxu0 0
    %1792 = vmatprep.subr.bf16.mxu0 0
    %1793 = vmatpush1.bf16.msra.mxu0 0
    %1794 = vmatprep.subr.bf16.mxu0 0
    %1795 = vmatpush1.bf16.msra.mxu0 0
    %1796 = vmatprep.mubr.bf16.mxu0 0
    %1797 = vmatmul.mubr.bf16.gmra.mrb[0].mxu0 %v1554
    %v1798 = vpop.f32.mrb[0].mxu0
    %v1799 = vadd.f32 %v1569, %v1798
    %v1800 = vpop.f32.mrb[0].mxu0
    %v1801 = vpop.f32.mrb[0].mxu0
    %v1802 = vadd.f32 %v1569, %v1801
    %v1803 = vpop.f32.mrb[0].mxu0
    %1804 = vmatprep.mubr.bf16.mxu0 0
    %1805 = vmatmul.mubr.bf16.gmra.mrb[0].mxu0 %v1555
    %v1806 = vpop.f32.mrb[0].mxu0
    %v1807 = vadd.f32 %v1569, %v1806
    %v1808 = vpop.f32.mrb[0].mxu0
    %v1809 = vpop.f32.mrb[0].mxu0
    %v1810 = vadd.f32 %v1569, %v1809
    %v1811 = vpop.f32.mrb[0].mxu0
    %1812 = vmatprep.mubr.bf16.mxu0 0
    %1813 = vmatmul.mubr.bf16.gmra.mrb[0].mxu0 %v1556
    %v1814 = vpop.f32.mrb[0].mxu0
    %v1815 = vadd.f32 %v1569, %v1814
    %v1816 = vpop.f32.mrb[0].mxu0
    %v1817 = vpop.f32.mrb[0].mxu0
    %v1818 = vadd.f32 %v1569, %v1817
    %v1819 = vpop.f32.mrb[0].mxu0
    %1820 = vdwg.mxu0
    %v1821 = vpack.c.bf16 %v1740, %v1736
    %v1822 = vpack.c.bf16 %v1750, %v1746
    %v1823 = vpack.c.bf16 %v1760, %v1756
    %v1824 = vpack.c.bf16 %v1742, %v1738
    %v1825 = vpack.c.bf16 %v1752, %v1748
    %v1826 = vpack.c.bf16 %v1762, %v1758
    %v1827 = vpack.c.bf16 %v1802, %v1799
    %v1828 = vpack.c.bf16 %v1810, %v1807
    %v1829 = vpack.c.bf16 %v1818, %v1815
    %1830 = vmatprep.subr.bf16.mxu0 0
    %1831 = vmatpush1.bf16.xpose.msra.mxu0 %v1824
    %1832 = vmatprep.subr.bf16.mxu0 0
    %1833 = vmatpush1.bf16.xpose.msra.mxu0 %v1825
    %1834 = vmatprep.subr.bf16.mxu0 0
    %1835 = vmatpush1.bf16.xpose.msra.mxu0 %v1826
    %1836 = vmatprep.subr.bf16.mxu0 0
    %1837 = vmatpush1.bf16.xpose.msra.mxu0 0
    %1838 = vmatprep.subr.bf16.mxu0 0
    %1839 = vmatpush1.bf16.xpose.msra.mxu0 0
    %1840 = vmatprep.subr.bf16.mxu0 0
    %1841 = vmatpush1.bf16.xpose.msra.mxu0 0
    %1842 = vmatprep.subr.bf16.mxu0 0
    %1843 = vmatpush1.bf16.xpose.msra.mxu0 0
    %1844 = vmatprep.subr.bf16.mxu0 0
    %1845 = vmatpush1.bf16.xpose.msra.mxu0 0
    %1846 = vmatprep.subr.bf16.mxu0 0
    %1847 = vmatpush1.bf16.xpose.msra.mxu0 0
    %1848 = vmatprep.subr.bf16.mxu0 0
    %1849 = vmatpush1.bf16.xpose.msra.mxu0 0
    %1850 = vmatprep.subr.bf16.mxu0 0
    %1851 = vmatpush1.bf16.xpose.msra.mxu0 0
    %1852 = vmatprep.subr.bf16.mxu0 0
    %1853 = vmatpush1.bf16.xpose.msra.mxu0 0
    %1854 = vmatprep.subr.bf16.mxu0 0
    %1855 = vmatpush1.bf16.xpose.msra.mxu0 0
    %1856 = vmatprep.subr.bf16.mxu0 0
    %1857 = vmatpush1.bf16.xpose.msra.mxu0 0
    %1858 = vmatprep.subr.bf16.mxu0 0
    %1859 = vmatpush1.bf16.xpose.msra.mxu0 0
    %1860 = vmatprep.subr.bf16.mxu0 0
    %1861 = vmatpush1.bf16.xpose.msra.mxu0 0
    %1862 = vmatprep.mubr.bf16.mxu0 0
    %1863 = vmatmul.mubr.bf16.gmra.mrb[0].mxu0 %v1821
    %v1864 = vpop.f32.mrb[0].mxu0
    %v1865 = vadd.f32 0.0, %v1864
    %v1866 = vpop.f32.mrb[0].mxu0
    %v1867 = vpop.f32.mrb[0].mxu0
    %v1868 = vadd.f32 0.0, %v1867
    %v1869 = vpop.f32.mrb[0].mxu0
    %1870 = vmatprep.mubr.bf16.mxu0 0
    %1871 = vmatmul.mubr.bf16.gmra.mrb[0].mxu0 %v1822
    %v1872 = vpop.f32.mrb[0].mxu0
    %v1873 = vadd.f32 0.0, %v1872
    %v1874 = vpop.f32.mrb[0].mxu0
    %v1875 = vpop.f32.mrb[0].mxu0
    %v1876 = vadd.f32 0.0, %v1875
    %v1877 = vpop.f32.mrb[0].mxu0
    %1878 = vmatprep.mubr.bf16.mxu0 0
    %1879 = vmatmul.mubr.bf16.gmra.mrb[0].mxu0 %v1823
    %v1880 = vpop.f32.mrb[0].mxu0
    %v1881 = vadd.f32 0.0, %v1880
    %v1882 = vpop.f32.mrb[0].mxu0
    %v1883 = vpop.f32.mrb[0].mxu0
    %v1884 = vadd.f32 0.0, %v1883
    %v1885 = vpop.f32.mrb[0].mxu0
    %1886 = vdwg.mxu0
    %v1887 = vmul.f32 %v1865, 0.088388346
    %v1888 = vmul.f32 %v1868, 0.088388346
    %v1889 = vmul.f32 %v1873, 0.088388346
    %v1890 = vmul.f32 %v1876, 0.088388346
    %v1891 = vmul.f32 %v1881, 0.088388346
    %v1892 = vmul.f32 %v1884, 0.088388346
    %1893 = vset.pattern.permute.xlu0 0
    %1894 = vperm.xlu0 %1893, %v1447
    %v1895 = vpop.permute.xlu0 %1894
    %1896 = vset.pattern.permute.xlu0 0
    %1897 = vperm.xlu0 %1896, %v1448
    %v1898 = vpop.permute.xlu0 %1897
    %1899 = vset.pattern.permute.xlu0 0
    %1900 = vperm.xlu0 %1899, %v1449
    %v1901 = vpop.permute.xlu0 %1900
    %1902 = vset.pattern.permute.xlu0 0
    %1903 = vperm.xlu0 %1902, %v1450
    %v1904 = vpop.permute.xlu0 %1903
    %1905 = vset.pattern.permute.xlu0 0
    %1906 = vperm.xlu0 %1905, %v1451
    %v1907 = vpop.permute.xlu0 %1906
    %1908 = vset.pattern.permute.xlu0 0
    %1909 = vperm.xlu0 %1908, %v1452
    %v1910 = vpop.permute.xlu0 %1909
    %v1911 = vlaneseq
    %v1912 = vshrl.u32 %v1911, 7
    %v1913 = vsub.s32 0, %v1912
    %v1914 = vrot.slane %v1453, %v1913
    %vm1915 = vcmp.eq.s32.totalorder %v1895, %v1914
    %vm1916 = vcmp.eq.s32.totalorder %v1898, %v1914
    %vm1917 = vcmp.eq.s32.totalorder %v1901, %v1914
    %vm1918 = vcmp.eq.s32.totalorder %v1904, %v1914
    %vm1919 = vcmp.eq.s32.totalorder %v1907, %v1914
    %vm1920 = vcmp.eq.s32.totalorder %v1910, %v1914
    %v1921 = vlaneseq
    %v1922 = vshrl.u32 %v1921, 7
    %v1923 = vadd.s32 %v1922, 8
    %v1924 = vadd.s32 %v1922, 16
    %v1925 = vadd.s32 %v1922, 24
    %v1926 = vadd.s32 %v1922, 32
    %v1927 = vadd.s32 %v1922, 40
    %vm1928 = vcmp.ge.s32.totalorder %v1922, %v155
    %vm1929 = vcmp.ge.s32.totalorder %v1923, %v155
    %vm1930 = vcmp.ge.s32.totalorder %v1924, %v155
    %vm1931 = vcmp.ge.s32.totalorder %v1925, %v155
    %vm1932 = vcmp.ge.s32.totalorder %v1926, %v155
    %vm1933 = vcmp.ge.s32.totalorder %v1927, %v155
    %vm1934 = vmand %vm1915, %vm1928
    %vm1935 = vmand %vm1916, %vm1929
    %vm1936 = vmand %vm1917, %vm1930
    %vm1937 = vmand %vm1918, %vm1931
    %vm1938 = vmand %vm1919, %vm1932
    %vm1939 = vmand %vm1920, %vm1933
    %v1940 = vsel %vm1934, %v1887, -1e+09
    %v1941 = vsel %vm1935, %v1888, -1e+09
    %v1942 = vsel %vm1936, %v1889, -1e+09
    %v1943 = vsel %vm1937, %v1890, -1e+09
    %v1944 = vsel %vm1938, %v1891, -1e+09
    %v1945 = vsel %vm1939, %v1892, -1e+09
    %vm1946 = vcmask 392192
    %v1947 = vsel %vm1946, %v1940, -inf
    %1948 = vmax.xlane.f32.xlu0 %v1947
    %v1949 = vpop.xlane.xlu0 %1948
    %v1950 = vsel %vm1946, %v1941, -inf
    %1951 = vmax.xlane.f32.xlu0 %v1950
    %v1952 = vpop.xlane.xlu0 %1951
    %v1953 = vsel %vm1946, %v1942, -inf
    %1954 = vmax.xlane.f32.xlu0 %v1953
    %v1955 = vpop.xlane.xlu0 %1954
    %v1956 = vsel %vm1946, %v1943, -inf
    %1957 = vmax.xlane.f32.xlu0 %v1956
    %v1958 = vpop.xlane.xlu0 %1957
    %v1959 = vsel %vm1946, %v1944, -inf
    %1960 = vmax.xlane.f32.xlu0 %v1959
    %v1961 = vpop.xlane.xlu0 %1960
    %v1962 = vsel %vm1946, %v1945, -inf
    %1963 = vmax.xlane.f32.xlu0 %v1962
    %v1964 = vpop.xlane.xlu0 %1963
    %v1965 = vsub.f32 %v1940, %v1949
    %v1966 = vsub.f32 %v1941, %v1952
    %v1967 = vsub.f32 %v1942, %v1955
    %v1968 = vsub.f32 %v1943, %v1958
    %v1969 = vsub.f32 %v1944, %v1961
    %v1970 = vsub.f32 %v1945, %v1964
    %v1971 = vmul.f32 %v1965, 1.442695
    %v1972 = vpow.pop %v1971
    %v1973 = vmul.f32 %v1966, 1.442695
    %v1974 = vpow.pop %v1973
    %v1975 = vmul.f32 %v1967, 1.442695
    %v1976 = vpow.pop %v1975
    %v1977 = vmul.f32 %v1968, 1.442695
    %v1978 = vpow.pop %v1977
    %v1979 = vmul.f32 %v1969, 1.442695
    %v1980 = vpow.pop %v1979
    %v1981 = vmul.f32 %v1970, 1.442695
    %v1982 = vpow.pop %v1981
    %v1983 = vsel %vm1946, %v1972, 0.0
    %1984 = vadd.xlane.f32.xlu0 %v1983
    %v1985 = vpop.xlane.xlu0 %1984
    %v1986 = vsel %vm1946, %v1974, 0.0
    %1987 = vadd.xlane.f32.xlu0 %v1986
    %v1988 = vpop.xlane.xlu0 %1987
    %v1989 = vsel %vm1946, %v1976, 0.0
    %1990 = vadd.xlane.f32.xlu0 %v1989
    %v1991 = vpop.xlane.xlu0 %1990
    %v1992 = vsel %vm1946, %v1978, 0.0
    %1993 = vadd.xlane.f32.xlu0 %v1992
    %v1994 = vpop.xlane.xlu0 %1993
    %v1995 = vsel %vm1946, %v1980, 0.0
    %1996 = vadd.xlane.f32.xlu0 %v1995
    %v1997 = vpop.xlane.xlu0 %1996
    %v1998 = vsel %vm1946, %v1982, 0.0
    %1999 = vadd.xlane.f32.xlu0 %v1998
    %v2000 = vpop.xlane.xlu0 %1999
    %v2001 = vrcp.pop %v1985
    %v2002 = vrcp.pop %v1988
    %v2003 = vrcp.pop %v1991
    %v2004 = vrcp.pop %v1994
    %v2005 = vrcp.pop %v1997
    %v2006 = vrcp.pop %v2000
    %v2007 = vmul.f32 %v1972, %v2001
    %v2008 = vmul.f32 %v1974, %v2002
    %v2009 = vmul.f32 %v1976, %v2003
    %v2010 = vmul.f32 %v1978, %v2004
    %v2011 = vmul.f32 %v1980, %v2005
    %v2012 = vmul.f32 %v1982, %v2006
    %v2013 = vpack.c.bf16 %v2008, %v2007
    %v2014 = vpack.c.bf16 %v2010, %v2009
    %v2015 = vpack.c.bf16 %v2012, %v2011
    %v2017 = vsel %vm1946, %v2013, 0
    %v2020 = vsel %vm1946, %v2014, 0
    %v2023 = vsel %vm1946, %v2015, 0
    %2025 = vmatprep.subr.bf16.mxu0 0
    %2026 = vmatpush1.bf16.msra.mxu0 %v1827
    %2027 = vmatprep.subr.bf16.mxu0 0
    %2028 = vmatpush1.bf16.msra.mxu0 %v1828
    %2029 = vmatprep.subr.bf16.mxu0 0
    %2030 = vmatpush1.bf16.msra.mxu0 %v1829
    %2031 = vmatprep.subr.bf16.mxu0 0
    %2032 = vmatpush1.bf16.msra.mxu0 0
    %2033 = vmatprep.subr.bf16.mxu0 0
    %2034 = vmatpush1.bf16.msra.mxu0 0
    %2035 = vmatprep.subr.bf16.mxu0 0
    %2036 = vmatpush1.bf16.msra.mxu0 0
    %2037 = vmatprep.subr.bf16.mxu0 0
    %2038 = vmatpush1.bf16.msra.mxu0 0
    %2039 = vmatprep.subr.bf16.mxu0 0
    %2040 = vmatpush1.bf16.msra.mxu0 0
    %2041 = vmatprep.subr.bf16.mxu0 0
    %2042 = vmatpush1.bf16.msra.mxu0 0
    %2043 = vmatprep.subr.bf16.mxu0 0
    %2044 = vmatpush1.bf16.msra.mxu0 0
    %2045 = vmatprep.subr.bf16.mxu0 0
    %2046 = vmatpush1.bf16.msra.mxu0 0
    %2047 = vmatprep.subr.bf16.mxu0 0
    %2048 = vmatpush1.bf16.msra.mxu0 0
    %2049 = vmatprep.subr.bf16.mxu0 0
    %2050 = vmatpush1.bf16.msra.mxu0 0
    %2051 = vmatprep.subr.bf16.mxu0 0
    %2052 = vmatpush1.bf16.msra.mxu0 0
    %2053 = vmatprep.subr.bf16.mxu0 0
    %2054 = vmatpush1.bf16.msra.mxu0 0
    %2055 = vmatprep.subr.bf16.mxu0 0
    %2056 = vmatpush1.bf16.msra.mxu0 0
    %2057 = vmatprep.mubr.bf16.mxu0 0
    %2058 = vmatmul.mubr.bf16.gmra.mrb[0].mxu0 %v2017
    %v2059 = vpop.f32.mrb[0].mxu0
    %v2060 = vadd.f32 0.0, %v2059
    %v2061 = vpop.f32.mrb[0].mxu0
    %v2062 = vpop.f32.mrb[0].mxu0
    %v2063 = vadd.f32 0.0, %v2062
    %v2064 = vpop.f32.mrb[0].mxu0
    %2065 = vmatprep.mubr.bf16.mxu0 0
    %2066 = vmatmul.mubr.bf16.gmra.mrb[0].mxu0 %v2020
    %v2067 = vpop.f32.mrb[0].mxu0
    %v2068 = vadd.f32 0.0, %v2067
    %v2069 = vpop.f32.mrb[0].mxu0
    %v2070 = vpop.f32.mrb[0].mxu0
    %v2071 = vadd.f32 0.0, %v2070
    %v2072 = vpop.f32.mrb[0].mxu0
    %2073 = vmatprep.mubr.bf16.mxu0 0
    %2074 = vmatmul.mubr.bf16.gmra.mrb[0].mxu0 %v2023
    %v2075 = vpop.f32.mrb[0].mxu0
    %v2076 = vadd.f32 0.0, %v2075
    %v2077 = vpop.f32.mrb[0].mxu0
    %v2078 = vpop.f32.mrb[0].mxu0
    %v2079 = vadd.f32 0.0, %v2078
    %v2080 = vpop.f32.mrb[0].mxu0
    %2081 = vdwg.mxu0
    %v2082 = vpack.c.bf16 %v2063, %v2060
    %v2083 = vpack.c.bf16 %v2071, %v2068
    %v2084 = vpack.c.bf16 %v2079, %v2076
    %v2086 = vlaneseq
    %v2087 = vshrl.u32 %v2086, 7
    %v2088 = vsub.s32 0, %v2087
    %v2089 = vrot.slane %v1503, %v2088
    %v2107 = vunpack.c.l.b16 %v1487
    %v2108 = vunpack.c.l.b16 %v1488
    %v2109 = vunpack.c.l.b16 %v1489
    %v2110 = vunpack.c.l.b16 %v1490
    %v2111 = vunpack.c.l.b16 %v1491
    %v2112 = vunpack.c.l.b16 %v1492
    %v2113 = vunpack.c.l.b16 %v1493
    %v2114 = vunpack.c.l.b16 %v1494
    %v2115 = vunpack.c.l.b16 %v1495
    %v2116 = vunpack.c.l.b16 %v1496
    %v2117 = vunpack.c.l.b16 %v1497
    %v2118 = vunpack.c.l.b16 %v1498
    %v2119 = vunpack.c.l.b16 %v1499
    %v2120 = vunpack.c.l.b16 %v1500
    %v2121 = vunpack.c.l.b16 %v1501
    %v2122 = vunpack.c.l.b16 %v1502
    %v2123 = vpack.c.b16 %v2108, %v2107
    %v2124 = vpack.c.b16 %v2110, %v2109
    %v2125 = vpack.c.b16 %v2112, %v2111
    %v2126 = vpack.c.b16 %v2114, %v2113
    %v2127 = vpack.c.b16 %v2116, %v2115
    %v2128 = vpack.c.b16 %v2118, %v2117
    %v2129 = vpack.c.b16 %v2120, %v2119
    %v2130 = vpack.c.b16 %v2122, %v2121
    %2139 = vmatprep.subr.bf16.mxu0 0
    %2140 = vmatpush1.bf16.msra.mxu0 %v2123
    %2141 = vmatprep.subr.bf16.mxu0 0
    %2142 = vmatpush1.bf16.msra.mxu0 %v2124
    %2143 = vmatprep.subr.bf16.mxu0 0
    %2144 = vmatpush1.bf16.msra.mxu0 %v2125
    %2145 = vmatprep.subr.bf16.mxu0 0
    %2146 = vmatpush1.bf16.msra.mxu0 %v2126
    %2147 = vmatprep.subr.bf16.mxu0 0
    %2148 = vmatpush1.bf16.msra.mxu0 %v2127
    %2149 = vmatprep.subr.bf16.mxu0 0
    %2150 = vmatpush1.bf16.msra.mxu0 %v2128
    %2151 = vmatprep.subr.bf16.mxu0 0
    %2152 = vmatpush1.bf16.msra.mxu0 %v2129
    %2153 = vmatprep.subr.bf16.mxu0 0
    %2154 = vmatpush1.bf16.msra.mxu0 %v2130
    %2155 = vmatprep.subr.bf16.mxu0 0
    %2156 = vmatpush1.bf16.msra.mxu0 0
    %2157 = vmatprep.subr.bf16.mxu0 0
    %2158 = vmatpush1.bf16.msra.mxu0 0
    %2159 = vmatprep.subr.bf16.mxu0 0
    %2160 = vmatpush1.bf16.msra.mxu0 0
    %2161 = vmatprep.subr.bf16.mxu0 0
    %2162 = vmatpush1.bf16.msra.mxu0 0
    %2163 = vmatprep.subr.bf16.mxu0 0
    %2164 = vmatpush1.bf16.msra.mxu0 0
    %2165 = vmatprep.subr.bf16.mxu0 0
    %2166 = vmatpush1.bf16.msra.mxu0 0
    %2167 = vmatprep.subr.bf16.mxu0 0
    %2168 = vmatpush1.bf16.msra.mxu0 0
    %2169 = vmatprep.subr.bf16.mxu0 0
    %2170 = vmatpush1.bf16.msra.mxu0 0
    %2171 = vmatprep.mubr.bf16.mxu0 0
    %2172 = vmatmul.mubr.bf16.gmra.mrb[0].mxu0 %v2082
    %v2173 = vpop.f32.mrb[0].mxu0
    %v2174 = vadd.f32 %v2089, %v2173
    %v2175 = vpop.f32.mrb[0].mxu0
    %v2176 = vpop.f32.mrb[0].mxu0
    %v2177 = vadd.f32 %v2089, %v2176
    %v2178 = vpop.f32.mrb[0].mxu0
    %2179 = vmatprep.mubr.bf16.mxu0 0
    %2180 = vmatmul.mubr.bf16.gmra.mrb[0].mxu0 %v2083
    %v2181 = vpop.f32.mrb[0].mxu0
    %v2182 = vadd.f32 %v2089, %v2181
    %v2183 = vpop.f32.mrb[0].mxu0
    %v2184 = vpop.f32.mrb[0].mxu0
    %v2185 = vadd.f32 %v2089, %v2184
    %v2186 = vpop.f32.mrb[0].mxu0
    %2187 = vmatprep.mubr.bf16.mxu0 0
    %2188 = vmatmul.mubr.bf16.gmra.mrb[0].mxu0 %v2084
    %v2189 = vpop.f32.mrb[0].mxu0
    %v2190 = vadd.f32 %v2089, %v2189
    %v2191 = vpop.f32.mrb[0].mxu0
    %v2192 = vpop.f32.mrb[0].mxu0
    %v2193 = vadd.f32 %v2089, %v2192
    %v2194 = vpop.f32.mrb[0].mxu0
    %2195 = vdwg.mxu0
    %v2196 = vadd.f32 %v1441, %v2174
    %v2197 = vadd.f32 %v1442, %v2177
    %v2198 = vadd.f32 %v1443, %v2182
    %v2199 = vadd.f32 %v1444, %v2185
    %v2200 = vadd.f32 %v1445, %v2190
    %v2201 = vadd.f32 %v1446, %v2193
    %v2202 = vpack.c.bf16 %v2197, %v2196
    %v2203 = vpack.c.bf16 %v2199, %v2198
    %v2204 = vpack.c.bf16 %v2201, %v2200
    %v2206 = vlaneseq
    %v2207 = vshrl.u32 %v2206, 7
    %v2208 = vsub.s32 0, %v2207
    %v2209 = vrot.slane %v1520, %v2208
    %v2210 = vlaneseq
    %v2211 = vshrl.u32 %v2210, 7
    %v2212 = vsub.s32 1, %v2211
    %v2213 = vrot.slane %v1520, %v2212
    %v2232 = vunpack.c.l.b16 %v1504
    %v2233 = vunpack.c.h.b16 %v1504
    %v2234 = vunpack.c.l.b16 %v1505
    %v2235 = vunpack.c.h.b16 %v1505
    %v2236 = vunpack.c.l.b16 %v1506
    %v2237 = vunpack.c.h.b16 %v1506
    %v2238 = vunpack.c.l.b16 %v1507
    %v2239 = vunpack.c.h.b16 %v1507
    %v2240 = vunpack.c.l.b16 %v1508
    %v2241 = vunpack.c.h.b16 %v1508
    %v2242 = vunpack.c.l.b16 %v1509
    %v2243 = vunpack.c.h.b16 %v1509
    %v2244 = vunpack.c.l.b16 %v1510
    %v2245 = vunpack.c.h.b16 %v1510
    %v2246 = vunpack.c.l.b16 %v1511
    %v2247 = vunpack.c.h.b16 %v1511
    %v2248 = vunpack.c.l.b16 %v1512
    %v2249 = vunpack.c.h.b16 %v1512
    %v2250 = vunpack.c.l.b16 %v1513
    %v2251 = vunpack.c.h.b16 %v1513
    %v2252 = vunpack.c.l.b16 %v1514
    %v2253 = vunpack.c.h.b16 %v1514
    %v2254 = vunpack.c.l.b16 %v1515
    %v2255 = vunpack.c.h.b16 %v1515
    %v2256 = vunpack.c.l.b16 %v1516
    %v2257 = vunpack.c.h.b16 %v1516
    %v2258 = vunpack.c.l.b16 %v1517
    %v2259 = vunpack.c.h.b16 %v1517
    %v2260 = vunpack.c.l.b16 %v1518
    %v2261 = vunpack.c.h.b16 %v1518
    %v2262 = vunpack.c.l.b16 %v1519
    %v2263 = vunpack.c.h.b16 %v1519
    %v2264 = vpack.c.b16 %v2234, %v2232
    %v2265 = vpack.c.b16 %v2235, %v2233
    %v2266 = vpack.c.b16 %v2238, %v2236
    %v2267 = vpack.c.b16 %v2239, %v2237
    %v2268 = vpack.c.b16 %v2242, %v2240
    %v2269 = vpack.c.b16 %v2243, %v2241
    %v2270 = vpack.c.b16 %v2246, %v2244
    %v2271 = vpack.c.b16 %v2247, %v2245
    %v2272 = vpack.c.b16 %v2250, %v2248
    %v2273 = vpack.c.b16 %v2251, %v2249
    %v2274 = vpack.c.b16 %v2254, %v2252
    %v2275 = vpack.c.b16 %v2255, %v2253
    %v2276 = vpack.c.b16 %v2258, %v2256
    %v2277 = vpack.c.b16 %v2259, %v2257
    %v2278 = vpack.c.b16 %v2262, %v2260
    %v2279 = vpack.c.b16 %v2263, %v2261
    %2296 = vmatprep.subr.bf16.mxu0 %v2265
    %2297 = vmatpush1.bf16.msra.mxu0 %v2264
    %2298 = vmatprep.subr.bf16.mxu0 %v2267
    %2299 = vmatpush1.bf16.msra.mxu0 %v2266
    %2300 = vmatprep.subr.bf16.mxu0 %v2269
    %2301 = vmatpush1.bf16.msra.mxu0 %v2268
    %2302 = vmatprep.subr.bf16.mxu0 %v2271
    %2303 = vmatpush1.bf16.msra.mxu0 %v2270
    %2304 = vmatprep.subr.bf16.mxu0 %v2273
    %2305 = vmatpush1.bf16.msra.mxu0 %v2272
    %2306 = vmatprep.subr.bf16.mxu0 %v2275
    %2307 = vmatpush1.bf16.msra.mxu0 %v2274
    %2308 = vmatprep.subr.bf16.mxu0 %v2277
    %2309 = vmatpush1.bf16.msra.mxu0 %v2276
    %2310 = vmatprep.subr.bf16.mxu0 %v2279
    %2311 = vmatpush1.bf16.msra.mxu0 %v2278
    %2312 = vmatprep.subr.bf16.mxu0 0
    %2313 = vmatpush1.bf16.msra.mxu0 0
    %2314 = vmatprep.subr.bf16.mxu0 0
    %2315 = vmatpush1.bf16.msra.mxu0 0
    %2316 = vmatprep.subr.bf16.mxu0 0
    %2317 = vmatpush1.bf16.msra.mxu0 0
    %2318 = vmatprep.subr.bf16.mxu0 0
    %2319 = vmatpush1.bf16.msra.mxu0 0
    %2320 = vmatprep.subr.bf16.mxu0 0
    %2321 = vmatpush1.bf16.msra.mxu0 0
    %2322 = vmatprep.subr.bf16.mxu0 0
    %2323 = vmatpush1.bf16.msra.mxu0 0
    %2324 = vmatprep.subr.bf16.mxu0 0
    %2325 = vmatpush1.bf16.msra.mxu0 0
    %2326 = vmatprep.subr.bf16.mxu0 0
    %2327 = vmatpush1.bf16.msra.mxu0 0
    %2328 = vmatprep.mubr.bf16.mxu0 0
    %2329 = vmatmul.mubr.bf16.gmra.mrb[0].mxu0 %v2202
    %v2330 = vpop.f32.mrb[0].mxu0
    %v2331 = vadd.f32 %v2209, %v2330
    %v2332 = vpop.f32.mrb[0].mxu0
    %v2333 = vadd.f32 %v2213, %v2332
    %v2334 = vpop.f32.mrb[0].mxu0
    %v2335 = vadd.f32 %v2209, %v2334
    %v2336 = vpop.f32.mrb[0].mxu0
    %v2337 = vadd.f32 %v2213, %v2336
    %2338 = vmatprep.mubr.bf16.mxu0 0
    %2339 = vmatmul.mubr.bf16.gmra.mrb[0].mxu0 %v2203
    %v2340 = vpop.f32.mrb[0].mxu0
    %v2341 = vadd.f32 %v2209, %v2340
    %v2342 = vpop.f32.mrb[0].mxu0
    %v2343 = vadd.f32 %v2213, %v2342
    %v2344 = vpop.f32.mrb[0].mxu0
    %v2345 = vadd.f32 %v2209, %v2344
    %v2346 = vpop.f32.mrb[0].mxu0
    %v2347 = vadd.f32 %v2213, %v2346
    %2348 = vmatprep.mubr.bf16.mxu0 0
    %2349 = vmatmul.mubr.bf16.gmra.mrb[0].mxu0 %v2204
    %v2350 = vpop.f32.mrb[0].mxu0
    %v2351 = vadd.f32 %v2209, %v2350
    %v2352 = vpop.f32.mrb[0].mxu0
    %v2353 = vadd.f32 %v2213, %v2352
    %v2354 = vpop.f32.mrb[0].mxu0
    %v2355 = vadd.f32 %v2209, %v2354
    %v2356 = vpop.f32.mrb[0].mxu0
    %v2357 = vadd.f32 %v2213, %v2356
    %2358 = vdwg.mxu0
    %v2359 = vmul.f32 %v2331, %v2331
    %v2360 = vmul.f32 %v2333, %v2333
    %v2361 = vmul.f32 %v2335, %v2335
    %v2362 = vmul.f32 %v2337, %v2337
    %v2363 = vmul.f32 %v2341, %v2341
    %v2364 = vmul.f32 %v2343, %v2343
    %v2365 = vmul.f32 %v2345, %v2345
    %v2366 = vmul.f32 %v2347, %v2347
    %v2367 = vmul.f32 %v2351, %v2351
    %v2368 = vmul.f32 %v2353, %v2353
    %v2369 = vmul.f32 %v2355, %v2355
    %v2370 = vmul.f32 %v2357, %v2357
    %v2371 = vmul.f32 %v2331, %v2359
    %v2372 = vmul.f32 %v2333, %v2360
    %v2373 = vmul.f32 %v2335, %v2361
    %v2374 = vmul.f32 %v2337, %v2362
    %v2375 = vmul.f32 %v2341, %v2363
    %v2376 = vmul.f32 %v2343, %v2364
    %v2377 = vmul.f32 %v2345, %v2365
    %v2378 = vmul.f32 %v2347, %v2366
    %v2379 = vmul.f32 %v2351, %v2367
    %v2380 = vmul.f32 %v2353, %v2368
    %v2381 = vmul.f32 %v2355, %v2369
    %v2382 = vmul.f32 %v2357, %v2370
    %v2383 = vmul.f32 %v2371, 0.044715
    %v2384 = vmul.f32 %v2372, 0.044715
    %v2385 = vmul.f32 %v2373, 0.044715
    %v2386 = vmul.f32 %v2374, 0.044715
    %v2387 = vmul.f32 %v2375, 0.044715
    %v2388 = vmul.f32 %v2376, 0.044715
    %v2389 = vmul.f32 %v2377, 0.044715
    %v2390 = vmul.f32 %v2378, 0.044715
    %v2391 = vmul.f32 %v2379, 0.044715
    %v2392 = vmul.f32 %v2380, 0.044715
    %v2393 = vmul.f32 %v2381, 0.044715
    %v2394 = vmul.f32 %v2382, 0.044715
    %v2395 = vadd.f32 %v2331, %v2383
    %v2396 = vadd.f32 %v2333, %v2384
    %v2397 = vadd.f32 %v2335, %v2385
    %v2398 = vadd.f32 %v2337, %v2386
    %v2399 = vadd.f32 %v2341, %v2387
    %v2400 = vadd.f32 %v2343, %v2388
    %v2401 = vadd.f32 %v2345, %v2389
    %v2402 = vadd.f32 %v2347, %v2390
    %v2403 = vadd.f32 %v2351, %v2391
    %v2404 = vadd.f32 %v2353, %v2392
    %v2405 = vadd.f32 %v2355, %v2393
    %v2406 = vadd.f32 %v2357, %v2394
    %v2407 = vmul.f32 %v2395, 0.7978846
    %v2408 = vmul.f32 %v2396, 0.7978846
    %v2409 = vmul.f32 %v2397, 0.7978846
    %v2410 = vmul.f32 %v2398, 0.7978846
    %v2411 = vmul.f32 %v2399, 0.7978846
    %v2412 = vmul.f32 %v2400, 0.7978846
    %v2413 = vmul.f32 %v2401, 0.7978846
    %v2414 = vmul.f32 %v2402, 0.7978846
    %v2415 = vmul.f32 %v2403, 0.7978846
    %v2416 = vmul.f32 %v2404, 0.7978846
    %v2417 = vmul.f32 %v2405, 0.7978846
    %v2418 = vmul.f32 %v2406, 0.7978846
    %v2419 = vtanh.pop %v2407
    %v2420 = vtanh.pop %v2408
    %v2421 = vtanh.pop %v2409
    %v2422 = vtanh.pop %v2410
    %v2423 = vtanh.pop %v2411
    %v2424 = vtanh.pop %v2412
    %v2425 = vtanh.pop %v2413
    %v2426 = vtanh.pop %v2414
    %v2427 = vtanh.pop %v2415
    %v2428 = vtanh.pop %v2416
    %v2429 = vtanh.pop %v2417
    %v2430 = vtanh.pop %v2418
    %v2431 = vadd.f32 %v2419, 1.0
    %v2432 = vadd.f32 %v2420, 1.0
    %v2433 = vadd.f32 %v2421, 1.0
    %v2434 = vadd.f32 %v2422, 1.0
    %v2435 = vadd.f32 %v2423, 1.0
    %v2436 = vadd.f32 %v2424, 1.0
    %v2437 = vadd.f32 %v2425, 1.0
    %v2438 = vadd.f32 %v2426, 1.0
    %v2439 = vadd.f32 %v2427, 1.0
    %v2440 = vadd.f32 %v2428, 1.0
    %v2441 = vadd.f32 %v2429, 1.0
    %v2442 = vadd.f32 %v2430, 1.0
    %v2443 = vmul.f32 %v2431, 0.5
    %v2444 = vmul.f32 %v2432, 0.5
    %v2445 = vmul.f32 %v2433, 0.5
    %v2446 = vmul.f32 %v2434, 0.5
    %v2447 = vmul.f32 %v2435, 0.5
    %v2448 = vmul.f32 %v2436, 0.5
    %v2449 = vmul.f32 %v2437, 0.5
    %v2450 = vmul.f32 %v2438, 0.5
    %v2451 = vmul.f32 %v2439, 0.5
    %v2452 = vmul.f32 %v2440, 0.5
    %v2453 = vmul.f32 %v2441, 0.5
    %v2454 = vmul.f32 %v2442, 0.5
    %v2455 = vmul.f32 %v2331, %v2443
    %v2456 = vmul.f32 %v2333, %v2444
    %v2457 = vmul.f32 %v2335, %v2445
    %v2458 = vmul.f32 %v2337, %v2446
    %v2459 = vmul.f32 %v2341, %v2447
    %v2460 = vmul.f32 %v2343, %v2448
    %v2461 = vmul.f32 %v2345, %v2449
    %v2462 = vmul.f32 %v2347, %v2450
    %v2463 = vmul.f32 %v2351, %v2451
    %v2464 = vmul.f32 %v2353, %v2452
    %v2465 = vmul.f32 %v2355, %v2453
    %v2466 = vmul.f32 %v2357, %v2454
    %v2467 = vpack.c.bf16 %v2457, %v2455
    %v2468 = vpack.c.bf16 %v2458, %v2456
    %v2469 = vpack.c.bf16 %v2461, %v2459
    %v2470 = vpack.c.bf16 %v2462, %v2460
    %v2471 = vpack.c.bf16 %v2465, %v2463
    %v2472 = vpack.c.bf16 %v2466, %v2464
    %v2474 = vlaneseq
    %v2475 = vshrl.u32 %v2474, 7
    %v2476 = vsub.s32 0, %v2475
    %v2477 = vrot.slane %v1553, %v2476
    %v2511 = vunpack.c.l.b16 %v1521
    %v2512 = vunpack.c.l.b16 %v1522
    %v2513 = vunpack.c.l.b16 %v1523
    %v2514 = vunpack.c.l.b16 %v1524
    %v2515 = vunpack.c.l.b16 %v1525
    %v2516 = vunpack.c.l.b16 %v1526
    %v2517 = vunpack.c.l.b16 %v1527
    %v2518 = vunpack.c.l.b16 %v1528
    %v2519 = vunpack.c.l.b16 %v1529
    %v2520 = vunpack.c.l.b16 %v1530
    %v2521 = vunpack.c.l.b16 %v1531
    %v2522 = vunpack.c.l.b16 %v1532
    %v2523 = vunpack.c.l.b16 %v1533
    %v2524 = vunpack.c.l.b16 %v1534
    %v2525 = vunpack.c.l.b16 %v1535
    %v2526 = vunpack.c.l.b16 %v1536
    %v2527 = vunpack.c.l.b16 %v1537
    %v2528 = vunpack.c.l.b16 %v1538
    %v2529 = vunpack.c.l.b16 %v1539
    %v2530 = vunpack.c.l.b16 %v1540
    %v2531 = vunpack.c.l.b16 %v1541
    %v2532 = vunpack.c.l.b16 %v1542
    %v2533 = vunpack.c.l.b16 %v1543
    %v2534 = vunpack.c.l.b16 %v1544
    %v2535 = vunpack.c.l.b16 %v1545
    %v2536 = vunpack.c.l.b16 %v1546
    %v2537 = vunpack.c.l.b16 %v1547
    %v2538 = vunpack.c.l.b16 %v1548
    %v2539 = vunpack.c.l.b16 %v1549
    %v2540 = vunpack.c.l.b16 %v1550
    %v2541 = vunpack.c.l.b16 %v1551
    %v2542 = vunpack.c.l.b16 %v1552
    %v2543 = vpack.c.b16 %v2512, %v2511
    %v2544 = vpack.c.b16 %v2514, %v2513
    %v2545 = vpack.c.b16 %v2516, %v2515
    %v2546 = vpack.c.b16 %v2518, %v2517
    %v2547 = vpack.c.b16 %v2520, %v2519
    %v2548 = vpack.c.b16 %v2522, %v2521
    %v2549 = vpack.c.b16 %v2524, %v2523
    %v2550 = vpack.c.b16 %v2526, %v2525
    %v2551 = vpack.c.b16 %v2528, %v2527
    %v2552 = vpack.c.b16 %v2530, %v2529
    %v2553 = vpack.c.b16 %v2532, %v2531
    %v2554 = vpack.c.b16 %v2534, %v2533
    %v2555 = vpack.c.b16 %v2536, %v2535
    %v2556 = vpack.c.b16 %v2538, %v2537
    %v2557 = vpack.c.b16 %v2540, %v2539
    %v2558 = vpack.c.b16 %v2542, %v2541
    %2575 = vmatprep.subr.bf16.mxu0 0
    %2576 = vmatpush1.bf16.msra.mxu0 %v2543
    %2577 = vmatprep.subr.bf16.mxu0 0
    %2578 = vmatpush1.bf16.msra.mxu0 %v2544
    %2579 = vmatprep.subr.bf16.mxu0 0
    %2580 = vmatpush1.bf16.msra.mxu0 %v2545
    %2581 = vmatprep.subr.bf16.mxu0 0
    %2582 = vmatpush1.bf16.msra.mxu0 %v2546
    %2583 = vmatprep.subr.bf16.mxu0 0
    %2584 = vmatpush1.bf16.msra.mxu0 %v2547
    %2585 = vmatprep.subr.bf16.mxu0 0
    %2586 = vmatpush1.bf16.msra.mxu0 %v2548
    %2587 = vmatprep.subr.bf16.mxu0 0
    %2588 = vmatpush1.bf16.msra.mxu0 %v2549
    %2589 = vmatprep.subr.bf16.mxu0 0
    %2590 = vmatpush1.bf16.msra.mxu0 %v2550
    %2591 = vmatprep.subr.bf16.mxu0 0
    %2592 = vmatpush1.bf16.msra.mxu0 %v2551
    %2593 = vmatprep.subr.bf16.mxu0 0
    %2594 = vmatpush1.bf16.msra.mxu0 %v2552
    %2595 = vmatprep.subr.bf16.mxu0 0
    %2596 = vmatpush1.bf16.msra.mxu0 %v2553
    %2597 = vmatprep.subr.bf16.mxu0 0
    %2598 = vmatpush1.bf16.msra.mxu0 %v2554
    %2599 = vmatprep.subr.bf16.mxu0 0
    %2600 = vmatpush1.bf16.msra.mxu0 %v2555
    %2601 = vmatprep.subr.bf16.mxu0 0
    %2602 = vmatpush1.bf16.msra.mxu0 %v2556
    %2603 = vmatprep.subr.bf16.mxu0 0
    %2604 = vmatpush1.bf16.msra.mxu0 %v2557
    %2605 = vmatprep.subr.bf16.mxu0 0
    %2606 = vmatpush1.bf16.msra.mxu0 %v2558
    %2607 = vmatprep.mubr.bf16.mxu0 %v2468
    %2608 = vmatmul.mubr.bf16.gmra.mrb[0].mxu0 %v2467
    %v2609 = vpop.f32.mrb[0].mxu0
    %v2610 = vadd.f32 %v2477, %v2609
    %v2611 = vpop.f32.mrb[0].mxu0
    %v2612 = vpop.f32.mrb[0].mxu0
    %v2613 = vadd.f32 %v2477, %v2612
    %v2614 = vpop.f32.mrb[0].mxu0
    %2615 = vmatprep.mubr.bf16.mxu0 %v2470
    %2616 = vmatmul.mubr.bf16.gmra.mrb[0].mxu0 %v2469
    %v2617 = vpop.f32.mrb[0].mxu0
    %v2618 = vadd.f32 %v2477, %v2617
    %v2619 = vpop.f32.mrb[0].mxu0
    %v2620 = vpop.f32.mrb[0].mxu0
    %v2621 = vadd.f32 %v2477, %v2620
    %v2622 = vpop.f32.mrb[0].mxu0
    %2623 = vmatprep.mubr.bf16.mxu0 %v2472
    %2624 = vmatmul.mubr.bf16.gmra.mrb[0].mxu0 %v2471
    %v2625 = vpop.f32.mrb[0].mxu0
    %v2626 = vadd.f32 %v2477, %v2625
    %v2627 = vpop.f32.mrb[0].mxu0
    %v2628 = vpop.f32.mrb[0].mxu0
    %v2629 = vadd.f32 %v2477, %v2628
    %v2630 = vpop.f32.mrb[0].mxu0
    %2631 = vdwg.mxu0
    %v2632 = vadd.f32 %v2196, %v2610
    %v2633 = vadd.f32 %v2197, %v2613
    %v2634 = vadd.f32 %v2198, %v2618
    %v2635 = vadd.f32 %v2199, %v2621
    %v2636 = vadd.f32 %v2200, %v2626
    %v2637 = vadd.f32 %v2201, %v2629
    %v2638 = vpack.c.bf16 %v2633, %v2632
    %v2639 = vpack.c.bf16 %v2635, %v2634
    %v2640 = vpack.c.bf16 %v2637, %v2636
    %v2641 = vld [vmem:[%s59] sm:$0xf]
    %v2642 = vld [vmem:[%s59 + $0x4] sm:$0xf]
    %v2643 = vld [vmem:[%s59 + $0x8] sm:$0xf]
    %v2644 = vld [vmem:[%s59 + $0xc] sm:$0xf]
    %v2645 = vld [vmem:[%s59 + $0x10] sm:$0xf]
    %v2646 = vld [vmem:[%s59 + $0x14] sm:$0xf]
    %v2647 = vld [vmem:[%s59 + $0x18] sm:$0xf]
    %v2648 = vld [vmem:[%s59 + $0x1c] sm:$0xf]
    %v2649 = vld [vmem:[%s59 + $0x20] sm:$0xf]
    %v2650 = vld [vmem:[%s59 + $0x24] sm:$0xf]
    %v2651 = vld [vmem:[%s59 + $0x28] sm:$0xf]
    %v2652 = vld [vmem:[%s59 + $0x2c] sm:$0xf]
    %v2653 = vld [vmem:[%s59 + $0x30] sm:$0xf]
    %v2654 = vld [vmem:[%s59 + $0x34] sm:$0xf]
    %v2655 = vld [vmem:[%s59 + $0x38] sm:$0xf]
    %v2656 = vld [vmem:[%s59 + $0x3c] sm:$0xf]
    %v2657 = vld [vmem:[%s61] sm:$0x1]
    %v2659 = vlaneseq
    %v2660 = vshrl.u32 %v2659, 7
    %v2661 = vsub.s32 0, %v2660
    %v2662 = vrot.slane %v2657, %v2661
    %v2680 = vunpack.c.l.b16 %v2641
    %v2681 = vunpack.c.l.b16 %v2642
    %v2682 = vunpack.c.l.b16 %v2643
    %v2683 = vunpack.c.l.b16 %v2644
    %v2684 = vunpack.c.l.b16 %v2645
    %v2685 = vunpack.c.l.b16 %v2646
    %v2686 = vunpack.c.l.b16 %v2647
    %v2687 = vunpack.c.l.b16 %v2648
    %v2688 = vunpack.c.l.b16 %v2649
    %v2689 = vunpack.c.l.b16 %v2650
    %v2690 = vunpack.c.l.b16 %v2651
    %v2691 = vunpack.c.l.b16 %v2652
    %v2692 = vunpack.c.l.b16 %v2653
    %v2693 = vunpack.c.l.b16 %v2654
    %v2694 = vunpack.c.l.b16 %v2655
    %v2695 = vunpack.c.l.b16 %v2656
    %v2696 = vpack.c.b16 %v2681, %v2680
    %v2697 = vpack.c.b16 %v2683, %v2682
    %v2698 = vpack.c.b16 %v2685, %v2684
    %v2699 = vpack.c.b16 %v2687, %v2686
    %v2700 = vpack.c.b16 %v2689, %v2688
    %v2701 = vpack.c.b16 %v2691, %v2690
    %v2702 = vpack.c.b16 %v2693, %v2692
    %v2703 = vpack.c.b16 %v2695, %v2694
    %2712 = vmatprep.subr.bf16.mxu0 0
    %2713 = vmatpush1.bf16.msra.mxu0 %v2696
    %2714 = vmatprep.subr.bf16.mxu0 0
    %2715 = vmatpush1.bf16.msra.mxu0 %v2697
    %2716 = vmatprep.subr.bf16.mxu0 0
    %2717 = vmatpush1.bf16.msra.mxu0 %v2698
    %2718 = vmatprep.subr.bf16.mxu0 0
    %2719 = vmatpush1.bf16.msra.mxu0 %v2699
    %2720 = vmatprep.subr.bf16.mxu0 0
    %2721 = vmatpush1.bf16.msra.mxu0 %v2700
    %2722 = vmatprep.subr.bf16.mxu0 0
    %2723 = vmatpush1.bf16.msra.mxu0 %v2701
    %2724 = vmatprep.subr.bf16.mxu0 0
    %2725 = vmatpush1.bf16.msra.mxu0 %v2702
    %2726 = vmatprep.subr.bf16.mxu0 0
    %2727 = vmatpush1.bf16.msra.mxu0 %v2703
    %2728 = vmatprep.subr.bf16.mxu0 0
    %2729 = vmatpush1.bf16.msra.mxu0 0
    %2730 = vmatprep.subr.bf16.mxu0 0
    %2731 = vmatpush1.bf16.msra.mxu0 0
    %2732 = vmatprep.subr.bf16.mxu0 0
    %2733 = vmatpush1.bf16.msra.mxu0 0
    %2734 = vmatprep.subr.bf16.mxu0 0
    %2735 = vmatpush1.bf16.msra.mxu0 0
    %2736 = vmatprep.subr.bf16.mxu0 0
    %2737 = vmatpush1.bf16.msra.mxu0 0
    %2738 = vmatprep.subr.bf16.mxu0 0
    %2739 = vmatpush1.bf16.msra.mxu0 0
    %2740 = vmatprep.subr.bf16.mxu0 0
    %2741 = vmatpush1.bf16.msra.mxu0 0
    %2742 = vmatprep.subr.bf16.mxu0 0
    %2743 = vmatpush1.bf16.msra.mxu0 0
    %2744 = vmatprep.mubr.bf16.mxu0 0
    %2745 = vmatmul.mubr.bf16.gmra.mrb[0].mxu0 %v2638
    %v2746 = vpop.f32.mrb[0].mxu0
    %v2747 = vadd.f32 %v2662, %v2746
    %v2748 = vpop.f32.mrb[0].mxu0
    %v2749 = vpop.f32.mrb[0].mxu0
    %v2750 = vadd.f32 %v2662, %v2749
    %v2751 = vpop.f32.mrb[0].mxu0
    %2752 = vmatprep.mubr.bf16.mxu0 0
    %2753 = vmatmul.mubr.bf16.gmra.mrb[0].mxu0 %v2639
    %v2754 = vpop.f32.mrb[0].mxu0
    %v2755 = vadd.f32 %v2662, %v2754
    %v2756 = vpop.f32.mrb[0].mxu0
    %v2757 = vpop.f32.mrb[0].mxu0
    %v2758 = vadd.f32 %v2662, %v2757
    %v2759 = vpop.f32.mrb[0].mxu0
    %2760 = vmatprep.mubr.bf16.mxu0 0
    %2761 = vmatmul.mubr.bf16.gmra.mrb[0].mxu0 %v2640
    %v2762 = vpop.f32.mrb[0].mxu0
    %v2763 = vadd.f32 %v2662, %v2762
    %v2764 = vpop.f32.mrb[0].mxu0
    %v2765 = vpop.f32.mrb[0].mxu0
    %v2766 = vadd.f32 %v2662, %v2765
    %v2767 = vpop.f32.mrb[0].mxu0
    %2768 = vdwg.mxu0
    %2769 = vst [vmem:[#allocation3] sm:$0xff] %v2747
    %2770 = vst [vmem:[#allocation3 + $0x8] sm:$0xff] %v2750
    %2771 = vst [vmem:[#allocation3 + $0x10] sm:$0xff] %v2755
    %2772 = vst [vmem:[#allocation3 + $0x18] sm:$0xff] %v2758
    %2773 = vst [vmem:[#allocation3 + $0x20] sm:$0xff] %v2763
    %2774 = vst [vmem:[#allocation3 + $0x28] sm:$0xff] %v2766
    %v2775 = vld [vmem:[%s5] sm:$0xff]
    %v2776 = vld [vmem:[%s5 + $0x8] sm:$0xff]
    %v2777 = vld [vmem:[%s5 + $0x10] sm:$0xff]
    %v2778 = vld [vmem:[%s5 + $0x18] sm:$0xff]
    %v2779 = vld [vmem:[%s5 + $0x20] sm:$0xff]
    %v2780 = vld [vmem:[%s5 + $0x28] sm:$0xff]
    %2781 = vmax.xlane.f32.xlu0 %v2747
    %v2782 = vpop.xlane.xlu0 %2781
    %2783 = vmax.xlane.f32.xlu0 %v2750
    %v2784 = vpop.xlane.xlu0 %2783
    %2785 = vmax.xlane.f32.xlu0 %v2755
    %v2786 = vpop.xlane.xlu0 %2785
    %2787 = vmax.xlane.f32.xlu0 %v2758
    %v2788 = vpop.xlane.xlu0 %2787
    %2789 = vmax.xlane.f32.xlu0 %v2763
    %v2790 = vpop.xlane.xlu0 %2789
    %2791 = vmax.xlane.f32.xlu0 %v2766
    %v2792 = vpop.xlane.xlu0 %2791
    %v2793 = vsub.f32 %v2747, %v2782
    %v2794 = vsub.f32 %v2750, %v2784
    %v2795 = vsub.f32 %v2755, %v2786
    %v2796 = vsub.f32 %v2758, %v2788
    %v2797 = vsub.f32 %v2763, %v2790
    %v2798 = vsub.f32 %v2766, %v2792
    %v2799 = vmul.f32 %v2793, 1.442695
    %v2800 = vpow.pop %v2799
    %v2801 = vmul.f32 %v2794, 1.442695
    %v2802 = vpow.pop %v2801
    %v2803 = vmul.f32 %v2795, 1.442695
    %v2804 = vpow.pop %v2803
    %v2805 = vmul.f32 %v2796, 1.442695
    %v2806 = vpow.pop %v2805
    %v2807 = vmul.f32 %v2797, 1.442695
    %v2808 = vpow.pop %v2807
    %v2809 = vmul.f32 %v2798, 1.442695
    %v2810 = vpow.pop %v2809
    %2811 = vadd.xlane.f32.xlu0 %v2800
    %v2812 = vpop.xlane.xlu0 %2811
    %2813 = vadd.xlane.f32.xlu0 %v2802
    %v2814 = vpop.xlane.xlu0 %2813
    %2815 = vadd.xlane.f32.xlu0 %v2804
    %v2816 = vpop.xlane.xlu0 %2815
    %2817 = vadd.xlane.f32.xlu0 %v2806
    %v2818 = vpop.xlane.xlu0 %2817
    %2819 = vadd.xlane.f32.xlu0 %v2808
    %v2820 = vpop.xlane.xlu0 %2819
    %2821 = vadd.xlane.f32.xlu0 %v2810
    %v2822 = vpop.xlane.xlu0 %2821
    %v2823 = vlog2.pop %v2812
    %v2824 = vmul.f32 %v2823, 0.6931472
    %v2825 = vlog2.pop %v2814
    %v2826 = vmul.f32 %v2825, 0.6931472
    %v2827 = vlog2.pop %v2816
    %v2828 = vmul.f32 %v2827, 0.6931472
    %v2829 = vlog2.pop %v2818
    %v2830 = vmul.f32 %v2829, 0.6931472
    %v2831 = vlog2.pop %v2820
    %v2832 = vmul.f32 %v2831, 0.6931472
    %v2833 = vlog2.pop %v2822
    %v2834 = vmul.f32 %v2833, 0.6931472
    %v2835 = vadd.f32 %v2782, %v2824
    %v2836 = vadd.f32 %v2784, %v2826
    %v2837 = vadd.f32 %v2786, %v2828
    %v2838 = vadd.f32 %v2788, %v2830
    %v2839 = vadd.f32 %v2790, %v2832
    %v2840 = vadd.f32 %v2792, %v2834
    %2841 = vset.pattern.permute.xlu0 0
    %2842 = vperm.xlu0 %2841, %v2775
    %v2843 = vpop.permute.xlu0 %2842
    %2844 = vset.pattern.permute.xlu0 0
    %2845 = vperm.xlu0 %2844, %v2776
    %v2846 = vpop.permute.xlu0 %2845
    %2847 = vset.pattern.permute.xlu0 0
    %2848 = vperm.xlu0 %2847, %v2777
    %v2849 = vpop.permute.xlu0 %2848
    %2850 = vset.pattern.permute.xlu0 0
    %2851 = vperm.xlu0 %2850, %v2778
    %v2852 = vpop.permute.xlu0 %2851
    %2853 = vset.pattern.permute.xlu0 0
    %2854 = vperm.xlu0 %2853, %v2779
    %v2855 = vpop.permute.xlu0 %2854
    %2856 = vset.pattern.permute.xlu0 0
    %2857 = vperm.xlu0 %2856, %v2780
    %v2858 = vpop.permute.xlu0 %2857
    %vm2859 = vcmp.eq.s32.totalorder %v155, %v2843
    %vm2860 = vcmp.eq.s32.totalorder %v155, %v2846
    %vm2861 = vcmp.eq.s32.totalorder %v155, %v2849
    %vm2862 = vcmp.eq.s32.totalorder %v155, %v2852
    %vm2863 = vcmp.eq.s32.totalorder %v155, %v2855
    %vm2864 = vcmp.eq.s32.totalorder %v155, %v2858
    %v2865 = vsel %vm2859, %v2747, 0.0
    %v2866 = vsel %vm2860, %v2750, 0.0
    %v2867 = vsel %vm2861, %v2755, 0.0
    %v2868 = vsel %vm2862, %v2758, 0.0
    %v2869 = vsel %vm2863, %v2763, 0.0
    %v2870 = vsel %vm2864, %v2766, 0.0
    %2871 = vadd.xlane.f32.xlu0 %v2865
    %v2872 = vpop.xlane.xlu0 %2871
    %2873 = vadd.xlane.f32.xlu0 %v2866
    %v2874 = vpop.xlane.xlu0 %2873
    %2875 = vadd.xlane.f32.xlu0 %v2867
    %v2876 = vpop.xlane.xlu0 %2875
    %2877 = vadd.xlane.f32.xlu0 %v2868
    %v2878 = vpop.xlane.xlu0 %2877
    %2879 = vadd.xlane.f32.xlu0 %v2869
    %v2880 = vpop.xlane.xlu0 %2879
    %2881 = vadd.xlane.f32.xlu0 %v2870
    %v2882 = vpop.xlane.xlu0 %2881
    %vm2883 = vcmp.ne.s32.totalorder %v2775, 4294967196
    %vm2884 = vcmp.ne.s32.totalorder %v2776, 4294967196
    %vm2885 = vcmp.ne.s32.totalorder %v2777, 4294967196
    %vm2886 = vcmp.ne.s32.totalorder %v2778, 4294967196
    %vm2887 = vcmp.ne.s32.totalorder %v2779, 4294967196
    %vm2888 = vcmp.ne.s32.totalorder %v2780, 4294967196
    %v2889 = vsel %vm2883, 1, 0
    %v2890 = vsel %vm2884, 1, 0
    %v2891 = vsel %vm2885, 1, 0
    %v2892 = vsel %vm2886, 1, 0
    %v2893 = vsel %vm2887, 1, 0
    %v2894 = vsel %vm2888, 1, 0
    %v2895 = vcvt.s32.f32 %v2889
    %v2896 = vcvt.s32.f32 %v2890
    %v2897 = vcvt.s32.f32 %v2891
    %v2898 = vcvt.s32.f32 %v2892
    %v2899 = vcvt.s32.f32 %v2893
    %v2900 = vcvt.s32.f32 %v2894
    %v2901 = vsub.f32 %v2835, %v2872
    %v2902 = vsub.f32 %v2836, %v2874
    %v2903 = vsub.f32 %v2837, %v2876
    %v2904 = vsub.f32 %v2838, %v2878
    %v2905 = vsub.f32 %v2839, %v2880
    %v2906 = vsub.f32 %v2840, %v2882
    %v2907 = vmul.f32 %v2901, %v2895
    %v2908 = vmul.f32 %v2902, %v2896
    %v2909 = vmul.f32 %v2903, %v2897
    %v2910 = vmul.f32 %v2904, %v2898
    %v2911 = vmul.f32 %v2905, %v2899
    %v2912 = vmul.f32 %v2906, %v2900
    %vm2913 = vcmask 7168
    %v2914 = vsel %vm2913, %v2907, 0.0
    %v2915 = vsel %vm2913, %v2908, 0.0
    %v2916 = vadd.f32 %v2914, %v2915
    %v2917 = vsel %vm2913, %v2909, 0.0
    %v2918 = vadd.f32 %v2916, %v2917
    %v2919 = vsel %vm2913, %v2910, 0.0
    %v2920 = vadd.f32 %v2918, %v2919
    %v2921 = vsel %vm2913, %v2911, 0.0
    %v2922 = vadd.f32 %v2920, %v2921
    %v2923 = vsel %vm2913, %v2912, 0.0
    %v2924 = vadd.f32 %v2922, %v2923
    %2925 = vadd.xlane.f32.xlu0 %v2924
    %v2926 = vpop.xlane.xlu0 %2925
    %v2927 = vrot.slane %v2926, 4
    %v2928 = vadd.f32 %v2926, %v2927
    %v2929 = vrot.slane %v2928, 2
    %v2930 = vadd.f32 %v2928, %v2929
    %v2931 = vrot.slane %v2930, 1
    %v2932 = vadd.f32 %v2930, %v2931
    %s2933 = vtos %v2932
    %v2934 = vsel %vm2913, %v2895, 0.0
    %v2935 = vsel %vm2913, %v2896, 0.0
    %v2936 = vadd.f32 %v2934, %v2935
    %v2937 = vsel %vm2913, %v2897, 0.0
    %v2938 = vadd.f32 %v2936, %v2937
    %v2939 = vsel %vm2913, %v2898, 0.0
    %v2940 = vadd.f32 %v2938, %v2939
    %v2941 = vsel %vm2913, %v2899, 0.0
    %v2942 = vadd.f32 %v2940, %v2941
    %v2943 = vsel %vm2913, %v2900, 0.0
    %v2944 = vadd.f32 %v2942, %v2943
    %2945 = vadd.xlane.f32.xlu0 %v2944
    %v2946 = vpop.xlane.xlu0 %2945
    %v2947 = vrot.slane %v2946, 4
    %v2948 = vadd.f32 %v2946, %v2947
    %v2949 = vrot.slane %v2948, 2
    %v2950 = vadd.f32 %v2948, %v2949
    %v2951 = vrot.slane %v2950, 1
    %v2952 = vadd.f32 %v2950, %v2951
    %s2953 = vtos %v2952
    %s2954 = smax.f32 %s2953, 1.0
    %v2955 = vstv %s2954
    %v2956 = vrcp.pop %v2955
    %s2957 = vtos %v2956
    %s2958 = smul.f32 %s2933, %s2957
    %v2959 = vstv %s2958
    %vm2960 = vcmask 0
    %2961 = vst.msk [vmem:[#allocation5] sm:$0x1] %vm2960, %v2959
    // Predicated region
    $region126: #{inv_encoder_decoder_forward.1} parent=1 // pred_check
      _
    $region127: #{inv_encoder_decoder_forward.1} parent=1 // pred_check_branch
      %2963 = sbr.rel (0) target = $region129
    $region128: #{inv_encoder_decoder_forward.1} parent=1 // pred_region
      %s2965 = ssub.s32 768, 768
      %2966 = vsyncadd [#allocation4], %s2965
      %s2967 = sshll.u32 [#allocation3], 4
      %s2968 = int_to_ptr.vmem [resolvable:$true] %s2967
      %2973 = dma.vmem_to_hbm [thread:$0]  %s2968, 768, %s63, [#allocation4], 128, 128, 8
    $region129: #{inv_encoder_decoder_forward.1} parent=1 // pred_fallthru
      _
    // Predicated region
    $region130: #{inv_encoder_decoder_forward.1} parent=1 // pred_check
      _
    $region131: #{inv_encoder_decoder_forward.1} parent=1 // pred_check_branch
      %2975 = sbr.rel (0) target = $region133
    $region132: #{inv_encoder_decoder_forward.1} parent=1 // pred_region
      %s2977 = ssub.s32 16, 16
      %2978 = vsyncadd [#allocation6], %s2977
      %s2980 = sshll.u32 [#allocation5], 4
      %s2981 = int_to_ptr.vmem [resolvable:$true] %s2980
      %2983 = dma.vmem_to_hbm [thread:$0]  %s2981, 16, %s65, [#allocation6]
    $region133: #{inv_encoder_decoder_forward.1} parent=1 // pred_fallthru
      _
    // Predicated region
    $region134: #{inv_encoder_decoder_forward.1} parent=1 // pred_check
      _
    $region135: #{inv_encoder_decoder_forward.1} parent=1 // pred_check_branch
      %2985 = sbr.rel (0) target = $region137
    $region136: #{inv_encoder_decoder_forward.1} parent=1 // pred_region
      %2986 = dma.done [#allocation4], 768
    $region137: #{inv_encoder_decoder_forward.1} parent=1 // pred_fallthru
      _
    // Predicated region
    $region138: #{inv_encoder_decoder_forward.1} parent=1 // pred_check
      _
    $region139: #{inv_encoder_decoder_forward.1} parent=1 // pred_check_branch
      %2988 = sbr.rel (0) target = $region141
    $region140: #{inv_encoder_decoder_forward.1} parent=1 // pred_region
      %2989 = dma.done [#allocation6], 16
    $region141: #{inv_encoder_decoder_forward.1} parent=1 // pred_fallthru
      _
    %2990 = vsyncpa [#allocation4], 1
    %2991 = vsyncpa [#allocation6], 1

</llo_original>
